<compile_context>
chip_gen: v5e
topology: v5e:2x2
jax: 0.10.0
libtpu: 0.0.40
codegen_flags: <defaults>
</compile_context>

<pallas_src>
import functools

import jax
import jax.numpy as jnp
from jax import lax
from jax.experimental import pallas as pl
from jax.experimental.pallas import tpu as pltpu


# ----------------------------- weight packing --------------------------------
def _pack_dir_weights(w_f, w_b, H):
    """Block-diagonal, direction-interleaved gate packing.

    w_f: (df, 3H), w_b: (db, 3H), gate column order [r | z | n] each.
    Returns (df + db, 6H) with columns [r_f r_b z_f z_b n_f n_b] so that
    concat([x_f, x_b], -1) @ W yields both directions' gate pre-activations
    in a single lane-packed matmul.
    """
    df, db = w_f.shape[0], w_b.shape[0]
    zf = jnp.zeros((df, H), w_f.dtype)
    zb = jnp.zeros((db, H), w_b.dtype)
    cols = []
    for g in range(3):
        cols.append(jnp.concatenate([w_f[:, g * H:(g + 1) * H], zb], axis=0))
        cols.append(jnp.concatenate([zf, w_b[:, g * H:(g + 1) * H]], axis=0))
    return jnp.concatenate(cols, axis=1)


def _pack_dir_bias(b_f, b_b, H):
    """(1,3H),(1,3H) -> (1,6H) in order [r_f r_b z_f z_b n_f n_b]."""
    parts = []
    for g in range(3):
        parts.append(b_f[:, g * H:(g + 1) * H])
        parts.append(b_b[:, g * H:(g + 1) * H])
    return jnp.concatenate(parts, axis=1)


# --------------------------------- kernel ------------------------------------
def _make_kernel(num_layers, seq_len, batch, hidden, d_in):
    L, T, B, H = num_layers, seq_len, batch, hidden

    def kernel(x_ref, *rest):
        w_refs = rest[:4 * L]
        out_ref = rest[4 * L]          # (T, B, 2H): [out_f(t) | out_b flipped]
        hfin_ref = rest[4 * L + 1]     # (L, B, 2H): final [h_f | h_b] per layer
        seq_scr = rest[4 * L + 2]      # (T, B, 2H): layer i/o sequence (packed dirs)
        gi_scr = rest[4 * L + 3]       # (T, B, 6H): time-batched gate pre-activations

        for j in range(L):
            wih_ref, whh_ref, bi_ref, bhn_ref = w_refs[4 * j:4 * (j + 1)]
            dj = d_in if j == 0 else H
            if j == 0:
                x_in = x_ref[...].reshape(T * B, 2 * dj)
            else:
                x_in = seq_scr[...].reshape(T * B, 2 * dj)

            # One big matmul per layer: both directions, all timesteps.
            # Gate layout [r_f r_b z_f z_b n_f n_b]; r/z biases (ih+hh) pre-folded.
            gi = jnp.dot(x_in, wih_ref[...],
                         preferred_element_type=jnp.float32) + bi_ref[...]
            gi_scr[...] = gi.reshape(T, B, 6 * H)

            last = j == L - 1

            def step(s, h_cat):
                # h_cat: (B, 2H) = [h_f | h_b]; single block-diag recurrent matmul.
                gh = jnp.dot(h_cat, whh_ref[...],
                             preferred_element_type=jnp.float32)
                gi_s = gi_scr[s]                                   # (B, 6H)
                a_rz = jax.nn.sigmoid(gi_s[:, :4 * H] + gh[:, :4 * H])
                r = a_rz[:, :2 * H]
                z = a_rz[:, 2 * H:]
                n = jnp.tanh(gi_s[:, 4 * H:] + r * (gh[:, 4 * H:] + bhn_ref[...]))
                h_new = (1.0 - z) * n + z * h_cat
                if last:
                    out_ref[s, :, :H] = h_new[:, :H]               # forward, time s
                    out_ref[T - 1 - s, :, H:] = h_new[:, H:]       # backward, flipped
                else:
                    seq_scr[s] = h_new                             # next layer's input
                return h_new

            h_last = lax.fori_loop(0, T, step,
                                   jnp.zeros((B, 2 * H), jnp.float32),
                                   unroll=True)
            hfin_ref[j] = h_last

    return kernel


# -------------------------------- wrapper -------------------------------------
def bidirectional_gru_encoder(x, params, hidden_size, num_layers):
    """x: (B, T, D) float32. Returns (out (B,T,2H), h (L,B,2H))."""
    B, T, D = x.shape
    H = hidden_size
    L = num_layers

    xt = jnp.transpose(x, (1, 0, 2))                    # (T, B, D) time-major
    x_cat = jnp.concatenate([xt, xt[::-1]], axis=-1)    # (T, B, 2D): [x(t) | x(T-1-t)]

    weight_args = []
    in_specs = [pl.BlockSpec((T, B, 2 * D), lambda i: (0, 0, 0))]
    d_prev = D
    for j in range(L):
        wih_f, whh_f, bih_f, bhh_f = params[(j, "f")]
        wih_b, whh_b, bih_b, bhh_b = params[(j, "b")]
        wih_big = _pack_dir_weights(wih_f, wih_b, H)    # (2*d_prev, 6H)
        whh_big = _pack_dir_weights(whh_f, whh_b, H)    # (2H, 6H)
        bih_p = _pack_dir_bias(bih_f, bih_b, H)         # (1, 6H)
        bhh_p = _pack_dir_bias(bhh_f, bhh_b, H)         # (1, 6H)
        # Fold hh bias into the ih bias for r/z gates; n keeps bhn separate
        # because of r * (h Whn + bhn).
        bi = jnp.concatenate(
            [bih_p[:, :4 * H] + bhh_p[:, :4 * H], bih_p[:, 4 * H:]], axis=1)
        bhn = bhh_p[:, 4 * H:]                          # (1, 2H)
        weight_args += [wih_big, whh_big, bi, bhn]
        in_specs += [
            pl.BlockSpec((2 * d_prev, 6 * H), lambda i: (0, 0)),
            pl.BlockSpec((2 * H, 6 * H), lambda i: (0, 0)),
            pl.BlockSpec((1, 6 * H), lambda i: (0, 0)),
            pl.BlockSpec((1, 2 * H), lambda i: (0, 0)),
        ]
        d_prev = H

    out_specs = [
        pl.BlockSpec((T, B, 2 * H), lambda i: (0, 0, 0)),
        pl.BlockSpec((L, B, 2 * H), lambda i: (0, 0, 0)),
    ]
    out_shape = (
        jax.ShapeDtypeStruct((T, B, 2 * H), jnp.float32),
        jax.ShapeDtypeStruct((L, B, 2 * H), jnp.float32),
    )

    kernel = _make_kernel(L, T, B, H, D)
    out_tm, h = pl.pallas_call(
        kernel,
        out_shape=out_shape,
        grid_spec=pltpu.PrefetchScalarGridSpec(
            num_scalar_prefetch=0,
            grid=(1,),                                   # single invocation; time loop in-kernel
            in_specs=in_specs,
            out_specs=out_specs,
            scratch_shapes=[
                pltpu.VMEM((T, B, 2 * H), jnp.float32),  # layer i/o sequence
                pltpu.VMEM((T, B, 6 * H), jnp.float32),  # time-batched gate pre-activations
            ],
        ),
        compiler_params=pltpu.CompilerParams(
            dimension_semantics=("arbitrary",)),
    )(x_cat, *weight_args)

    out = jnp.transpose(out_tm, (1, 0, 2))   # (B, T, 2H); bwd half already time-flipped
    return out, h


# ---------------- pure-JAX reference (mirrors the PyTorch forward) -----------
def _gru_cell_ref(x, h, wih, whh, bih, bhh, H):
    gi = x @ wih + bih
    gh = h @ whh + bhh
    r = jax.nn.sigmoid(gi[:, :H] + gh[:, :H])
    z = jax.nn.sigmoid(gi[:, H:2 * H] + gh[:, H:2 * H])
    n = jnp.tanh(gi[:, 2 * H:] + r * gh[:, 2 * H:])
    return (1.0 - z) * n + z * h


def _reference(x, params, H, L):
    B, T, D = x.shape
    h_f = [jnp.zeros((B, H), jnp.float32)] * L
    h_b = [jnp.zeros((B, H), jnp.float32)] * L
    xr = x[:, ::-1, :]
    out_f, out_b = [], []
    for i in range(T):
        hf = x[:, i, :]
        hb = xr[:, i, :]
        for j in range(L):
            hf = _gru_cell_ref(hf, h_f[j], *params[(j, "f")], H)
            hb = _gru_cell_ref(hb, h_b[j], *params[(j, "b")], H)
            h_f[j] = hf
            h_b[j] = hb
        out_f.append(hf)
        out_b.append(hb)
    out_f = jnp.stack(out_f, axis=1)
    out_b = jnp.stack(out_b, axis=1)[:, ::-1, :]
    out = jnp.concatenate([out_f, out_b], axis=-1)
    h = jnp.concatenate([jnp.stack(h_f, 0), jnp.stack(h_b, 0)], axis=-1)
    return out, h


# ---------------- deterministic parameter init (torch GRUCell style) ---------
def init_params(key, input_size, hidden_size, num_layers):
    H = hidden_size
    bound = 1.0 / jnp.sqrt(jnp.float32(H))
    params = {}
    d_in = input_size
    for j in range(num_layers):
        for d in ("f", "b"):
            key, k1, k2, k3, k4 = jax.random.split(key, 5)
            # stored transposed relative to torch: x @ wih, h @ whh; gate order r,z,n
            wih = jax.random.uniform(k1, (d_in, 3 * H), jnp.float32, -bound, bound)
            whh = jax.random.uniform(k2, (H, 3 * H), jnp.float32, -bound, bound)
            bih = jax.random.uniform(k3, (1, 3 * H), jnp.float32, -bound, bound)
            bhh = jax.random.uniform(k4, (1, 3 * H), jnp.float32, -bound, bound)
            params[(j, d)] = (wih, whh, bih, bhh)
        d_in = H
    return params


if __name__ == "__main__":
    B, T, D, H, L = 8, 8, 16, 32, 2

    key = jax.random.PRNGKey(0)
    key, kx = jax.random.split(key)
    x = jax.random.normal(kx, (B, T, D), jnp.float32)
    params = init_params(key, D, H, L)

    run = jax.jit(functools.partial(
        bidirectional_gru_encoder, hidden_size=H, num_layers=L))
    out, h = run(x, params)
    jax.block_until_ready((out, h))

    out_ref, h_ref = _reference(x, params, H, L)
    assert out.shape == (B, T, 2 * H) and h.shape == (L, B, 2 * H)
    assert jnp.allclose(out, out_ref, atol=1e-5, rtol=1e-5)
    assert jnp.allclose(h, h_ref, atol=1e-5, rtol=1e-5)

    print("KERNEL_OK")
</pallas_src>

<mosaic_0001>
module attributes {stable_mosaic.version = 11 : i64} {
  func.func @kernel(%arg0: i32, %arg1: memref<8x8x32xf32, #tpu.memory_space<vmem>>, %arg2: memref<32x192xf32, #tpu.memory_space<vmem>>, %arg3: memref<64x192xf32, #tpu.memory_space<vmem>>, %arg4: memref<1x192xf32, #tpu.memory_space<vmem>>, %arg5: memref<1x64xf32, #tpu.memory_space<vmem>>, %arg6: memref<64x192xf32, #tpu.memory_space<vmem>>, %arg7: memref<64x192xf32, #tpu.memory_space<vmem>>, %arg8: memref<1x192xf32, #tpu.memory_space<vmem>>, %arg9: memref<1x64xf32, #tpu.memory_space<vmem>>, %arg10: memref<8x8x64xf32, #tpu.memory_space<vmem>>, %arg11: memref<2x8x64xf32, #tpu.memory_space<vmem>>, %arg12: memref<8x8x64xf32, #tpu.memory_space<vmem>>, %arg13: memref<8x8x192xf32, #tpu.memory_space<vmem>>) attributes {dimension_semantics = [#tpu.dimension_semantics<arbitrary>], iteration_bounds = array<i64: 1>, scalar_prefetch = 0 : i64, scratch_operands = 2 : i64, tpu.core_type = #tpu.core_type<tc>, window_params = [{pipeline_mode = #tpu.pipeline_mode<synchronous>, transform_indices = @transform_0, window_bounds = array<i64: 8, 8, 32>}, {pipeline_mode = #tpu.pipeline_mode<synchronous>, transform_indices = @transform_1, window_bounds = array<i64: 32, 192>}, {pipeline_mode = #tpu.pipeline_mode<synchronous>, transform_indices = @transform_2, window_bounds = array<i64: 64, 192>}, {pipeline_mode = #tpu.pipeline_mode<synchronous>, transform_indices = @transform_3, window_bounds = array<i64: 1, 192>}, {pipeline_mode = #tpu.pipeline_mode<synchronous>, transform_indices = @transform_4, window_bounds = array<i64: 1, 64>}, {pipeline_mode = #tpu.pipeline_mode<synchronous>, transform_indices = @transform_5, window_bounds = array<i64: 64, 192>}, {pipeline_mode = #tpu.pipeline_mode<synchronous>, transform_indices = @transform_6, window_bounds = array<i64: 64, 192>}, {pipeline_mode = #tpu.pipeline_mode<synchronous>, transform_indices = @transform_7, window_bounds = array<i64: 1, 192>}, {pipeline_mode = #tpu.pipeline_mode<synchronous>, transform_indices = @transform_8, window_bounds = array<i64: 1, 64>}, {pipeline_mode = #tpu.pipeline_mode<synchronous>, transform_indices = @transform_9, window_bounds = array<i64: 8, 8, 64>}, {pipeline_mode = #tpu.pipeline_mode<synchronous>, transform_indices = @transform_10, window_bounds = array<i64: 2, 8, 64>}]} {
    %c0 = arith.constant 0 : index
    %c0_0 = arith.constant 0 : index
    %c0_1 = arith.constant 0 : index
    %0 = vector.load %arg1[%c0, %c0_0, %c0_1] : memref<8x8x32xf32, #tpu.memory_space<vmem>>, vector<8x8x32xf32>
    %1 = vector.shape_cast %0 : vector<8x8x32xf32> to vector<64x32xf32>
    %c0_2 = arith.constant 0 : index
    %c0_3 = arith.constant 0 : index
    %2 = vector.load %arg2[%c0_2, %c0_3] : memref<32x192xf32, #tpu.memory_space<vmem>>, vector<32x192xf32>
    %cst = arith.constant dense<0.000000e+00> : vector<64x192xf32>
    %3 = tpu.matmul %1, %2, %cst {dimension_numbers = #tpu.dot_dimension_numbers<[1], [0], [0], [1], [0, 0, 1, 1], [], []>} : vector<64x32xf32>, vector<32x192xf32>, vector<64x192xf32> -> vector<64x192xf32>
    %c0_4 = arith.constant 0 : index
    %c0_5 = arith.constant 0 : index
    %4 = vector.load %arg4[%c0_4, %c0_5] : memref<1x192xf32, #tpu.memory_space<vmem>>, vector<1x192xf32>
    %5 = vector.broadcast %4 : vector<1x192xf32> to vector<64x192xf32>
    %6 = arith.addf %3, %5 : vector<64x192xf32>
    %7 = vector.shape_cast %6 : vector<64x192xf32> to vector<8x8x192xf32>
    %c0_6 = arith.constant 0 : index
    %c0_7 = arith.constant 0 : index
    %c0_8 = arith.constant 0 : index
    %8 = vector.load %arg13[%c0_6, %c0_7, %c0_8] : memref<8x8x192xf32, #tpu.memory_space<vmem>>, vector<8x8x192xf32>
    tpu.vector_store %arg13[%c0_6, %c0_7, %c0_8], %7 {strides = array<i32>} : memref<8x8x192xf32, #tpu.memory_space<vmem>>, vector<8x8x192xf32>,
    %cst_9 = arith.constant 0.000000e+00 : f32
    %9 = vector.broadcast %cst_9 : f32 to vector<8x64xf32>
    %c0_i32 = arith.constant 0 : i32
    %c0_10 = arith.constant 0 : index
    %c0_11 = arith.constant 0 : index
    %10 = vector.load %arg3[%c0_10, %c0_11] : memref<64x192xf32, #tpu.memory_space<vmem>>, vector<64x192xf32>
    %cst_12 = arith.constant dense<0.000000e+00> : vector<8x192xf32>
    %11 = tpu.matmul %9, %10, %cst_12 {dimension_numbers = #tpu.dot_dimension_numbers<[1], [0], [0], [1], [0, 0, 1, 1], [], []>} : vector<8x64xf32>, vector<64x192xf32>, vector<8x192xf32> -> vector<8x192xf32>
    %12 = arith.index_cast %c0_i32 : i32 to index
    %c0_13 = arith.constant 0 : index
    %c0_14 = arith.constant 0 : index
    %13 = vector.load %arg13[%12, %c0_13, %c0_14] : memref<8x8x192xf32, #tpu.memory_space<vmem>>, vector<1x8x192xf32>
    %14 = vector.shape_cast %13 : vector<1x8x192xf32> to vector<8x192xf32>
    %15 = vector.extract_strided_slice %14 {offsets = [0, 0], sizes = [8, 128], strides = [1, 1]} : vector<8x192xf32> to vector<8x128xf32>
    %16 = vector.extract_strided_slice %11 {offsets = [0, 0], sizes = [8, 128], strides = [1, 1]} : vector<8x192xf32> to vector<8x128xf32>
    %17 = arith.addf %15, %16 : vector<8x128xf32>
    %18 = arith.negf %17 : vector<8x128xf32>
    %19 = math.exp %18 : vector<8x128xf32>
    %cst_15 = arith.constant 1.000000e+00 : f32
    %20 = vector.broadcast %cst_15 : f32 to vector<8x128xf32>
    %21 = arith.addf %20, %19 : vector<8x128xf32>
    %22 = arith.divf %20, %21 : vector<8x128xf32>
    %23 = vector.extract_strided_slice %22 {offsets = [0, 0], sizes = [8, 64], strides = [1, 1]} : vector<8x128xf32> to vector<8x64xf32>
    %24 = vector.extract_strided_slice %22 {offsets = [0, 64], sizes = [8, 64], strides = [1, 1]} : vector<8x128xf32> to vector<8x64xf32>
    %25 = vector.extract_strided_slice %14 {offsets = [0, 128], sizes = [8, 64], strides = [1, 1]} : vector<8x192xf32> to vector<8x64xf32>
    %26 = vector.extract_strided_slice %11 {offsets = [0, 128], sizes = [8, 64], strides = [1, 1]} : vector<8x192xf32> to vector<8x64xf32>
    %c0_16 = arith.constant 0 : index
    %c0_17 = arith.constant 0 : index
    %27 = vector.load %arg5[%c0_16, %c0_17] : memref<1x64xf32, #tpu.memory_space<vmem>>, vector<1x64xf32>
    %28 = vector.broadcast %27 : vector<1x64xf32> to vector<8x64xf32>
    %29 = arith.addf %26, %28 : vector<8x64xf32>
    %30 = arith.mulf %23, %29 : vector<8x64xf32>
    %31 = arith.addf %25, %30 : vector<8x64xf32>
    %32 = math.tanh %31 : vector<8x64xf32>
    %cst_18 = arith.constant 1.000000e+00 : f32
    %33 = vector.broadcast %cst_18 : f32 to vector<8x64xf32>
    %34 = arith.subf %33, %24 : vector<8x64xf32>
    %35 = arith.mulf %34, %32 : vector<8x64xf32>
    %36 = arith.mulf %24, %9 : vector<8x64xf32>
    %37 = arith.addf %35, %36 : vector<8x64xf32>
    %38 = arith.index_cast %c0_i32 : i32 to index
    %c0_19 = arith.constant 0 : index
    %c0_20 = arith.constant 0 : index
    %39 = vector.load %arg12[%38, %c0_19, %c0_20] : memref<8x8x64xf32, #tpu.memory_space<vmem>>, vector<1x8x64xf32>
    %40 = vector.shape_cast %39 : vector<1x8x64xf32> to vector<8x64xf32>
    %41 = vector.shape_cast %37 : vector<8x64xf32> to vector<1x8x64xf32>
    tpu.vector_store %arg12[%38, %c0_19, %c0_20], %41 {strides = array<i32>} : memref<8x8x64xf32, #tpu.memory_space<vmem>>, vector<1x8x64xf32>,
    %c1_i32 = arith.constant 1 : i32
    %c0_21 = arith.constant 0 : index
    %c0_22 = arith.constant 0 : index
    %42 = vector.load %arg3[%c0_21, %c0_22] : memref<64x192xf32, #tpu.memory_space<vmem>>, vector<64x192xf32>
    %cst_23 = arith.constant dense<0.000000e+00> : vector<8x192xf32>
    %43 = tpu.matmul %37, %42, %cst_23 {dimension_numbers = #tpu.dot_dimension_numbers<[1], [0], [0], [1], [0, 0, 1, 1], [], []>} : vector<8x64xf32>, vector<64x192xf32>, vector<8x192xf32> -> vector<8x192xf32>
    %44 = arith.index_cast %c1_i32 : i32 to index
    %c0_24 = arith.constant 0 : index
    %c0_25 = arith.constant 0 : index
    %45 = vector.load %arg13[%44, %c0_24, %c0_25] : memref<8x8x192xf32, #tpu.memory_space<vmem>>, vector<1x8x192xf32>
    %46 = vector.shape_cast %45 : vector<1x8x192xf32> to vector<8x192xf32>
    %47 = vector.extract_strided_slice %46 {offsets = [0, 0], sizes = [8, 128], strides = [1, 1]} : vector<8x192xf32> to vector<8x128xf32>
    %48 = vector.extract_strided_slice %43 {offsets = [0, 0], sizes = [8, 128], strides = [1, 1]} : vector<8x192xf32> to vector<8x128xf32>
    %49 = arith.addf %47, %48 : vector<8x128xf32>
    %50 = arith.negf %49 : vector<8x128xf32>
    %51 = math.exp %50 : vector<8x128xf32>
    %cst_26 = arith.constant 1.000000e+00 : f32
    %52 = vector.broadcast %cst_26 : f32 to vector<8x128xf32>
    %53 = arith.addf %52, %51 : vector<8x128xf32>
    %54 = arith.divf %52, %53 : vector<8x128xf32>
    %55 = vector.extract_strided_slice %54 {offsets = [0, 0], sizes = [8, 64], strides = [1, 1]} : vector<8x128xf32> to vector<8x64xf32>
    %56 = vector.extract_strided_slice %54 {offsets = [0, 64], sizes = [8, 64], strides = [1, 1]} : vector<8x128xf32> to vector<8x64xf32>
    %57 = vector.extract_strided_slice %46 {offsets = [0, 128], sizes = [8, 64], strides = [1, 1]} : vector<8x192xf32> to vector<8x64xf32>
    %58 = vector.extract_strided_slice %43 {offsets = [0, 128], sizes = [8, 64], strides = [1, 1]} : vector<8x192xf32> to vector<8x64xf32>
    %c0_27 = arith.constant 0 : index
    %c0_28 = arith.constant 0 : index
    %59 = vector.load %arg5[%c0_27, %c0_28] : memref<1x64xf32, #tpu.memory_space<vmem>>, vector<1x64xf32>
    %60 = vector.broadcast %59 : vector<1x64xf32> to vector<8x64xf32>
    %61 = arith.addf %58, %60 : vector<8x64xf32>
    %62 = arith.mulf %55, %61 : vector<8x64xf32>
    %63 = arith.addf %57, %62 : vector<8x64xf32>
    %64 = math.tanh %63 : vector<8x64xf32>
    %cst_29 = arith.constant 1.000000e+00 : f32
    %65 = vector.broadcast %cst_29 : f32 to vector<8x64xf32>
    %66 = arith.subf %65, %56 : vector<8x64xf32>
    %67 = arith.mulf %66, %64 : vector<8x64xf32>
    %68 = arith.mulf %56, %37 : vector<8x64xf32>
    %69 = arith.addf %67, %68 : vector<8x64xf32>
    %70 = arith.index_cast %c1_i32 : i32 to index
    %c0_30 = arith.constant 0 : index
    %c0_31 = arith.constant 0 : index
    %71 = vector.load %arg12[%70, %c0_30, %c0_31] : memref<8x8x64xf32, #tpu.memory_space<vmem>>, vector<1x8x64xf32>
    %72 = vector.shape_cast %71 : vector<1x8x64xf32> to vector<8x64xf32>
    %73 = vector.shape_cast %69 : vector<8x64xf32> to vector<1x8x64xf32>
    tpu.vector_store %arg12[%70, %c0_30, %c0_31], %73 {strides = array<i32>} : memref<8x8x64xf32, #tpu.memory_space<vmem>>, vector<1x8x64xf32>,
    %c2_i32 = arith.constant 2 : i32
    %c0_32 = arith.constant 0 : index
    %c0_33 = arith.constant 0 : index
    %74 = vector.load %arg3[%c0_32, %c0_33] : memref<64x192xf32, #tpu.memory_space<vmem>>, vector<64x192xf32>
    %cst_34 = arith.constant dense<0.000000e+00> : vector<8x192xf32>
    %75 = tpu.matmul %69, %74, %cst_34 {dimension_numbers = #tpu.dot_dimension_numbers<[1], [0], [0], [1], [0, 0, 1, 1], [], []>} : vector<8x64xf32>, vector<64x192xf32>, vector<8x192xf32> -> vector<8x192xf32>
    %76 = arith.index_cast %c2_i32 : i32 to index
    %c0_35 = arith.constant 0 : index
    %c0_36 = arith.constant 0 : index
    %77 = vector.load %arg13[%76, %c0_35, %c0_36] : memref<8x8x192xf32, #tpu.memory_space<vmem>>, vector<1x8x192xf32>
    %78 = vector.shape_cast %77 : vector<1x8x192xf32> to vector<8x192xf32>
    %79 = vector.extract_strided_slice %78 {offsets = [0, 0], sizes = [8, 128], strides = [1, 1]} : vector<8x192xf32> to vector<8x128xf32>
    %80 = vector.extract_strided_slice %75 {offsets = [0, 0], sizes = [8, 128], strides = [1, 1]} : vector<8x192xf32> to vector<8x128xf32>
    %81 = arith.addf %79, %80 : vector<8x128xf32>
    %82 = arith.negf %81 : vector<8x128xf32>
    %83 = math.exp %82 : vector<8x128xf32>
    %cst_37 = arith.constant 1.000000e+00 : f32
    %84 = vector.broadcast %cst_37 : f32 to vector<8x128xf32>
    %85 = arith.addf %84, %83 : vector<8x128xf32>
    %86 = arith.divf %84, %85 : vector<8x128xf32>
    %87 = vector.extract_strided_slice %86 {offsets = [0, 0], sizes = [8, 64], strides = [1, 1]} : vector<8x128xf32> to vector<8x64xf32>
    %88 = vector.extract_strided_slice %86 {offsets = [0, 64], sizes = [8, 64], strides = [1, 1]} : vector<8x128xf32> to vector<8x64xf32>
    %89 = vector.extract_strided_slice %78 {offsets = [0, 128], sizes = [8, 64], strides = [1, 1]} : vector<8x192xf32> to vector<8x64xf32>
    %90 = vector.extract_strided_slice %75 {offsets = [0, 128], sizes = [8, 64], strides = [1, 1]} : vector<8x192xf32> to vector<8x64xf32>
    %c0_38 = arith.constant 0 : index
    %c0_39 = arith.constant 0 : index
    %91 = vector.load %arg5[%c0_38, %c0_39] : memref<1x64xf32, #tpu.memory_space<vmem>>, vector<1x64xf32>
    %92 = vector.broadcast %91 : vector<1x64xf32> to vector<8x64xf32>
    %93 = arith.addf %90, %92 : vector<8x64xf32>
    %94 = arith.mulf %87, %93 : vector<8x64xf32>
    %95 = arith.addf %89, %94 : vector<8x64xf32>
    %96 = math.tanh %95 : vector<8x64xf32>
    %cst_40 = arith.constant 1.000000e+00 : f32
    %97 = vector.broadcast %cst_40 : f32 to vector<8x64xf32>
    %98 = arith.subf %97, %88 : vector<8x64xf32>
    %99 = arith.mulf %98, %96 : vector<8x64xf32>
    %100 = arith.mulf %88, %69 : vector<8x64xf32>
    %101 = arith.addf %99, %100 : vector<8x64xf32>
    %102 = arith.index_cast %c2_i32 : i32 to index
    %c0_41 = arith.constant 0 : index
    %c0_42 = arith.constant 0 : index
    %103 = vector.load %arg12[%102, %c0_41, %c0_42] : memref<8x8x64xf32, #tpu.memory_space<vmem>>, vector<1x8x64xf32>
    %104 = vector.shape_cast %103 : vector<1x8x64xf32> to vector<8x64xf32>
    %105 = vector.shape_cast %101 : vector<8x64xf32> to vector<1x8x64xf32>
    tpu.vector_store %arg12[%102, %c0_41, %c0_42], %105 {strides = array<i32>} : memref<8x8x64xf32, #tpu.memory_space<vmem>>, vector<1x8x64xf32>,
    %c3_i32 = arith.constant 3 : i32
    %c0_43 = arith.constant 0 : index
    %c0_44 = arith.constant 0 : index
    %106 = vector.load %arg3[%c0_43, %c0_44] : memref<64x192xf32, #tpu.memory_space<vmem>>, vector<64x192xf32>
    %cst_45 = arith.constant dense<0.000000e+00> : vector<8x192xf32>
    %107 = tpu.matmul %101, %106, %cst_45 {dimension_numbers = #tpu.dot_dimension_numbers<[1], [0], [0], [1], [0, 0, 1, 1], [], []>} : vector<8x64xf32>, vector<64x192xf32>, vector<8x192xf32> -> vector<8x192xf32>
    %108 = arith.index_cast %c3_i32 : i32 to index
    %c0_46 = arith.constant 0 : index
    %c0_47 = arith.constant 0 : index
    %109 = vector.load %arg13[%108, %c0_46, %c0_47] : memref<8x8x192xf32, #tpu.memory_space<vmem>>, vector<1x8x192xf32>
    %110 = vector.shape_cast %109 : vector<1x8x192xf32> to vector<8x192xf32>
    %111 = vector.extract_strided_slice %110 {offsets = [0, 0], sizes = [8, 128], strides = [1, 1]} : vector<8x192xf32> to vector<8x128xf32>
    %112 = vector.extract_strided_slice %107 {offsets = [0, 0], sizes = [8, 128], strides = [1, 1]} : vector<8x192xf32> to vector<8x128xf32>
    %113 = arith.addf %111, %112 : vector<8x128xf32>
    %114 = arith.negf %113 : vector<8x128xf32>
    %115 = math.exp %114 : vector<8x128xf32>
    %cst_48 = arith.constant 1.000000e+00 : f32
    %116 = vector.broadcast %cst_48 : f32 to vector<8x128xf32>
    %117 = arith.addf %116, %115 : vector<8x128xf32>
    %118 = arith.divf %116, %117 : vector<8x128xf32>
    %119 = vector.extract_strided_slice %118 {offsets = [0, 0], sizes = [8, 64], strides = [1, 1]} : vector<8x128xf32> to vector<8x64xf32>
    %120 = vector.extract_strided_slice %118 {offsets = [0, 64], sizes = [8, 64], strides = [1, 1]} : vector<8x128xf32> to vector<8x64xf32>
    %121 = vector.extract_strided_slice %110 {offsets = [0, 128], sizes = [8, 64], strides = [1, 1]} : vector<8x192xf32> to vector<8x64xf32>
    %122 = vector.extract_strided_slice %107 {offsets = [0, 128], sizes = [8, 64], strides = [1, 1]} : vector<8x192xf32> to vector<8x64xf32>
    %c0_49 = arith.constant 0 : index
    %c0_50 = arith.constant 0 : index
    %123 = vector.load %arg5[%c0_49, %c0_50] : memref<1x64xf32, #tpu.memory_space<vmem>>, vector<1x64xf32>
    %124 = vector.broadcast %123 : vector<1x64xf32> to vector<8x64xf32>
    %125 = arith.addf %122, %124 : vector<8x64xf32>
    %126 = arith.mulf %119, %125 : vector<8x64xf32>
    %127 = arith.addf %121, %126 : vector<8x64xf32>
    %128 = math.tanh %127 : vector<8x64xf32>
    %cst_51 = arith.constant 1.000000e+00 : f32
    %129 = vector.broadcast %cst_51 : f32 to vector<8x64xf32>
    %130 = arith.subf %129, %120 : vector<8x64xf32>
    %131 = arith.mulf %130, %128 : vector<8x64xf32>
    %132 = arith.mulf %120, %101 : vector<8x64xf32>
    %133 = arith.addf %131, %132 : vector<8x64xf32>
    %134 = arith.index_cast %c3_i32 : i32 to index
    %c0_52 = arith.constant 0 : index
    %c0_53 = arith.constant 0 : index
    %135 = vector.load %arg12[%134, %c0_52, %c0_53] : memref<8x8x64xf32, #tpu.memory_space<vmem>>, vector<1x8x64xf32>
    %136 = vector.shape_cast %135 : vector<1x8x64xf32> to vector<8x64xf32>
    %137 = vector.shape_cast %133 : vector<8x64xf32> to vector<1x8x64xf32>
    tpu.vector_store %arg12[%134, %c0_52, %c0_53], %137 {strides = array<i32>} : memref<8x8x64xf32, #tpu.memory_space<vmem>>, vector<1x8x64xf32>,
    %c4_i32 = arith.constant 4 : i32
    %c0_54 = arith.constant 0 : index
    %c0_55 = arith.constant 0 : index
    %138 = vector.load %arg3[%c0_54, %c0_55] : memref<64x192xf32, #tpu.memory_space<vmem>>, vector<64x192xf32>
    %cst_56 = arith.constant dense<0.000000e+00> : vector<8x192xf32>
    %139 = tpu.matmul %133, %138, %cst_56 {dimension_numbers = #tpu.dot_dimension_numbers<[1], [0], [0], [1], [0, 0, 1, 1], [], []>} : vector<8x64xf32>, vector<64x192xf32>, vector<8x192xf32> -> vector<8x192xf32>
    %140 = arith.index_cast %c4_i32 : i32 to index
    %c0_57 = arith.constant 0 : index
    %c0_58 = arith.constant 0 : index
    %141 = vector.load %arg13[%140, %c0_57, %c0_58] : memref<8x8x192xf32, #tpu.memory_space<vmem>>, vector<1x8x192xf32>
    %142 = vector.shape_cast %141 : vector<1x8x192xf32> to vector<8x192xf32>
    %143 = vector.extract_strided_slice %142 {offsets = [0, 0], sizes = [8, 128], strides = [1, 1]} : vector<8x192xf32> to vector<8x128xf32>
    %144 = vector.extract_strided_slice %139 {offsets = [0, 0], sizes = [8, 128], strides = [1, 1]} : vector<8x192xf32> to vector<8x128xf32>
    %145 = arith.addf %143, %144 : vector<8x128xf32>
    %146 = arith.negf %145 : vector<8x128xf32>
    %147 = math.exp %146 : vector<8x128xf32>
    %cst_59 = arith.constant 1.000000e+00 : f32
    %148 = vector.broadcast %cst_59 : f32 to vector<8x128xf32>
    %149 = arith.addf %148, %147 : vector<8x128xf32>
    %150 = arith.divf %148, %149 : vector<8x128xf32>
    %151 = vector.extract_strided_slice %150 {offsets = [0, 0], sizes = [8, 64], strides = [1, 1]} : vector<8x128xf32> to vector<8x64xf32>
    %152 = vector.extract_strided_slice %150 {offsets = [0, 64], sizes = [8, 64], strides = [1, 1]} : vector<8x128xf32> to vector<8x64xf32>
    %153 = vector.extract_strided_slice %142 {offsets = [0, 128], sizes = [8, 64], strides = [1, 1]} : vector<8x192xf32> to vector<8x64xf32>
    %154 = vector.extract_strided_slice %139 {offsets = [0, 128], sizes = [8, 64], strides = [1, 1]} : vector<8x192xf32> to vector<8x64xf32>
    %c0_60 = arith.constant 0 : index
    %c0_61 = arith.constant 0 : index
    %155 = vector.load %arg5[%c0_60, %c0_61] : memref<1x64xf32, #tpu.memory_space<vmem>>, vector<1x64xf32>
    %156 = vector.broadcast %155 : vector<1x64xf32> to vector<8x64xf32>
    %157 = arith.addf %154, %156 : vector<8x64xf32>
    %158 = arith.mulf %151, %157 : vector<8x64xf32>
    %159 = arith.addf %153, %158 : vector<8x64xf32>
    %160 = math.tanh %159 : vector<8x64xf32>
    %cst_62 = arith.constant 1.000000e+00 : f32
    %161 = vector.broadcast %cst_62 : f32 to vector<8x64xf32>
    %162 = arith.subf %161, %152 : vector<8x64xf32>
    %163 = arith.mulf %162, %160 : vector<8x64xf32>
    %164 = arith.mulf %152, %133 : vector<8x64xf32>
    %165 = arith.addf %163, %164 : vector<8x64xf32>
    %166 = arith.index_cast %c4_i32 : i32 to index
    %c0_63 = arith.constant 0 : index
    %c0_64 = arith.constant 0 : index
    %167 = vector.load %arg12[%166, %c0_63, %c0_64] : memref<8x8x64xf32, #tpu.memory_space<vmem>>, vector<1x8x64xf32>
    %168 = vector.shape_cast %167 : vector<1x8x64xf32> to vector<8x64xf32>
    %169 = vector.shape_cast %165 : vector<8x64xf32> to vector<1x8x64xf32>
    tpu.vector_store %arg12[%166, %c0_63, %c0_64], %169 {strides = array<i32>} : memref<8x8x64xf32, #tpu.memory_space<vmem>>, vector<1x8x64xf32>,
    %c5_i32 = arith.constant 5 : i32
    %c0_65 = arith.constant 0 : index
    %c0_66 = arith.constant 0 : index
    %170 = vector.load %arg3[%c0_65, %c0_66] : memref<64x192xf32, #tpu.memory_space<vmem>>, vector<64x192xf32>
    %cst_67 = arith.constant dense<0.000000e+00> : vector<8x192xf32>
    %171 = tpu.matmul %165, %170, %cst_67 {dimension_numbers = #tpu.dot_dimension_numbers<[1], [0], [0], [1], [0, 0, 1, 1], [], []>} : vector<8x64xf32>, vector<64x192xf32>, vector<8x192xf32> -> vector<8x192xf32>
    %172 = arith.index_cast %c5_i32 : i32 to index
    %c0_68 = arith.constant 0 : index
    %c0_69 = arith.constant 0 : index
    %173 = vector.load %arg13[%172, %c0_68, %c0_69] : memref<8x8x192xf32, #tpu.memory_space<vmem>>, vector<1x8x192xf32>
    %174 = vector.shape_cast %173 : vector<1x8x192xf32> to vector<8x192xf32>
    %175 = vector.extract_strided_slice %174 {offsets = [0, 0], sizes = [8, 128], strides = [1, 1]} : vector<8x192xf32> to vector<8x128xf32>
    %176 = vector.extract_strided_slice %171 {offsets = [0, 0], sizes = [8, 128], strides = [1, 1]} : vector<8x192xf32> to vector<8x128xf32>
    %177 = arith.addf %175, %176 : vector<8x128xf32>
    %178 = arith.negf %177 : vector<8x128xf32>
    %179 = math.exp %178 : vector<8x128xf32>
    %cst_70 = arith.constant 1.000000e+00 : f32
    %180 = vector.broadcast %cst_70 : f32 to vector<8x128xf32>
    %181 = arith.addf %180, %179 : vector<8x128xf32>
    %182 = arith.divf %180, %181 : vector<8x128xf32>
    %183 = vector.extract_strided_slice %182 {offsets = [0, 0], sizes = [8, 64], strides = [1, 1]} : vector<8x128xf32> to vector<8x64xf32>
    %184 = vector.extract_strided_slice %182 {offsets = [0, 64], sizes = [8, 64], strides = [1, 1]} : vector<8x128xf32> to vector<8x64xf32>
    %185 = vector.extract_strided_slice %174 {offsets = [0, 128], sizes = [8, 64], strides = [1, 1]} : vector<8x192xf32> to vector<8x64xf32>
    %186 = vector.extract_strided_slice %171 {offsets = [0, 128], sizes = [8, 64], strides = [1, 1]} : vector<8x192xf32> to vector<8x64xf32>
    %c0_71 = arith.constant 0 : index
    %c0_72 = arith.constant 0 : index
    %187 = vector.load %arg5[%c0_71, %c0_72] : memref<1x64xf32, #tpu.memory_space<vmem>>, vector<1x64xf32>
    %188 = vector.broadcast %187 : vector<1x64xf32> to vector<8x64xf32>
    %189 = arith.addf %186, %188 : vector<8x64xf32>
    %190 = arith.mulf %183, %189 : vector<8x64xf32>
    %191 = arith.addf %185, %190 : vector<8x64xf32>
    %192 = math.tanh %191 : vector<8x64xf32>
    %cst_73 = arith.constant 1.000000e+00 : f32
    %193 = vector.broadcast %cst_73 : f32 to vector<8x64xf32>
    %194 = arith.subf %193, %184 : vector<8x64xf32>
    %195 = arith.mulf %194, %192 : vector<8x64xf32>
    %196 = arith.mulf %184, %165 : vector<8x64xf32>
    %197 = arith.addf %195, %196 : vector<8x64xf32>
    %198 = arith.index_cast %c5_i32 : i32 to index
    %c0_74 = arith.constant 0 : index
    %c0_75 = arith.constant 0 : index
    %199 = vector.load %arg12[%198, %c0_74, %c0_75] : memref<8x8x64xf32, #tpu.memory_space<vmem>>, vector<1x8x64xf32>
    %200 = vector.shape_cast %199 : vector<1x8x64xf32> to vector<8x64xf32>
    %201 = vector.shape_cast %197 : vector<8x64xf32> to vector<1x8x64xf32>
    tpu.vector_store %arg12[%198, %c0_74, %c0_75], %201 {strides = array<i32>} : memref<8x8x64xf32, #tpu.memory_space<vmem>>, vector<1x8x64xf32>,
    %c6_i32 = arith.constant 6 : i32
    %c0_76 = arith.constant 0 : index
    %c0_77 = arith.constant 0 : index
    %202 = vector.load %arg3[%c0_76, %c0_77] : memref<64x192xf32, #tpu.memory_space<vmem>>, vector<64x192xf32>
    %cst_78 = arith.constant dense<0.000000e+00> : vector<8x192xf32>
    %203 = tpu.matmul %197, %202, %cst_78 {dimension_numbers = #tpu.dot_dimension_numbers<[1], [0], [0], [1], [0, 0, 1, 1], [], []>} : vector<8x64xf32>, vector<64x192xf32>, vector<8x192xf32> -> vector<8x192xf32>
    %204 = arith.index_cast %c6_i32 : i32 to index
    %c0_79 = arith.constant 0 : index
    %c0_80 = arith.constant 0 : index
    %205 = vector.load %arg13[%204, %c0_79, %c0_80] : memref<8x8x192xf32, #tpu.memory_space<vmem>>, vector<1x8x192xf32>
    %206 = vector.shape_cast %205 : vector<1x8x192xf32> to vector<8x192xf32>
    %207 = vector.extract_strided_slice %206 {offsets = [0, 0], sizes = [8, 128], strides = [1, 1]} : vector<8x192xf32> to vector<8x128xf32>
    %208 = vector.extract_strided_slice %203 {offsets = [0, 0], sizes = [8, 128], strides = [1, 1]} : vector<8x192xf32> to vector<8x128xf32>
    %209 = arith.addf %207, %208 : vector<8x128xf32>
    %210 = arith.negf %209 : vector<8x128xf32>
    %211 = math.exp %210 : vector<8x128xf32>
    %cst_81 = arith.constant 1.000000e+00 : f32
    %212 = vector.broadcast %cst_81 : f32 to vector<8x128xf32>
    %213 = arith.addf %212, %211 : vector<8x128xf32>
    %214 = arith.divf %212, %213 : vector<8x128xf32>
    %215 = vector.extract_strided_slice %214 {offsets = [0, 0], sizes = [8, 64], strides = [1, 1]} : vector<8x128xf32> to vector<8x64xf32>
    %216 = vector.extract_strided_slice %214 {offsets = [0, 64], sizes = [8, 64], strides = [1, 1]} : vector<8x128xf32> to vector<8x64xf32>
    %217 = vector.extract_strided_slice %206 {offsets = [0, 128], sizes = [8, 64], strides = [1, 1]} : vector<8x192xf32> to vector<8x64xf32>
    %218 = vector.extract_strided_slice %203 {offsets = [0, 128], sizes = [8, 64], strides = [1, 1]} : vector<8x192xf32> to vector<8x64xf32>
    %c0_82 = arith.constant 0 : index
    %c0_83 = arith.constant 0 : index
    %219 = vector.load %arg5[%c0_82, %c0_83] : memref<1x64xf32, #tpu.memory_space<vmem>>, vector<1x64xf32>
    %220 = vector.broadcast %219 : vector<1x64xf32> to vector<8x64xf32>
    %221 = arith.addf %218, %220 : vector<8x64xf32>
    %222 = arith.mulf %215, %221 : vector<8x64xf32>
    %223 = arith.addf %217, %222 : vector<8x64xf32>
    %224 = math.tanh %223 : vector<8x64xf32>
    %cst_84 = arith.constant 1.000000e+00 : f32
    %225 = vector.broadcast %cst_84 : f32 to vector<8x64xf32>
    %226 = arith.subf %225, %216 : vector<8x64xf32>
    %227 = arith.mulf %226, %224 : vector<8x64xf32>
    %228 = arith.mulf %216, %197 : vector<8x64xf32>
    %229 = arith.addf %227, %228 : vector<8x64xf32>
    %230 = arith.index_cast %c6_i32 : i32 to index
    %c0_85 = arith.constant 0 : index
    %c0_86 = arith.constant 0 : index
    %231 = vector.load %arg12[%230, %c0_85, %c0_86] : memref<8x8x64xf32, #tpu.memory_space<vmem>>, vector<1x8x64xf32>
    %232 = vector.shape_cast %231 : vector<1x8x64xf32> to vector<8x64xf32>
    %233 = vector.shape_cast %229 : vector<8x64xf32> to vector<1x8x64xf32>
    tpu.vector_store %arg12[%230, %c0_85, %c0_86], %233 {strides = array<i32>} : memref<8x8x64xf32, #tpu.memory_space<vmem>>, vector<1x8x64xf32>,
    %c7_i32 = arith.constant 7 : i32
    %c0_87 = arith.constant 0 : index
    %c0_88 = arith.constant 0 : index
    %234 = vector.load %arg3[%c0_87, %c0_88] : memref<64x192xf32, #tpu.memory_space<vmem>>, vector<64x192xf32>
    %cst_89 = arith.constant dense<0.000000e+00> : vector<8x192xf32>
    %235 = tpu.matmul %229, %234, %cst_89 {dimension_numbers = #tpu.dot_dimension_numbers<[1], [0], [0], [1], [0, 0, 1, 1], [], []>} : vector<8x64xf32>, vector<64x192xf32>, vector<8x192xf32> -> vector<8x192xf32>
    %236 = arith.index_cast %c7_i32 : i32 to index
    %c0_90 = arith.constant 0 : index
    %c0_91 = arith.constant 0 : index
    %237 = vector.load %arg13[%236, %c0_90, %c0_91] : memref<8x8x192xf32, #tpu.memory_space<vmem>>, vector<1x8x192xf32>
    %238 = vector.shape_cast %237 : vector<1x8x192xf32> to vector<8x192xf32>
    %239 = vector.extract_strided_slice %238 {offsets = [0, 0], sizes = [8, 128], strides = [1, 1]} : vector<8x192xf32> to vector<8x128xf32>
    %240 = vector.extract_strided_slice %235 {offsets = [0, 0], sizes = [8, 128], strides = [1, 1]} : vector<8x192xf32> to vector<8x128xf32>
    %241 = arith.addf %239, %240 : vector<8x128xf32>
    %242 = arith.negf %241 : vector<8x128xf32>
    %243 = math.exp %242 : vector<8x128xf32>
    %cst_92 = arith.constant 1.000000e+00 : f32
    %244 = vector.broadcast %cst_92 : f32 to vector<8x128xf32>
    %245 = arith.addf %244, %243 : vector<8x128xf32>
    %246 = arith.divf %244, %245 : vector<8x128xf32>
    %247 = vector.extract_strided_slice %246 {offsets = [0, 0], sizes = [8, 64], strides = [1, 1]} : vector<8x128xf32> to vector<8x64xf32>
    %248 = vector.extract_strided_slice %246 {offsets = [0, 64], sizes = [8, 64], strides = [1, 1]} : vector<8x128xf32> to vector<8x64xf32>
    %249 = vector.extract_strided_slice %238 {offsets = [0, 128], sizes = [8, 64], strides = [1, 1]} : vector<8x192xf32> to vector<8x64xf32>
    %250 = vector.extract_strided_slice %235 {offsets = [0, 128], sizes = [8, 64], strides = [1, 1]} : vector<8x192xf32> to vector<8x64xf32>
    %c0_93 = arith.constant 0 : index
    %c0_94 = arith.constant 0 : index
    %251 = vector.load %arg5[%c0_93, %c0_94] : memref<1x64xf32, #tpu.memory_space<vmem>>, vector<1x64xf32>
    %252 = vector.broadcast %251 : vector<1x64xf32> to vector<8x64xf32>
    %253 = arith.addf %250, %252 : vector<8x64xf32>
    %254 = arith.mulf %247, %253 : vector<8x64xf32>
    %255 = arith.addf %249, %254 : vector<8x64xf32>
    %256 = math.tanh %255 : vector<8x64xf32>
    %cst_95 = arith.constant 1.000000e+00 : f32
    %257 = vector.broadcast %cst_95 : f32 to vector<8x64xf32>
    %258 = arith.subf %257, %248 : vector<8x64xf32>
    %259 = arith.mulf %258, %256 : vector<8x64xf32>
    %260 = arith.mulf %248, %229 : vector<8x64xf32>
    %261 = arith.addf %259, %260 : vector<8x64xf32>
    %262 = arith.index_cast %c7_i32 : i32 to index
    %c0_96 = arith.constant 0 : index
    %c0_97 = arith.constant 0 : index
    %263 = vector.load %arg12[%262, %c0_96, %c0_97] : memref<8x8x64xf32, #tpu.memory_space<vmem>>, vector<1x8x64xf32>
    %264 = vector.shape_cast %263 : vector<1x8x64xf32> to vector<8x64xf32>
    %265 = vector.shape_cast %261 : vector<8x64xf32> to vector<1x8x64xf32>
    tpu.vector_store %arg12[%262, %c0_96, %c0_97], %265 {strides = array<i32>} : memref<8x8x64xf32, #tpu.memory_space<vmem>>, vector<1x8x64xf32>,
    %c8_i32 = arith.constant 8 : i32
    %c0_98 = arith.constant 0 : index
    %c0_99 = arith.constant 0 : index
    %c0_100 = arith.constant 0 : index
    %266 = vector.load %arg11[%c0_98, %c0_99, %c0_100] : memref<2x8x64xf32, #tpu.memory_space<vmem>>, vector<1x8x64xf32>
    %267 = vector.shape_cast %266 : vector<1x8x64xf32> to vector<8x64xf32>
    %268 = vector.shape_cast %261 : vector<8x64xf32> to vector<1x8x64xf32>
    tpu.vector_store %arg11[%c0_98, %c0_99, %c0_100], %268 {strides = array<i32>} : memref<2x8x64xf32, #tpu.memory_space<vmem>>, vector<1x8x64xf32>,
    %c0_101 = arith.constant 0 : index
    %c0_102 = arith.constant 0 : index
    %c0_103 = arith.constant 0 : index
    %269 = vector.load %arg12[%c0_101, %c0_102, %c0_103] : memref<8x8x64xf32, #tpu.memory_space<vmem>>, vector<8x8x64xf32>
    %270 = vector.shape_cast %269 : vector<8x8x64xf32> to vector<64x64xf32>
    %c0_104 = arith.constant 0 : index
    %c0_105 = arith.constant 0 : index
    %271 = vector.load %arg6[%c0_104, %c0_105] : memref<64x192xf32, #tpu.memory_space<vmem>>, vector<64x192xf32>
    %cst_106 = arith.constant dense<0.000000e+00> : vector<64x192xf32>
    %272 = tpu.matmul %270, %271, %cst_106 {dimension_numbers = #tpu.dot_dimension_numbers<[1], [0], [0], [1], [0, 0, 1, 1], [], []>} : vector<64x64xf32>, vector<64x192xf32>, vector<64x192xf32> -> vector<64x192xf32>
    %c0_107 = arith.constant 0 : index
    %c0_108 = arith.constant 0 : index
    %273 = vector.load %arg8[%c0_107, %c0_108] : memref<1x192xf32, #tpu.memory_space<vmem>>, vector<1x192xf32>
    %274 = vector.broadcast %273 : vector<1x192xf32> to vector<64x192xf32>
    %275 = arith.addf %272, %274 : vector<64x192xf32>
    %276 = vector.shape_cast %275 : vector<64x192xf32> to vector<8x8x192xf32>
    %c0_109 = arith.constant 0 : index
    %c0_110 = arith.constant 0 : index
    %c0_111 = arith.constant 0 : index
    %277 = vector.load %arg13[%c0_109, %c0_110, %c0_111] : memref<8x8x192xf32, #tpu.memory_space<vmem>>, vector<8x8x192xf32>
    tpu.vector_store %arg13[%c0_109, %c0_110, %c0_111], %276 {strides = array<i32>} : memref<8x8x192xf32, #tpu.memory_space<vmem>>, vector<8x8x192xf32>,
    %cst_112 = arith.constant 0.000000e+00 : f32
    %278 = vector.broadcast %cst_112 : f32 to vector<8x64xf32>
    %c0_i32_113 = arith.constant 0 : i32
    %c0_114 = arith.constant 0 : index
    %c0_115 = arith.constant 0 : index
    %279 = vector.load %arg7[%c0_114, %c0_115] : memref<64x192xf32, #tpu.memory_space<vmem>>, vector<64x192xf32>
    %cst_116 = arith.constant dense<0.000000e+00> : vector<8x192xf32>
    %280 = tpu.matmul %278, %279, %cst_116 {dimension_numbers = #tpu.dot_dimension_numbers<[1], [0], [0], [1], [0, 0, 1, 1], [], []>} : vector<8x64xf32>, vector<64x192xf32>, vector<8x192xf32> -> vector<8x192xf32>
    %281 = arith.index_cast %c0_i32_113 : i32 to index
    %c0_117 = arith.constant 0 : index
    %c0_118 = arith.constant 0 : index
    %282 = vector.load %arg13[%281, %c0_117, %c0_118] : memref<8x8x192xf32, #tpu.memory_space<vmem>>, vector<1x8x192xf32>
    %283 = vector.shape_cast %282 : vector<1x8x192xf32> to vector<8x192xf32>
    %284 = vector.extract_strided_slice %283 {offsets = [0, 0], sizes = [8, 128], strides = [1, 1]} : vector<8x192xf32> to vector<8x128xf32>
    %285 = vector.extract_strided_slice %280 {offsets = [0, 0], sizes = [8, 128], strides = [1, 1]} : vector<8x192xf32> to vector<8x128xf32>
    %286 = arith.addf %284, %285 : vector<8x128xf32>
    %287 = arith.negf %286 : vector<8x128xf32>
    %288 = math.exp %287 : vector<8x128xf32>
    %cst_119 = arith.constant 1.000000e+00 : f32
    %289 = vector.broadcast %cst_119 : f32 to vector<8x128xf32>
    %290 = arith.addf %289, %288 : vector<8x128xf32>
    %291 = arith.divf %289, %290 : vector<8x128xf32>
    %292 = vector.extract_strided_slice %291 {offsets = [0, 0], sizes = [8, 64], strides = [1, 1]} : vector<8x128xf32> to vector<8x64xf32>
    %293 = vector.extract_strided_slice %291 {offsets = [0, 64], sizes = [8, 64], strides = [1, 1]} : vector<8x128xf32> to vector<8x64xf32>
    %294 = vector.extract_strided_slice %283 {offsets = [0, 128], sizes = [8, 64], strides = [1, 1]} : vector<8x192xf32> to vector<8x64xf32>
    %295 = vector.extract_strided_slice %280 {offsets = [0, 128], sizes = [8, 64], strides = [1, 1]} : vector<8x192xf32> to vector<8x64xf32>
    %c0_120 = arith.constant 0 : index
    %c0_121 = arith.constant 0 : index
    %296 = vector.load %arg9[%c0_120, %c0_121] : memref<1x64xf32, #tpu.memory_space<vmem>>, vector<1x64xf32>
    %297 = vector.broadcast %296 : vector<1x64xf32> to vector<8x64xf32>
    %298 = arith.addf %295, %297 : vector<8x64xf32>
    %299 = arith.mulf %292, %298 : vector<8x64xf32>
    %300 = arith.addf %294, %299 : vector<8x64xf32>
    %301 = math.tanh %300 : vector<8x64xf32>
    %cst_122 = arith.constant 1.000000e+00 : f32
    %302 = vector.broadcast %cst_122 : f32 to vector<8x64xf32>
    %303 = arith.subf %302, %293 : vector<8x64xf32>
    %304 = arith.mulf %303, %301 : vector<8x64xf32>
    %305 = arith.mulf %293, %278 : vector<8x64xf32>
    %306 = arith.addf %304, %305 : vector<8x64xf32>
    %307 = vector.extract_strided_slice %306 {offsets = [0, 0], sizes = [8, 32], strides = [1, 1]} : vector<8x64xf32> to vector<8x32xf32>
    %308 = arith.index_cast %c0_i32_113 : i32 to index
    %c0_123 = arith.constant 0 : index
    %c0_124 = arith.constant 0 : index
    %309 = vector.load %arg10[%308, %c0_123, %c0_124] : memref<8x8x64xf32, #tpu.memory_space<vmem>>, vector<1x8x32xf32>
    %310 = vector.shape_cast %309 : vector<1x8x32xf32> to vector<8x32xf32>
    %311 = vector.shape_cast %307 : vector<8x32xf32> to vector<1x8x32xf32>
    tpu.vector_store %arg10[%308, %c0_123, %c0_124], %311 {strides = array<i32>} : memref<8x8x64xf32, #tpu.memory_space<vmem>>, vector<1x8x32xf32>,
    %312 = vector.extract_strided_slice %306 {offsets = [0, 32], sizes = [8, 32], strides = [1, 1]} : vector<8x64xf32> to vector<8x32xf32>
    %c7_i32_125 = arith.constant 7 : i32
    %313 = arith.subi %c7_i32_125, %c0_i32_113 : i32
    %314 = arith.index_cast %313 : i32 to index
    %c0_126 = arith.constant 0 : index
    %c32 = arith.constant 32 : index
    %315 = vector.load %arg10[%314, %c0_126, %c32] : memref<8x8x64xf32, #tpu.memory_space<vmem>>, vector<1x8x32xf32>
    %316 = vector.shape_cast %315 : vector<1x8x32xf32> to vector<8x32xf32>
    %317 = vector.shape_cast %312 : vector<8x32xf32> to vector<1x8x32xf32>
    tpu.vector_store %arg10[%314, %c0_126, %c32], %317 {strides = array<i32>} : memref<8x8x64xf32, #tpu.memory_space<vmem>>, vector<1x8x32xf32>,
    %c1_i32_127 = arith.constant 1 : i32
    %c0_128 = arith.constant 0 : index
    %c0_129 = arith.constant 0 : index
    %318 = vector.load %arg7[%c0_128, %c0_129] : memref<64x192xf32, #tpu.memory_space<vmem>>, vector<64x192xf32>
    %cst_130 = arith.constant dense<0.000000e+00> : vector<8x192xf32>
    %319 = tpu.matmul %306, %318, %cst_130 {dimension_numbers = #tpu.dot_dimension_numbers<[1], [0], [0], [1], [0, 0, 1, 1], [], []>} : vector<8x64xf32>, vector<64x192xf32>, vector<8x192xf32> -> vector<8x192xf32>
    %320 = arith.index_cast %c1_i32_127 : i32 to index
    %c0_131 = arith.constant 0 : index
    %c0_132 = arith.constant 0 : index
    %321 = vector.load %arg13[%320, %c0_131, %c0_132] : memref<8x8x192xf32, #tpu.memory_space<vmem>>, vector<1x8x192xf32>
    %322 = vector.shape_cast %321 : vector<1x8x192xf32> to vector<8x192xf32>
    %323 = vector.extract_strided_slice %322 {offsets = [0, 0], sizes = [8, 128], strides = [1, 1]} : vector<8x192xf32> to vector<8x128xf32>
    %324 = vector.extract_strided_slice %319 {offsets = [0, 0], sizes = [8, 128], strides = [1, 1]} : vector<8x192xf32> to vector<8x128xf32>
    %325 = arith.addf %323, %324 : vector<8x128xf32>
    %326 = arith.negf %325 : vector<8x128xf32>
    %327 = math.exp %326 : vector<8x128xf32>
    %cst_133 = arith.constant 1.000000e+00 : f32
    %328 = vector.broadcast %cst_133 : f32 to vector<8x128xf32>
    %329 = arith.addf %328, %327 : vector<8x128xf32>
    %330 = arith.divf %328, %329 : vector<8x128xf32>
    %331 = vector.extract_strided_slice %330 {offsets = [0, 0], sizes = [8, 64], strides = [1, 1]} : vector<8x128xf32> to vector<8x64xf32>
    %332 = vector.extract_strided_slice %330 {offsets = [0, 64], sizes = [8, 64], strides = [1, 1]} : vector<8x128xf32> to vector<8x64xf32>
    %333 = vector.extract_strided_slice %322 {offsets = [0, 128], sizes = [8, 64], strides = [1, 1]} : vector<8x192xf32> to vector<8x64xf32>
    %334 = vector.extract_strided_slice %319 {offsets = [0, 128], sizes = [8, 64], strides = [1, 1]} : vector<8x192xf32> to vector<8x64xf32>
    %c0_134 = arith.constant 0 : index
    %c0_135 = arith.constant 0 : index
    %335 = vector.load %arg9[%c0_134, %c0_135] : memref<1x64xf32, #tpu.memory_space<vmem>>, vector<1x64xf32>
    %336 = vector.broadcast %335 : vector<1x64xf32> to vector<8x64xf32>
    %337 = arith.addf %334, %336 : vector<8x64xf32>
    %338 = arith.mulf %331, %337 : vector<8x64xf32>
    %339 = arith.addf %333, %338 : vector<8x64xf32>
    %340 = math.tanh %339 : vector<8x64xf32>
    %cst_136 = arith.constant 1.000000e+00 : f32
    %341 = vector.broadcast %cst_136 : f32 to vector<8x64xf32>
    %342 = arith.subf %341, %332 : vector<8x64xf32>
    %343 = arith.mulf %342, %340 : vector<8x64xf32>
    %344 = arith.mulf %332, %306 : vector<8x64xf32>
    %345 = arith.addf %343, %344 : vector<8x64xf32>
    %346 = vector.extract_strided_slice %345 {offsets = [0, 0], sizes = [8, 32], strides = [1, 1]} : vector<8x64xf32> to vector<8x32xf32>
    %347 = arith.index_cast %c1_i32_127 : i32 to index
    %c0_137 = arith.constant 0 : index
    %c0_138 = arith.constant 0 : index
    %348 = vector.load %arg10[%347, %c0_137, %c0_138] : memref<8x8x64xf32, #tpu.memory_space<vmem>>, vector<1x8x32xf32>
    %349 = vector.shape_cast %348 : vector<1x8x32xf32> to vector<8x32xf32>
    %350 = vector.shape_cast %346 : vector<8x32xf32> to vector<1x8x32xf32>
    tpu.vector_store %arg10[%347, %c0_137, %c0_138], %350 {strides = array<i32>} : memref<8x8x64xf32, #tpu.memory_space<vmem>>, vector<1x8x32xf32>,
    %351 = vector.extract_strided_slice %345 {offsets = [0, 32], sizes = [8, 32], strides = [1, 1]} : vector<8x64xf32> to vector<8x32xf32>
    %c7_i32_139 = arith.constant 7 : i32
    %352 = arith.subi %c7_i32_139, %c1_i32_127 : i32
    %353 = arith.index_cast %352 : i32 to index
    %c0_140 = arith.constant 0 : index
    %c32_141 = arith.constant 32 : index
    %354 = vector.load %arg10[%353, %c0_140, %c32_141] : memref<8x8x64xf32, #tpu.memory_space<vmem>>, vector<1x8x32xf32>
    %355 = vector.shape_cast %354 : vector<1x8x32xf32> to vector<8x32xf32>
    %356 = vector.shape_cast %351 : vector<8x32xf32> to vector<1x8x32xf32>
    tpu.vector_store %arg10[%353, %c0_140, %c32_141], %356 {strides = array<i32>} : memref<8x8x64xf32, #tpu.memory_space<vmem>>, vector<1x8x32xf32>,
    %c2_i32_142 = arith.constant 2 : i32
    %c0_143 = arith.constant 0 : index
    %c0_144 = arith.constant 0 : index
    %357 = vector.load %arg7[%c0_143, %c0_144] : memref<64x192xf32, #tpu.memory_space<vmem>>, vector<64x192xf32>
    %cst_145 = arith.constant dense<0.000000e+00> : vector<8x192xf32>
    %358 = tpu.matmul %345, %357, %cst_145 {dimension_numbers = #tpu.dot_dimension_numbers<[1], [0], [0], [1], [0, 0, 1, 1], [], []>} : vector<8x64xf32>, vector<64x192xf32>, vector<8x192xf32> -> vector<8x192xf32>
    %359 = arith.index_cast %c2_i32_142 : i32 to index
    %c0_146 = arith.constant 0 : index
    %c0_147 = arith.constant 0 : index
    %360 = vector.load %arg13[%359, %c0_146, %c0_147] : memref<8x8x192xf32, #tpu.memory_space<vmem>>, vector<1x8x192xf32>
    %361 = vector.shape_cast %360 : vector<1x8x192xf32> to vector<8x192xf32>
    %362 = vector.extract_strided_slice %361 {offsets = [0, 0], sizes = [8, 128], strides = [1, 1]} : vector<8x192xf32> to vector<8x128xf32>
    %363 = vector.extract_strided_slice %358 {offsets = [0, 0], sizes = [8, 128], strides = [1, 1]} : vector<8x192xf32> to vector<8x128xf32>
    %364 = arith.addf %362, %363 : vector<8x128xf32>
    %365 = arith.negf %364 : vector<8x128xf32>
    %366 = math.exp %365 : vector<8x128xf32>
    %cst_148 = arith.constant 1.000000e+00 : f32
    %367 = vector.broadcast %cst_148 : f32 to vector<8x128xf32>
    %368 = arith.addf %367, %366 : vector<8x128xf32>
    %369 = arith.divf %367, %368 : vector<8x128xf32>
    %370 = vector.extract_strided_slice %369 {offsets = [0, 0], sizes = [8, 64], strides = [1, 1]} : vector<8x128xf32> to vector<8x64xf32>
    %371 = vector.extract_strided_slice %369 {offsets = [0, 64], sizes = [8, 64], strides = [1, 1]} : vector<8x128xf32> to vector<8x64xf32>
    %372 = vector.extract_strided_slice %361 {offsets = [0, 128], sizes = [8, 64], strides = [1, 1]} : vector<8x192xf32> to vector<8x64xf32>
    %373 = vector.extract_strided_slice %358 {offsets = [0, 128], sizes = [8, 64], strides = [1, 1]} : vector<8x192xf32> to vector<8x64xf32>
    %c0_149 = arith.constant 0 : index
    %c0_150 = arith.constant 0 : index
    %374 = vector.load %arg9[%c0_149, %c0_150] : memref<1x64xf32, #tpu.memory_space<vmem>>, vector<1x64xf32>
    %375 = vector.broadcast %374 : vector<1x64xf32> to vector<8x64xf32>
    %376 = arith.addf %373, %375 : vector<8x64xf32>
    %377 = arith.mulf %370, %376 : vector<8x64xf32>
    %378 = arith.addf %372, %377 : vector<8x64xf32>
    %379 = math.tanh %378 : vector<8x64xf32>
    %cst_151 = arith.constant 1.000000e+00 : f32
    %380 = vector.broadcast %cst_151 : f32 to vector<8x64xf32>
    %381 = arith.subf %380, %371 : vector<8x64xf32>
    %382 = arith.mulf %381, %379 : vector<8x64xf32>
    %383 = arith.mulf %371, %345 : vector<8x64xf32>
    %384 = arith.addf %382, %383 : vector<8x64xf32>
    %385 = vector.extract_strided_slice %384 {offsets = [0, 0], sizes = [8, 32], strides = [1, 1]} : vector<8x64xf32> to vector<8x32xf32>
    %386 = arith.index_cast %c2_i32_142 : i32 to index
    %c0_152 = arith.constant 0 : index
    %c0_153 = arith.constant 0 : index
    %387 = vector.load %arg10[%386, %c0_152, %c0_153] : memref<8x8x64xf32, #tpu.memory_space<vmem>>, vector<1x8x32xf32>
    %388 = vector.shape_cast %387 : vector<1x8x32xf32> to vector<8x32xf32>
    %389 = vector.shape_cast %385 : vector<8x32xf32> to vector<1x8x32xf32>
    tpu.vector_store %arg10[%386, %c0_152, %c0_153], %389 {strides = array<i32>} : memref<8x8x64xf32, #tpu.memory_space<vmem>>, vector<1x8x32xf32>,
    %390 = vector.extract_strided_slice %384 {offsets = [0, 32], sizes = [8, 32], strides = [1, 1]} : vector<8x64xf32> to vector<8x32xf32>
    %c7_i32_154 = arith.constant 7 : i32
    %391 = arith.subi %c7_i32_154, %c2_i32_142 : i32
    %392 = arith.index_cast %391 : i32 to index
    %c0_155 = arith.constant 0 : index
    %c32_156 = arith.constant 32 : index
    %393 = vector.load %arg10[%392, %c0_155, %c32_156] : memref<8x8x64xf32, #tpu.memory_space<vmem>>, vector<1x8x32xf32>
    %394 = vector.shape_cast %393 : vector<1x8x32xf32> to vector<8x32xf32>
    %395 = vector.shape_cast %390 : vector<8x32xf32> to vector<1x8x32xf32>
    tpu.vector_store %arg10[%392, %c0_155, %c32_156], %395 {strides = array<i32>} : memref<8x8x64xf32, #tpu.memory_space<vmem>>, vector<1x8x32xf32>,
    %c3_i32_157 = arith.constant 3 : i32
    %c0_158 = arith.constant 0 : index
    %c0_159 = arith.constant 0 : index
    %396 = vector.load %arg7[%c0_158, %c0_159] : memref<64x192xf32, #tpu.memory_space<vmem>>, vector<64x192xf32>
    %cst_160 = arith.constant dense<0.000000e+00> : vector<8x192xf32>
    %397 = tpu.matmul %384, %396, %cst_160 {dimension_numbers = #tpu.dot_dimension_numbers<[1], [0], [0], [1], [0, 0, 1, 1], [], []>} : vector<8x64xf32>, vector<64x192xf32>, vector<8x192xf32> -> vector<8x192xf32>
    %398 = arith.index_cast %c3_i32_157 : i32 to index
    %c0_161 = arith.constant 0 : index
    %c0_162 = arith.constant 0 : index
    %399 = vector.load %arg13[%398, %c0_161, %c0_162] : memref<8x8x192xf32, #tpu.memory_space<vmem>>, vector<1x8x192xf32>
    %400 = vector.shape_cast %399 : vector<1x8x192xf32> to vector<8x192xf32>
    %401 = vector.extract_strided_slice %400 {offsets = [0, 0], sizes = [8, 128], strides = [1, 1]} : vector<8x192xf32> to vector<8x128xf32>
    %402 = vector.extract_strided_slice %397 {offsets = [0, 0], sizes = [8, 128], strides = [1, 1]} : vector<8x192xf32> to vector<8x128xf32>
    %403 = arith.addf %401, %402 : vector<8x128xf32>
    %404 = arith.negf %403 : vector<8x128xf32>
    %405 = math.exp %404 : vector<8x128xf32>
    %cst_163 = arith.constant 1.000000e+00 : f32
    %406 = vector.broadcast %cst_163 : f32 to vector<8x128xf32>
    %407 = arith.addf %406, %405 : vector<8x128xf32>
    %408 = arith.divf %406, %407 : vector<8x128xf32>
    %409 = vector.extract_strided_slice %408 {offsets = [0, 0], sizes = [8, 64], strides = [1, 1]} : vector<8x128xf32> to vector<8x64xf32>
    %410 = vector.extract_strided_slice %408 {offsets = [0, 64], sizes = [8, 64], strides = [1, 1]} : vector<8x128xf32> to vector<8x64xf32>
    %411 = vector.extract_strided_slice %400 {offsets = [0, 128], sizes = [8, 64], strides = [1, 1]} : vector<8x192xf32> to vector<8x64xf32>
    %412 = vector.extract_strided_slice %397 {offsets = [0, 128], sizes = [8, 64], strides = [1, 1]} : vector<8x192xf32> to vector<8x64xf32>
    %c0_164 = arith.constant 0 : index
    %c0_165 = arith.constant 0 : index
    %413 = vector.load %arg9[%c0_164, %c0_165] : memref<1x64xf32, #tpu.memory_space<vmem>>, vector<1x64xf32>
    %414 = vector.broadcast %413 : vector<1x64xf32> to vector<8x64xf32>
    %415 = arith.addf %412, %414 : vector<8x64xf32>
    %416 = arith.mulf %409, %415 : vector<8x64xf32>
    %417 = arith.addf %411, %416 : vector<8x64xf32>
    %418 = math.tanh %417 : vector<8x64xf32>
    %cst_166 = arith.constant 1.000000e+00 : f32
    %419 = vector.broadcast %cst_166 : f32 to vector<8x64xf32>
    %420 = arith.subf %419, %410 : vector<8x64xf32>
    %421 = arith.mulf %420, %418 : vector<8x64xf32>
    %422 = arith.mulf %410, %384 : vector<8x64xf32>
    %423 = arith.addf %421, %422 : vector<8x64xf32>
    %424 = vector.extract_strided_slice %423 {offsets = [0, 0], sizes = [8, 32], strides = [1, 1]} : vector<8x64xf32> to vector<8x32xf32>
    %425 = arith.index_cast %c3_i32_157 : i32 to index
    %c0_167 = arith.constant 0 : index
    %c0_168 = arith.constant 0 : index
    %426 = vector.load %arg10[%425, %c0_167, %c0_168] : memref<8x8x64xf32, #tpu.memory_space<vmem>>, vector<1x8x32xf32>
    %427 = vector.shape_cast %426 : vector<1x8x32xf32> to vector<8x32xf32>
    %428 = vector.shape_cast %424 : vector<8x32xf32> to vector<1x8x32xf32>
    tpu.vector_store %arg10[%425, %c0_167, %c0_168], %428 {strides = array<i32>} : memref<8x8x64xf32, #tpu.memory_space<vmem>>, vector<1x8x32xf32>,
    %429 = vector.extract_strided_slice %423 {offsets = [0, 32], sizes = [8, 32], strides = [1, 1]} : vector<8x64xf32> to vector<8x32xf32>
    %c7_i32_169 = arith.constant 7 : i32
    %430 = arith.subi %c7_i32_169, %c3_i32_157 : i32
    %431 = arith.index_cast %430 : i32 to index
    %c0_170 = arith.constant 0 : index
    %c32_171 = arith.constant 32 : index
    %432 = vector.load %arg10[%431, %c0_170, %c32_171] : memref<8x8x64xf32, #tpu.memory_space<vmem>>, vector<1x8x32xf32>
    %433 = vector.shape_cast %432 : vector<1x8x32xf32> to vector<8x32xf32>
    %434 = vector.shape_cast %429 : vector<8x32xf32> to vector<1x8x32xf32>
    tpu.vector_store %arg10[%431, %c0_170, %c32_171], %434 {strides = array<i32>} : memref<8x8x64xf32, #tpu.memory_space<vmem>>, vector<1x8x32xf32>,
    %c4_i32_172 = arith.constant 4 : i32
    %c0_173 = arith.constant 0 : index
    %c0_174 = arith.constant 0 : index
    %435 = vector.load %arg7[%c0_173, %c0_174] : memref<64x192xf32, #tpu.memory_space<vmem>>, vector<64x192xf32>
    %cst_175 = arith.constant dense<0.000000e+00> : vector<8x192xf32>
    %436 = tpu.matmul %423, %435, %cst_175 {dimension_numbers = #tpu.dot_dimension_numbers<[1], [0], [0], [1], [0, 0, 1, 1], [], []>} : vector<8x64xf32>, vector<64x192xf32>, vector<8x192xf32> -> vector<8x192xf32>
    %437 = arith.index_cast %c4_i32_172 : i32 to index
    %c0_176 = arith.constant 0 : index
    %c0_177 = arith.constant 0 : index
    %438 = vector.load %arg13[%437, %c0_176, %c0_177] : memref<8x8x192xf32, #tpu.memory_space<vmem>>, vector<1x8x192xf32>
    %439 = vector.shape_cast %438 : vector<1x8x192xf32> to vector<8x192xf32>
    %440 = vector.extract_strided_slice %439 {offsets = [0, 0], sizes = [8, 128], strides = [1, 1]} : vector<8x192xf32> to vector<8x128xf32>
    %441 = vector.extract_strided_slice %436 {offsets = [0, 0], sizes = [8, 128], strides = [1, 1]} : vector<8x192xf32> to vector<8x128xf32>
    %442 = arith.addf %440, %441 : vector<8x128xf32>
    %443 = arith.negf %442 : vector<8x128xf32>
    %444 = math.exp %443 : vector<8x128xf32>
    %cst_178 = arith.constant 1.000000e+00 : f32
    %445 = vector.broadcast %cst_178 : f32 to vector<8x128xf32>
    %446 = arith.addf %445, %444 : vector<8x128xf32>
    %447 = arith.divf %445, %446 : vector<8x128xf32>
    %448 = vector.extract_strided_slice %447 {offsets = [0, 0], sizes = [8, 64], strides = [1, 1]} : vector<8x128xf32> to vector<8x64xf32>
    %449 = vector.extract_strided_slice %447 {offsets = [0, 64], sizes = [8, 64], strides = [1, 1]} : vector<8x128xf32> to vector<8x64xf32>
    %450 = vector.extract_strided_slice %439 {offsets = [0, 128], sizes = [8, 64], strides = [1, 1]} : vector<8x192xf32> to vector<8x64xf32>
    %451 = vector.extract_strided_slice %436 {offsets = [0, 128], sizes = [8, 64], strides = [1, 1]} : vector<8x192xf32> to vector<8x64xf32>
    %c0_179 = arith.constant 0 : index
    %c0_180 = arith.constant 0 : index
    %452 = vector.load %arg9[%c0_179, %c0_180] : memref<1x64xf32, #tpu.memory_space<vmem>>, vector<1x64xf32>
    %453 = vector.broadcast %452 : vector<1x64xf32> to vector<8x64xf32>
    %454 = arith.addf %451, %453 : vector<8x64xf32>
    %455 = arith.mulf %448, %454 : vector<8x64xf32>
    %456 = arith.addf %450, %455 : vector<8x64xf32>
    %457 = math.tanh %456 : vector<8x64xf32>
    %cst_181 = arith.constant 1.000000e+00 : f32
    %458 = vector.broadcast %cst_181 : f32 to vector<8x64xf32>
    %459 = arith.subf %458, %449 : vector<8x64xf32>
    %460 = arith.mulf %459, %457 : vector<8x64xf32>
    %461 = arith.mulf %449, %423 : vector<8x64xf32>
    %462 = arith.addf %460, %461 : vector<8x64xf32>
    %463 = vector.extract_strided_slice %462 {offsets = [0, 0], sizes = [8, 32], strides = [1, 1]} : vector<8x64xf32> to vector<8x32xf32>
    %464 = arith.index_cast %c4_i32_172 : i32 to index
    %c0_182 = arith.constant 0 : index
    %c0_183 = arith.constant 0 : index
    %465 = vector.load %arg10[%464, %c0_182, %c0_183] : memref<8x8x64xf32, #tpu.memory_space<vmem>>, vector<1x8x32xf32>
    %466 = vector.shape_cast %465 : vector<1x8x32xf32> to vector<8x32xf32>
    %467 = vector.shape_cast %463 : vector<8x32xf32> to vector<1x8x32xf32>
    tpu.vector_store %arg10[%464, %c0_182, %c0_183], %467 {strides = array<i32>} : memref<8x8x64xf32, #tpu.memory_space<vmem>>, vector<1x8x32xf32>,
    %468 = vector.extract_strided_slice %462 {offsets = [0, 32], sizes = [8, 32], strides = [1, 1]} : vector<8x64xf32> to vector<8x32xf32>
    %c7_i32_184 = arith.constant 7 : i32
    %469 = arith.subi %c7_i32_184, %c4_i32_172 : i32
    %470 = arith.index_cast %469 : i32 to index
    %c0_185 = arith.constant 0 : index
    %c32_186 = arith.constant 32 : index
    %471 = vector.load %arg10[%470, %c0_185, %c32_186] : memref<8x8x64xf32, #tpu.memory_space<vmem>>, vector<1x8x32xf32>
    %472 = vector.shape_cast %471 : vector<1x8x32xf32> to vector<8x32xf32>
    %473 = vector.shape_cast %468 : vector<8x32xf32> to vector<1x8x32xf32>
    tpu.vector_store %arg10[%470, %c0_185, %c32_186], %473 {strides = array<i32>} : memref<8x8x64xf32, #tpu.memory_space<vmem>>, vector<1x8x32xf32>,
    %c5_i32_187 = arith.constant 5 : i32
    %c0_188 = arith.constant 0 : index
    %c0_189 = arith.constant 0 : index
    %474 = vector.load %arg7[%c0_188, %c0_189] : memref<64x192xf32, #tpu.memory_space<vmem>>, vector<64x192xf32>
    %cst_190 = arith.constant dense<0.000000e+00> : vector<8x192xf32>
    %475 = tpu.matmul %462, %474, %cst_190 {dimension_numbers = #tpu.dot_dimension_numbers<[1], [0], [0], [1], [0, 0, 1, 1], [], []>} : vector<8x64xf32>, vector<64x192xf32>, vector<8x192xf32> -> vector<8x192xf32>
    %476 = arith.index_cast %c5_i32_187 : i32 to index
    %c0_191 = arith.constant 0 : index
    %c0_192 = arith.constant 0 : index
    %477 = vector.load %arg13[%476, %c0_191, %c0_192] : memref<8x8x192xf32, #tpu.memory_space<vmem>>, vector<1x8x192xf32>
    %478 = vector.shape_cast %477 : vector<1x8x192xf32> to vector<8x192xf32>
    %479 = vector.extract_strided_slice %478 {offsets = [0, 0], sizes = [8, 128], strides = [1, 1]} : vector<8x192xf32> to vector<8x128xf32>
    %480 = vector.extract_strided_slice %475 {offsets = [0, 0], sizes = [8, 128], strides = [1, 1]} : vector<8x192xf32> to vector<8x128xf32>
    %481 = arith.addf %479, %480 : vector<8x128xf32>
    %482 = arith.negf %481 : vector<8x128xf32>
    %483 = math.exp %482 : vector<8x128xf32>
    %cst_193 = arith.constant 1.000000e+00 : f32
    %484 = vector.broadcast %cst_193 : f32 to vector<8x128xf32>
    %485 = arith.addf %484, %483 : vector<8x128xf32>
    %486 = arith.divf %484, %485 : vector<8x128xf32>
    %487 = vector.extract_strided_slice %486 {offsets = [0, 0], sizes = [8, 64], strides = [1, 1]} : vector<8x128xf32> to vector<8x64xf32>
    %488 = vector.extract_strided_slice %486 {offsets = [0, 64], sizes = [8, 64], strides = [1, 1]} : vector<8x128xf32> to vector<8x64xf32>
    %489 = vector.extract_strided_slice %478 {offsets = [0, 128], sizes = [8, 64], strides = [1, 1]} : vector<8x192xf32> to vector<8x64xf32>
    %490 = vector.extract_strided_slice %475 {offsets = [0, 128], sizes = [8, 64], strides = [1, 1]} : vector<8x192xf32> to vector<8x64xf32>
    %c0_194 = arith.constant 0 : index
    %c0_195 = arith.constant 0 : index
    %491 = vector.load %arg9[%c0_194, %c0_195] : memref<1x64xf32, #tpu.memory_space<vmem>>, vector<1x64xf32>
    %492 = vector.broadcast %491 : vector<1x64xf32> to vector<8x64xf32>
    %493 = arith.addf %490, %492 : vector<8x64xf32>
    %494 = arith.mulf %487, %493 : vector<8x64xf32>
    %495 = arith.addf %489, %494 : vector<8x64xf32>
    %496 = math.tanh %495 : vector<8x64xf32>
    %cst_196 = arith.constant 1.000000e+00 : f32
    %497 = vector.broadcast %cst_196 : f32 to vector<8x64xf32>
    %498 = arith.subf %497, %488 : vector<8x64xf32>
    %499 = arith.mulf %498, %496 : vector<8x64xf32>
    %500 = arith.mulf %488, %462 : vector<8x64xf32>
    %501 = arith.addf %499, %500 : vector<8x64xf32>
    %502 = vector.extract_strided_slice %501 {offsets = [0, 0], sizes = [8, 32], strides = [1, 1]} : vector<8x64xf32> to vector<8x32xf32>
    %503 = arith.index_cast %c5_i32_187 : i32 to index
    %c0_197 = arith.constant 0 : index
    %c0_198 = arith.constant 0 : index
    %504 = vector.load %arg10[%503, %c0_197, %c0_198] : memref<8x8x64xf32, #tpu.memory_space<vmem>>, vector<1x8x32xf32>
    %505 = vector.shape_cast %504 : vector<1x8x32xf32> to vector<8x32xf32>
    %506 = vector.shape_cast %502 : vector<8x32xf32> to vector<1x8x32xf32>
    tpu.vector_store %arg10[%503, %c0_197, %c0_198], %506 {strides = array<i32>} : memref<8x8x64xf32, #tpu.memory_space<vmem>>, vector<1x8x32xf32>,
    %507 = vector.extract_strided_slice %501 {offsets = [0, 32], sizes = [8, 32], strides = [1, 1]} : vector<8x64xf32> to vector<8x32xf32>
    %c7_i32_199 = arith.constant 7 : i32
    %508 = arith.subi %c7_i32_199, %c5_i32_187 : i32
    %509 = arith.index_cast %508 : i32 to index
    %c0_200 = arith.constant 0 : index
    %c32_201 = arith.constant 32 : index
    %510 = vector.load %arg10[%509, %c0_200, %c32_201] : memref<8x8x64xf32, #tpu.memory_space<vmem>>, vector<1x8x32xf32>
    %511 = vector.shape_cast %510 : vector<1x8x32xf32> to vector<8x32xf32>
    %512 = vector.shape_cast %507 : vector<8x32xf32> to vector<1x8x32xf32>
    tpu.vector_store %arg10[%509, %c0_200, %c32_201], %512 {strides = array<i32>} : memref<8x8x64xf32, #tpu.memory_space<vmem>>, vector<1x8x32xf32>,
    %c6_i32_202 = arith.constant 6 : i32
    %c0_203 = arith.constant 0 : index
    %c0_204 = arith.constant 0 : index
    %513 = vector.load %arg7[%c0_203, %c0_204] : memref<64x192xf32, #tpu.memory_space<vmem>>, vector<64x192xf32>
    %cst_205 = arith.constant dense<0.000000e+00> : vector<8x192xf32>
    %514 = tpu.matmul %501, %513, %cst_205 {dimension_numbers = #tpu.dot_dimension_numbers<[1], [0], [0], [1], [0, 0, 1, 1], [], []>} : vector<8x64xf32>, vector<64x192xf32>, vector<8x192xf32> -> vector<8x192xf32>
    %515 = arith.index_cast %c6_i32_202 : i32 to index
    %c0_206 = arith.constant 0 : index
    %c0_207 = arith.constant 0 : index
    %516 = vector.load %arg13[%515, %c0_206, %c0_207] : memref<8x8x192xf32, #tpu.memory_space<vmem>>, vector<1x8x192xf32>
    %517 = vector.shape_cast %516 : vector<1x8x192xf32> to vector<8x192xf32>
    %518 = vector.extract_strided_slice %517 {offsets = [0, 0], sizes = [8, 128], strides = [1, 1]} : vector<8x192xf32> to vector<8x128xf32>
    %519 = vector.extract_strided_slice %514 {offsets = [0, 0], sizes = [8, 128], strides = [1, 1]} : vector<8x192xf32> to vector<8x128xf32>
    %520 = arith.addf %518, %519 : vector<8x128xf32>
    %521 = arith.negf %520 : vector<8x128xf32>
    %522 = math.exp %521 : vector<8x128xf32>
    %cst_208 = arith.constant 1.000000e+00 : f32
    %523 = vector.broadcast %cst_208 : f32 to vector<8x128xf32>
    %524 = arith.addf %523, %522 : vector<8x128xf32>
    %525 = arith.divf %523, %524 : vector<8x128xf32>
    %526 = vector.extract_strided_slice %525 {offsets = [0, 0], sizes = [8, 64], strides = [1, 1]} : vector<8x128xf32> to vector<8x64xf32>
    %527 = vector.extract_strided_slice %525 {offsets = [0, 64], sizes = [8, 64], strides = [1, 1]} : vector<8x128xf32> to vector<8x64xf32>
    %528 = vector.extract_strided_slice %517 {offsets = [0, 128], sizes = [8, 64], strides = [1, 1]} : vector<8x192xf32> to vector<8x64xf32>
    %529 = vector.extract_strided_slice %514 {offsets = [0, 128], sizes = [8, 64], strides = [1, 1]} : vector<8x192xf32> to vector<8x64xf32>
    %c0_209 = arith.constant 0 : index
    %c0_210 = arith.constant 0 : index
    %530 = vector.load %arg9[%c0_209, %c0_210] : memref<1x64xf32, #tpu.memory_space<vmem>>, vector<1x64xf32>
    %531 = vector.broadcast %530 : vector<1x64xf32> to vector<8x64xf32>
    %532 = arith.addf %529, %531 : vector<8x64xf32>
    %533 = arith.mulf %526, %532 : vector<8x64xf32>
    %534 = arith.addf %528, %533 : vector<8x64xf32>
    %535 = math.tanh %534 : vector<8x64xf32>
    %cst_211 = arith.constant 1.000000e+00 : f32
    %536 = vector.broadcast %cst_211 : f32 to vector<8x64xf32>
    %537 = arith.subf %536, %527 : vector<8x64xf32>
    %538 = arith.mulf %537, %535 : vector<8x64xf32>
    %539 = arith.mulf %527, %501 : vector<8x64xf32>
    %540 = arith.addf %538, %539 : vector<8x64xf32>
    %541 = vector.extract_strided_slice %540 {offsets = [0, 0], sizes = [8, 32], strides = [1, 1]} : vector<8x64xf32> to vector<8x32xf32>
    %542 = arith.index_cast %c6_i32_202 : i32 to index
    %c0_212 = arith.constant 0 : index
    %c0_213 = arith.constant 0 : index
    %543 = vector.load %arg10[%542, %c0_212, %c0_213] : memref<8x8x64xf32, #tpu.memory_space<vmem>>, vector<1x8x32xf32>
    %544 = vector.shape_cast %543 : vector<1x8x32xf32> to vector<8x32xf32>
    %545 = vector.shape_cast %541 : vector<8x32xf32> to vector<1x8x32xf32>
    tpu.vector_store %arg10[%542, %c0_212, %c0_213], %545 {strides = array<i32>} : memref<8x8x64xf32, #tpu.memory_space<vmem>>, vector<1x8x32xf32>,
    %546 = vector.extract_strided_slice %540 {offsets = [0, 32], sizes = [8, 32], strides = [1, 1]} : vector<8x64xf32> to vector<8x32xf32>
    %c7_i32_214 = arith.constant 7 : i32
    %547 = arith.subi %c7_i32_214, %c6_i32_202 : i32
    %548 = arith.index_cast %547 : i32 to index
    %c0_215 = arith.constant 0 : index
    %c32_216 = arith.constant 32 : index
    %549 = vector.load %arg10[%548, %c0_215, %c32_216] : memref<8x8x64xf32, #tpu.memory_space<vmem>>, vector<1x8x32xf32>
    %550 = vector.shape_cast %549 : vector<1x8x32xf32> to vector<8x32xf32>
    %551 = vector.shape_cast %546 : vector<8x32xf32> to vector<1x8x32xf32>
    tpu.vector_store %arg10[%548, %c0_215, %c32_216], %551 {strides = array<i32>} : memref<8x8x64xf32, #tpu.memory_space<vmem>>, vector<1x8x32xf32>,
    %c7_i32_217 = arith.constant 7 : i32
    %c0_218 = arith.constant 0 : index
    %c0_219 = arith.constant 0 : index
    %552 = vector.load %arg7[%c0_218, %c0_219] : memref<64x192xf32, #tpu.memory_space<vmem>>, vector<64x192xf32>
    %cst_220 = arith.constant dense<0.000000e+00> : vector<8x192xf32>
    %553 = tpu.matmul %540, %552, %cst_220 {dimension_numbers = #tpu.dot_dimension_numbers<[1], [0], [0], [1], [0, 0, 1, 1], [], []>} : vector<8x64xf32>, vector<64x192xf32>, vector<8x192xf32> -> vector<8x192xf32>
    %554 = arith.index_cast %c7_i32_217 : i32 to index
    %c0_221 = arith.constant 0 : index
    %c0_222 = arith.constant 0 : index
    %555 = vector.load %arg13[%554, %c0_221, %c0_222] : memref<8x8x192xf32, #tpu.memory_space<vmem>>, vector<1x8x192xf32>
    %556 = vector.shape_cast %555 : vector<1x8x192xf32> to vector<8x192xf32>
    %557 = vector.extract_strided_slice %556 {offsets = [0, 0], sizes = [8, 128], strides = [1, 1]} : vector<8x192xf32> to vector<8x128xf32>
    %558 = vector.extract_strided_slice %553 {offsets = [0, 0], sizes = [8, 128], strides = [1, 1]} : vector<8x192xf32> to vector<8x128xf32>
    %559 = arith.addf %557, %558 : vector<8x128xf32>
    %560 = arith.negf %559 : vector<8x128xf32>
    %561 = math.exp %560 : vector<8x128xf32>
    %cst_223 = arith.constant 1.000000e+00 : f32
    %562 = vector.broadcast %cst_223 : f32 to vector<8x128xf32>
    %563 = arith.addf %562, %561 : vector<8x128xf32>
    %564 = arith.divf %562, %563 : vector<8x128xf32>
    %565 = vector.extract_strided_slice %564 {offsets = [0, 0], sizes = [8, 64], strides = [1, 1]} : vector<8x128xf32> to vector<8x64xf32>
    %566 = vector.extract_strided_slice %564 {offsets = [0, 64], sizes = [8, 64], strides = [1, 1]} : vector<8x128xf32> to vector<8x64xf32>
    %567 = vector.extract_strided_slice %556 {offsets = [0, 128], sizes = [8, 64], strides = [1, 1]} : vector<8x192xf32> to vector<8x64xf32>
    %568 = vector.extract_strided_slice %553 {offsets = [0, 128], sizes = [8, 64], strides = [1, 1]} : vector<8x192xf32> to vector<8x64xf32>
    %c0_224 = arith.constant 0 : index
    %c0_225 = arith.constant 0 : index
    %569 = vector.load %arg9[%c0_224, %c0_225] : memref<1x64xf32, #tpu.memory_space<vmem>>, vector<1x64xf32>
    %570 = vector.broadcast %569 : vector<1x64xf32> to vector<8x64xf32>
    %571 = arith.addf %568, %570 : vector<8x64xf32>
    %572 = arith.mulf %565, %571 : vector<8x64xf32>
    %573 = arith.addf %567, %572 : vector<8x64xf32>
    %574 = math.tanh %573 : vector<8x64xf32>
    %cst_226 = arith.constant 1.000000e+00 : f32
    %575 = vector.broadcast %cst_226 : f32 to vector<8x64xf32>
    %576 = arith.subf %575, %566 : vector<8x64xf32>
    %577 = arith.mulf %576, %574 : vector<8x64xf32>
    %578 = arith.mulf %566, %540 : vector<8x64xf32>
    %579 = arith.addf %577, %578 : vector<8x64xf32>
    %580 = vector.extract_strided_slice %579 {offsets = [0, 0], sizes = [8, 32], strides = [1, 1]} : vector<8x64xf32> to vector<8x32xf32>
    %581 = arith.index_cast %c7_i32_217 : i32 to index
    %c0_227 = arith.constant 0 : index
    %c0_228 = arith.constant 0 : index
    %582 = vector.load %arg10[%581, %c0_227, %c0_228] : memref<8x8x64xf32, #tpu.memory_space<vmem>>, vector<1x8x32xf32>
    %583 = vector.shape_cast %582 : vector<1x8x32xf32> to vector<8x32xf32>
    %584 = vector.shape_cast %580 : vector<8x32xf32> to vector<1x8x32xf32>
    tpu.vector_store %arg10[%581, %c0_227, %c0_228], %584 {strides = array<i32>} : memref<8x8x64xf32, #tpu.memory_space<vmem>>, vector<1x8x32xf32>,
    %585 = vector.extract_strided_slice %579 {offsets = [0, 32], sizes = [8, 32], strides = [1, 1]} : vector<8x64xf32> to vector<8x32xf32>
    %c7_i32_229 = arith.constant 7 : i32
    %586 = arith.subi %c7_i32_229, %c7_i32_217 : i32
    %587 = arith.index_cast %586 : i32 to index
    %c0_230 = arith.constant 0 : index
    %c32_231 = arith.constant 32 : index
    %588 = vector.load %arg10[%587, %c0_230, %c32_231] : memref<8x8x64xf32, #tpu.memory_space<vmem>>, vector<1x8x32xf32>
    %589 = vector.shape_cast %588 : vector<1x8x32xf32> to vector<8x32xf32>
    %590 = vector.shape_cast %585 : vector<8x32xf32> to vector<1x8x32xf32>
    tpu.vector_store %arg10[%587, %c0_230, %c32_231], %590 {strides = array<i32>} : memref<8x8x64xf32, #tpu.memory_space<vmem>>, vector<1x8x32xf32>,
    %c8_i32_232 = arith.constant 8 : i32
    %c1 = arith.constant 1 : index
    %c0_233 = arith.constant 0 : index
    %c0_234 = arith.constant 0 : index
    %591 = vector.load %arg11[%c1, %c0_233, %c0_234] : memref<2x8x64xf32, #tpu.memory_space<vmem>>, vector<1x8x64xf32>
    %592 = vector.shape_cast %591 : vector<1x8x64xf32> to vector<8x64xf32>
    %593 = vector.shape_cast %579 : vector<8x64xf32> to vector<1x8x64xf32>
    tpu.vector_store %arg11[%c1, %c0_233, %c0_234], %593 {strides = array<i32>} : memref<2x8x64xf32, #tpu.memory_space<vmem>>, vector<1x8x64xf32>,
    return
  }
  func.func @transform_0(%arg0: i32) -> (i32, i32, i32) {
    %c0_i32 = arith.constant 0 : i32
    %c0_i32_0 = arith.constant 0 : i32
    %c0_i32_1 = arith.constant 0 : i32
    %c0_i32_2 = arith.constant 0 : i32
    return %c0_i32, %c0_i32_0, %c0_i32_1 : i32, i32, i32
  }
  func.func @transform_1(%arg0: i32) -> (i32, i32) {
    %c0_i32 = arith.constant 0 : i32
    %c0_i32_0 = arith.constant 0 : i32
    %c0_i32_1 = arith.constant 0 : i32
    return %c0_i32, %c0_i32_0 : i32, i32
  }
  func.func @transform_2(%arg0: i32) -> (i32, i32) {
    %c0_i32 = arith.constant 0 : i32
    %c0_i32_0 = arith.constant 0 : i32
    %c0_i32_1 = arith.constant 0 : i32
    return %c0_i32, %c0_i32_0 : i32, i32
  }
  func.func @transform_3(%arg0: i32) -> (i32, i32) {
    %c0_i32 = arith.constant 0 : i32
    %c0_i32_0 = arith.constant 0 : i32
    %c0_i32_1 = arith.constant 0 : i32
    return %c0_i32, %c0_i32_0 : i32, i32
  }
  func.func @transform_4(%arg0: i32) -> (i32, i32) {
    %c0_i32 = arith.constant 0 : i32
    %c0_i32_0 = arith.constant 0 : i32
    %c0_i32_1 = arith.constant 0 : i32
    return %c0_i32, %c0_i32_0 : i32, i32
  }
  func.func @transform_5(%arg0: i32) -> (i32, i32) {
    %c0_i32 = arith.constant 0 : i32
    %c0_i32_0 = arith.constant 0 : i32
    %c0_i32_1 = arith.constant 0 : i32
    return %c0_i32, %c0_i32_0 : i32, i32
  }
  func.func @transform_6(%arg0: i32) -> (i32, i32) {
    %c0_i32 = arith.constant 0 : i32
    %c0_i32_0 = arith.constant 0 : i32
    %c0_i32_1 = arith.constant 0 : i32
    return %c0_i32, %c0_i32_0 : i32, i32
  }
  func.func @transform_7(%arg0: i32) -> (i32, i32) {
    %c0_i32 = arith.constant 0 : i32
    %c0_i32_0 = arith.constant 0 : i32
    %c0_i32_1 = arith.constant 0 : i32
    return %c0_i32, %c0_i32_0 : i32, i32
  }
  func.func @transform_8(%arg0: i32) -> (i32, i32) {
    %c0_i32 = arith.constant 0 : i32
    %c0_i32_0 = arith.constant 0 : i32
    %c0_i32_1 = arith.constant 0 : i32
    return %c0_i32, %c0_i32_0 : i32, i32
  }
  func.func @transform_9(%arg0: i32) -> (i32, i32, i32) {
    %c0_i32 = arith.constant 0 : i32
    %c0_i32_0 = arith.constant 0 : i32
    %c0_i32_1 = arith.constant 0 : i32
    %c0_i32_2 = arith.constant 0 : i32
    return %c0_i32, %c0_i32_0, %c0_i32_1 : i32, i32, i32
  }
  func.func @transform_10(%arg0: i32) -> (i32, i32, i32) {
    %c0_i32 = arith.constant 0 : i32
    %c0_i32_0 = arith.constant 0 : i32
    %c0_i32_1 = arith.constant 0 : i32
    %c0_i32_2 = arith.constant 0 : i32
    return %c0_i32, %c0_i32_0, %c0_i32_1 : i32, i32, i32
  }
}

</mosaic_0001>

<llo_original>
// kernel: bidirectional_gru_encoder.1
$region0: #{bidirectional_gru_encoder.1}
  #allocation0 [shape = 'u32[]', space=smem, size = 0x4, offset = 0x4, fixed_abs, tag = 'smem constant byte address 0x4 - core index']
  #allocation1 [shape = 'u32[72,128]{1,0:T(1,128)}', space=vmem, size = 0x9000, scoped, tag = 'internal scratch']
  #allocation2 [shape = 'f32[8,8,64]{2,1,0:T(8,128)}', space=vmem, size = 0x8000, scoped, tag = 'scratch operand']
  #allocation3 [shape = 'f32[8,8,192]{2,1,0:T(8,128)}', space=vmem, size = 0x10000, scoped, tag = 'scratch operand']
  %s0 = inlined_call_operand.vmem [shape: f32[8,8,32], index: 0, kind: input, shape index: {}]
  %s1 = inlined_call_operand.vmem [shape: f32[32,192], index: 1, kind: input, shape index: {}]
  %s2 = inlined_call_operand.vmem [shape: f32[64,192], index: 2, kind: input, shape index: {}]
  %s3 = inlined_call_operand.vmem [shape: f32[1,192], index: 3, kind: input, shape index: {}]
  %s4 = inlined_call_operand.vmem [shape: f32[1,64], index: 4, kind: input, shape index: {}]
  %s5 = inlined_call_operand.vmem [shape: f32[64,192], index: 5, kind: input, shape index: {}]
  %s6 = inlined_call_operand.vmem [shape: f32[64,192], index: 6, kind: input, shape index: {}]
  %s7 = inlined_call_operand.vmem [shape: f32[1,192], index: 7, kind: input, shape index: {}]
  %s8 = inlined_call_operand.vmem [shape: f32[1,64], index: 8, kind: input, shape index: {}]
  %s9 = inlined_call_operand.vmem [shape: f32[8,8,64], index: 9, kind: output, shape index: {0}]
  %s10 = inlined_call_operand.hbm [shape: f32[2,8,64], index: 10, kind: output, shape index: {1}]
  %11 = xla_tuple %s9, %s10
  %s12 = sld [smem:[#allocation0]]
  $region54: #{bidirectional_gru_encoder.1} parent=0
    _
  %s14 = ssub.s32 1, %s12
  %s15 = scalar_select 0, %s14, %s12
  $region1: #{bidirectional_gru_encoder.1} parent=0
    #allocation4 [shape = 'u8[8192]{0}', space=vmem, size = 0x2000, scoped, tag = 'output window, operand 1, single buffered']
    #allocation5 [shape = 's32[1]{0}', space=sflag, size = 0x4, scoped, tag = 'scoped memory for bidirectional_gru_encoder.1']
    %16 = vsyncpa [#allocation5], 0
    // Predicated region
    $region2: #{bidirectional_gru_encoder.1} parent=1 // pred_check
      _
    $region3: #{bidirectional_gru_encoder.1} parent=1 // pred_check_branch
      %18 = sbr.rel (0) target = $region5
    $region4: #{bidirectional_gru_encoder.1} parent=1 // pred_region
      _
    $region5: #{bidirectional_gru_encoder.1} parent=1 // pred_fallthru
      _
    // Predicated region
    $region6: #{bidirectional_gru_encoder.1} parent=1 // pred_check
      _
    $region7: #{bidirectional_gru_encoder.1} parent=1 // pred_check_branch
      %20 = sbr.rel (0) target = $region9
    $region8: #{bidirectional_gru_encoder.1} parent=1 // pred_region
      _
    $region9: #{bidirectional_gru_encoder.1} parent=1 // pred_fallthru
      _
    // Predicated region
    $region10: #{bidirectional_gru_encoder.1} parent=1 // pred_check
      _
    $region11: #{bidirectional_gru_encoder.1} parent=1 // pred_check_branch
      %22 = sbr.rel (0) target = $region13
    $region12: #{bidirectional_gru_encoder.1} parent=1 // pred_region
      _
    $region13: #{bidirectional_gru_encoder.1} parent=1 // pred_fallthru
      _
    // Predicated region
    $region14: #{bidirectional_gru_encoder.1} parent=1 // pred_check
      _
    $region15: #{bidirectional_gru_encoder.1} parent=1 // pred_check_branch
      %24 = sbr.rel (0) target = $region17
    $region16: #{bidirectional_gru_encoder.1} parent=1 // pred_region
      _
    $region17: #{bidirectional_gru_encoder.1} parent=1 // pred_fallthru
      _
    // Predicated region
    $region18: #{bidirectional_gru_encoder.1} parent=1 // pred_check
      _
    $region19: #{bidirectional_gru_encoder.1} parent=1 // pred_check_branch
      %26 = sbr.rel (0) target = $region21
    $region20: #{bidirectional_gru_encoder.1} parent=1 // pred_region
      _
    $region21: #{bidirectional_gru_encoder.1} parent=1 // pred_fallthru
      _
    // Predicated region
    $region22: #{bidirectional_gru_encoder.1} parent=1 // pred_check
      _
    $region23: #{bidirectional_gru_encoder.1} parent=1 // pred_check_branch
      %28 = sbr.rel (0) target = $region25
    $region24: #{bidirectional_gru_encoder.1} parent=1 // pred_region
      _
    $region25: #{bidirectional_gru_encoder.1} parent=1 // pred_fallthru
      _
    // Predicated region
    $region26: #{bidirectional_gru_encoder.1} parent=1 // pred_check
      _
    $region27: #{bidirectional_gru_encoder.1} parent=1 // pred_check_branch
      %30 = sbr.rel (0) target = $region29
    $region28: #{bidirectional_gru_encoder.1} parent=1 // pred_region
      _
    $region29: #{bidirectional_gru_encoder.1} parent=1 // pred_fallthru
      _
    // Predicated region
    $region30: #{bidirectional_gru_encoder.1} parent=1 // pred_check
      _
    $region31: #{bidirectional_gru_encoder.1} parent=1 // pred_check_branch
      %32 = sbr.rel (0) target = $region33
    $region32: #{bidirectional_gru_encoder.1} parent=1 // pred_region
      _
    $region33: #{bidirectional_gru_encoder.1} parent=1 // pred_fallthru
      _
    // Predicated region
    $region34: #{bidirectional_gru_encoder.1} parent=1 // pred_check
      _
    $region35: #{bidirectional_gru_encoder.1} parent=1 // pred_check_branch
      %34 = sbr.rel (0) target = $region37
    $region36: #{bidirectional_gru_encoder.1} parent=1 // pred_region
      _
    $region37: #{bidirectional_gru_encoder.1} parent=1 // pred_fallthru
      _
    %v35 = vld [vmem:[%s0] sm:$0xff]
    %v36 = vld [vmem:[%s0 + $0x8] sm:$0xff]
    %v37 = vld [vmem:[%s0 + $0x10] sm:$0xff]
    %v38 = vld [vmem:[%s0 + $0x18] sm:$0xff]
    %v39 = vld [vmem:[%s0 + $0x20] sm:$0xff]
    %v40 = vld [vmem:[%s0 + $0x28] sm:$0xff]
    %v41 = vld [vmem:[%s0 + $0x30] sm:$0xff]
    %v42 = vld [vmem:[%s0 + $0x38] sm:$0xff]
    %v43 = vld [vmem:[%s1] sm:$0xff]
    %v44 = vld [vmem:[%s1 + $0x8] sm:$0xff]
    %v45 = vld [vmem:[%s1 + $0x10] sm:$0xff]
    %v46 = vld [vmem:[%s1 + $0x18] sm:$0xff]
    %v47 = vld [vmem:[%s1 + $0x20] sm:$0xff]
    %v48 = vld [vmem:[%s1 + $0x28] sm:$0xff]
    %v49 = vld [vmem:[%s1 + $0x30] sm:$0xff]
    %v50 = vld [vmem:[%s1 + $0x38] sm:$0xff]
    %v51 = vld [vmem:[%s3] sm:$0x3]
    %v53 = vperm.slane %v51, 0
    %v54 = vperm.slane %v51, 1
    %vm57 = vcmask 261120
    %v59 = vsel %vm57, %v35, 0
    %v62 = vsel %vm57, %v36, 0
    %v65 = vsel %vm57, %v37, 0
    %v68 = vsel %vm57, %v38, 0
    %v71 = vsel %vm57, %v39, 0
    %v74 = vsel %vm57, %v40, 0
    %v77 = vsel %vm57, %v41, 0
    %v80 = vsel %vm57, %v42, 0
    %82 = vmatpush.msra.mxu0 0.0
    %83 = vmatpush.msra.mxu0 0.0
    %84 = vmatpush.msra.mxu0 0.0
    %85 = vmatpush.msra.mxu0 0.0
    %86 = vmatpush.msra.mxu0 0.0
    %87 = vmatpush.msra.mxu0 0.0
    %88 = vmatpush.msra.mxu0 0.0
    %89 = vmatpush.msra.mxu0 0.0
    %90 = vmatpush.msra.mxu0 0.0
    %91 = vmatpush.msra.mxu0 0.0
    %92 = vmatpush.msra.mxu0 0.0
    %93 = vmatpush.msra.mxu0 0.0
    %94 = vmatpush.msra.mxu0 %v49
    %95 = vmatpush.msra.mxu0 %v47
    %96 = vmatpush.msra.mxu0 %v45
    %97 = vmatpush.msra.mxu0 %v43
    %98 = vmatmul.f32.gmra.mxu0 %v59
    %v99 = vpop.f32.mrf.mxu0
    %v100 = vadd.f32 %v53, %v99
    %101 = vmatmul.f32.gmra.mxu0 %v62
    %v102 = vpop.f32.mrf.mxu0
    %v103 = vadd.f32 %v53, %v102
    %104 = vmatmul.f32.gmra.mxu0 %v65
    %v105 = vpop.f32.mrf.mxu0
    %v106 = vadd.f32 %v53, %v105
    %107 = vmatmul.f32.gmra.mxu0 %v68
    %v108 = vpop.f32.mrf.mxu0
    %v109 = vadd.f32 %v53, %v108
    %110 = vmatmul.f32.gmra.mxu0 %v71
    %v111 = vpop.f32.mrf.mxu0
    %v112 = vadd.f32 %v53, %v111
    %113 = vmatmul.f32.gmra.mxu0 %v74
    %v114 = vpop.f32.mrf.mxu0
    %v115 = vadd.f32 %v53, %v114
    %116 = vmatmul.f32.gmra.mxu0 %v77
    %v117 = vpop.f32.mrf.mxu0
    %v118 = vadd.f32 %v53, %v117
    %119 = vmatmul.f32.gmra.mxu0 %v80
    %v120 = vpop.f32.mrf.mxu0
    %v121 = vadd.f32 %v53, %v120
    %122 = vdwg.mxu0
    %123 = vmatpush.msra.mxu0 0.0
    %124 = vmatpush.msra.mxu0 0.0
    %125 = vmatpush.msra.mxu0 0.0
    %126 = vmatpush.msra.mxu0 0.0
    %127 = vmatpush.msra.mxu0 0.0
    %128 = vmatpush.msra.mxu0 0.0
    %129 = vmatpush.msra.mxu0 0.0
    %130 = vmatpush.msra.mxu0 0.0
    %131 = vmatpush.msra.mxu0 0.0
    %132 = vmatpush.msra.mxu0 0.0
    %133 = vmatpush.msra.mxu0 0.0
    %134 = vmatpush.msra.mxu0 0.0
    %135 = vmatpush.msra.mxu0 %v50
    %136 = vmatpush.msra.mxu0 %v48
    %137 = vmatpush.msra.mxu0 %v46
    %138 = vmatpush.msra.mxu0 %v44
    %139 = vmatmul.f32.gmra.mxu0 %v59
    %v140 = vpop.f32.mrf.mxu0
    %v141 = vadd.f32 %v54, %v140
    %142 = vmatmul.f32.gmra.mxu0 %v62
    %v143 = vpop.f32.mrf.mxu0
    %v144 = vadd.f32 %v54, %v143
    %145 = vmatmul.f32.gmra.mxu0 %v65
    %v146 = vpop.f32.mrf.mxu0
    %v147 = vadd.f32 %v54, %v146
    %148 = vmatmul.f32.gmra.mxu0 %v68
    %v149 = vpop.f32.mrf.mxu0
    %v150 = vadd.f32 %v54, %v149
    %151 = vmatmul.f32.gmra.mxu0 %v71
    %v152 = vpop.f32.mrf.mxu0
    %v153 = vadd.f32 %v54, %v152
    %154 = vmatmul.f32.gmra.mxu0 %v74
    %v155 = vpop.f32.mrf.mxu0
    %v156 = vadd.f32 %v54, %v155
    %157 = vmatmul.f32.gmra.mxu0 %v77
    %v158 = vpop.f32.mrf.mxu0
    %v159 = vadd.f32 %v54, %v158
    %160 = vmatmul.f32.gmra.mxu0 %v80
    %v161 = vpop.f32.mrf.mxu0
    %v162 = vadd.f32 %v54, %v161
    %163 = vdwg.mxu0
    %164 = vst [vmem:[#allocation3] sm:$0xff] %v100
    %vm165 = vcmask 523264
    %166 = vst.msk [vmem:[#allocation3 + $0x8] sm:$0xff] %vm165, %v141
    %167 = vst [vmem:[#allocation3 + $0x10] sm:$0xff] %v103
    %168 = vst.msk [vmem:[#allocation3 + $0x18] sm:$0xff] %vm165, %v144
    %169 = vst [vmem:[#allocation3 + $0x20] sm:$0xff] %v106
    %170 = vst.msk [vmem:[#allocation3 + $0x28] sm:$0xff] %vm165, %v147
    %171 = vst [vmem:[#allocation3 + $0x30] sm:$0xff] %v109
    %172 = vst.msk [vmem:[#allocation3 + $0x38] sm:$0xff] %vm165, %v150
    %173 = vst [vmem:[#allocation3 + $0x40] sm:$0xff] %v112
    %174 = vst.msk [vmem:[#allocation3 + $0x48] sm:$0xff] %vm165, %v153
    %175 = vst [vmem:[#allocation3 + $0x50] sm:$0xff] %v115
    %176 = vst.msk [vmem:[#allocation3 + $0x58] sm:$0xff] %vm165, %v156
    %177 = vst [vmem:[#allocation3 + $0x60] sm:$0xff] %v118
    %178 = vst.msk [vmem:[#allocation3 + $0x68] sm:$0xff] %vm165, %v159
    %179 = vst [vmem:[#allocation3 + $0x70] sm:$0xff] %v121
    %180 = vst.msk [vmem:[#allocation3 + $0x78] sm:$0xff] %vm165, %v162
    %v181 = vld [vmem:[%s2] sm:$0xff]
    %v182 = vld [vmem:[%s2 + $0x8] sm:$0xff]
    %v183 = vld [vmem:[%s2 + $0x10] sm:$0xff]
    %v184 = vld [vmem:[%s2 + $0x18] sm:$0xff]
    %v185 = vld [vmem:[%s2 + $0x20] sm:$0xff]
    %v186 = vld [vmem:[%s2 + $0x28] sm:$0xff]
    %v187 = vld [vmem:[%s2 + $0x30] sm:$0xff]
    %v188 = vld [vmem:[%s2 + $0x38] sm:$0xff]
    %v189 = vld [vmem:[%s2 + $0x40] sm:$0xff]
    %v190 = vld [vmem:[%s2 + $0x48] sm:$0xff]
    %v191 = vld [vmem:[%s2 + $0x50] sm:$0xff]
    %v192 = vld [vmem:[%s2 + $0x58] sm:$0xff]
    %v193 = vld [vmem:[%s2 + $0x60] sm:$0xff]
    %v194 = vld [vmem:[%s2 + $0x68] sm:$0xff]
    %v195 = vld [vmem:[%s2 + $0x70] sm:$0xff]
    %v196 = vld [vmem:[%s2 + $0x78] sm:$0xff]
    %v198 = vsel %vm165, 0.0, 0
    %200 = vmatpush.msra.mxu0 0.0
    %201 = vmatpush.msra.mxu0 0.0
    %202 = vmatpush.msra.mxu0 0.0
    %203 = vmatpush.msra.mxu0 0.0
    %204 = vmatpush.msra.mxu0 0.0
    %205 = vmatpush.msra.mxu0 0.0
    %206 = vmatpush.msra.mxu0 0.0
    %207 = vmatpush.msra.mxu0 0.0
    %208 = vmatpush.msra.mxu0 %v195
    %209 = vmatpush.msra.mxu0 %v193
    %210 = vmatpush.msra.mxu0 %v191
    %211 = vmatpush.msra.mxu0 %v189
    %212 = vmatpush.msra.mxu0 %v187
    %213 = vmatpush.msra.mxu0 %v185
    %214 = vmatpush.msra.mxu0 %v183
    %215 = vmatpush.msra.mxu0 %v181
    %216 = vmatmul.f32.gmra.mxu0 %v198
    %v217 = vpop.f32.mrf.mxu0
    %v218 = vadd.f32 0.0, %v217
    %219 = vdwg.mxu0
    %220 = vmatpush.msra.mxu0 0.0
    %221 = vmatpush.msra.mxu0 0.0
    %222 = vmatpush.msra.mxu0 0.0
    %223 = vmatpush.msra.mxu0 0.0
    %224 = vmatpush.msra.mxu0 0.0
    %225 = vmatpush.msra.mxu0 0.0
    %226 = vmatpush.msra.mxu0 0.0
    %227 = vmatpush.msra.mxu0 0.0
    %228 = vmatpush.msra.mxu0 %v196
    %229 = vmatpush.msra.mxu0 %v194
    %230 = vmatpush.msra.mxu0 %v192
    %231 = vmatpush.msra.mxu0 %v190
    %232 = vmatpush.msra.mxu0 %v188
    %233 = vmatpush.msra.mxu0 %v186
    %234 = vmatpush.msra.mxu0 %v184
    %235 = vmatpush.msra.mxu0 %v182
    %236 = vmatmul.f32.gmra.mxu0 %v198
    %v237 = vpop.f32.mrf.mxu0
    %v238 = vadd.f32 0.0, %v237
    %239 = vdwg.mxu0
    %v240 = vld [vmem:[#allocation3] sm:$0xff]
    %v241 = vld [vmem:[#allocation3 + $0x8] sm:$0xff]
    %v242 = vadd.f32 %v240, %v218
    %v243 = vxor.u32 %v242, 2147483648
    %v244 = vmul.f32 %v243, 1.442695
    %v245 = vpow.pop %v244
    %v246 = vadd.f32 %v245, 1.0
    %v247 = vrcp.pop %v246
    %v248 = vmul.f32 %v246, %v247
    %v249 = vsub.f32 1.0, %v248
    %v250 = vmul.f32 %v247, %v249
    %v251 = vadd.f32 %v247, %v250
    %vm252 = vweird.f32 %v246
    %vm253 = vweird.f32 %v247
    %vm254 = vmor %vm252, %vm253
    %v255 = vsel %vm254, %v247, %v251
    %v256 = vand.u32 2147483647, %v246
    %vm257 = vcmp.eq.f32.partialorder %v256, 8.507059e+37
    %v258 = vand.u32 %v246, 2147483648
    %v259 = vor.u32 1.1754944e-38, %v258
    %v260 = vsel %vm257, %v259, %v255
    %v261 = vmul.f32 1.0, %v260
    %v262 = vld [vmem:[%s4] sm:$0x1]
    %v264 = vperm.slane %v262, 0
    %v266 = vadd.f32 %v238, %v264
    %v267 = vmul.f32 %v261, %v266
    %v268 = vadd.f32 %v241, %v267
    %v269 = vtanh.pop %v268
    %v270 = vsub.f32 1.0, %v261
    %272 = vrot.lane.b32.xlu0 %v269, 64
    %v273 = vpop.permute.xlu0 %272
    %v275 = vmul.f32 %v270, %v273
    %v276 = vmul.f32 %v261, 0.0
    %v277 = vadd.f32 %v275, %v276
    %279 = vrot.lane.b32.xlu0 %v277, 64
    %v280 = vpop.permute.xlu0 %279
    %282 = vst.msk [vmem:[#allocation2] sm:$0xff] %vm165, %v280
    %v283 = vld [vmem:[%s2] sm:$0xff]
    %v284 = vld [vmem:[%s2 + $0x8] sm:$0xff]
    %v285 = vld [vmem:[%s2 + $0x10] sm:$0xff]
    %v286 = vld [vmem:[%s2 + $0x18] sm:$0xff]
    %v287 = vld [vmem:[%s2 + $0x20] sm:$0xff]
    %v288 = vld [vmem:[%s2 + $0x28] sm:$0xff]
    %v289 = vld [vmem:[%s2 + $0x30] sm:$0xff]
    %v290 = vld [vmem:[%s2 + $0x38] sm:$0xff]
    %v291 = vld [vmem:[%s2 + $0x40] sm:$0xff]
    %v292 = vld [vmem:[%s2 + $0x48] sm:$0xff]
    %v293 = vld [vmem:[%s2 + $0x50] sm:$0xff]
    %v294 = vld [vmem:[%s2 + $0x58] sm:$0xff]
    %v295 = vld [vmem:[%s2 + $0x60] sm:$0xff]
    %v296 = vld [vmem:[%s2 + $0x68] sm:$0xff]
    %v297 = vld [vmem:[%s2 + $0x70] sm:$0xff]
    %v298 = vld [vmem:[%s2 + $0x78] sm:$0xff]
    %v299 = vsel %vm165, %v280, 0
    %301 = vmatpush.msra.mxu0 0.0
    %302 = vmatpush.msra.mxu0 0.0
    %303 = vmatpush.msra.mxu0 0.0
    %304 = vmatpush.msra.mxu0 0.0
    %305 = vmatpush.msra.mxu0 0.0
    %306 = vmatpush.msra.mxu0 0.0
    %307 = vmatpush.msra.mxu0 0.0
    %308 = vmatpush.msra.mxu0 0.0
    %309 = vmatpush.msra.mxu0 %v297
    %310 = vmatpush.msra.mxu0 %v295
    %311 = vmatpush.msra.mxu0 %v293
    %312 = vmatpush.msra.mxu0 %v291
    %313 = vmatpush.msra.mxu0 %v289
    %314 = vmatpush.msra.mxu0 %v287
    %315 = vmatpush.msra.mxu0 %v285
    %316 = vmatpush.msra.mxu0 %v283
    %317 = vmatmul.f32.gmra.mxu0 %v299
    %v318 = vpop.f32.mrf.mxu0
    %v319 = vadd.f32 0.0, %v318
    %320 = vdwg.mxu0
    %321 = vmatpush.msra.mxu0 0.0
    %322 = vmatpush.msra.mxu0 0.0
    %323 = vmatpush.msra.mxu0 0.0
    %324 = vmatpush.msra.mxu0 0.0
    %325 = vmatpush.msra.mxu0 0.0
    %326 = vmatpush.msra.mxu0 0.0
    %327 = vmatpush.msra.mxu0 0.0
    %328 = vmatpush.msra.mxu0 0.0
    %329 = vmatpush.msra.mxu0 %v298
    %330 = vmatpush.msra.mxu0 %v296
    %331 = vmatpush.msra.mxu0 %v294
    %332 = vmatpush.msra.mxu0 %v292
    %333 = vmatpush.msra.mxu0 %v290
    %334 = vmatpush.msra.mxu0 %v288
    %335 = vmatpush.msra.mxu0 %v286
    %336 = vmatpush.msra.mxu0 %v284
    %337 = vmatmul.f32.gmra.mxu0 %v299
    %v338 = vpop.f32.mrf.mxu0
    %v339 = vadd.f32 0.0, %v338
    %340 = vdwg.mxu0
    %s341 = scalar_lea.vmem [#allocation3], 16
    %v342 = vld [vmem:[%s341] sm:$0xff]
    %v343 = vld [vmem:[%s341 + $0x8] sm:$0xff]
    %v344 = vadd.f32 %v342, %v319
    %v345 = vxor.u32 %v344, 2147483648
    %v346 = vmul.f32 %v345, 1.442695
    %v347 = vpow.pop %v346
    %v348 = vadd.f32 %v347, 1.0
    %v349 = vrcp.pop %v348
    %v350 = vmul.f32 %v348, %v349
    %v351 = vsub.f32 1.0, %v350
    %v352 = vmul.f32 %v349, %v351
    %v353 = vadd.f32 %v349, %v352
    %vm354 = vweird.f32 %v348
    %vm355 = vweird.f32 %v349
    %vm356 = vmor %vm354, %vm355
    %v357 = vsel %vm356, %v349, %v353
    %v358 = vand.u32 2147483647, %v348
    %vm359 = vcmp.eq.f32.partialorder %v358, 8.507059e+37
    %v360 = vand.u32 %v348, 2147483648
    %v361 = vor.u32 1.1754944e-38, %v360
    %v362 = vsel %vm359, %v361, %v357
    %v363 = vmul.f32 1.0, %v362
    %v364 = vld [vmem:[%s4] sm:$0x1]
    %v366 = vperm.slane %v364, 0
    %v368 = vadd.f32 %v339, %v366
    %v369 = vmul.f32 %v363, %v368
    %v370 = vadd.f32 %v343, %v369
    %v371 = vtanh.pop %v370
    %v372 = vsub.f32 1.0, %v363
    %374 = vrot.lane.b32.xlu0 %v371, 64
    %v375 = vpop.permute.xlu0 %374
    %v377 = vmul.f32 %v372, %v375
    %v378 = vmul.f32 %v363, %v277
    %v379 = vadd.f32 %v377, %v378
    %381 = vrot.lane.b32.xlu0 %v379, 64
    %v382 = vpop.permute.xlu0 %381
    %s384 = scalar_lea.vmem [#allocation2], 8
    %385 = vst.msk [vmem:[%s384] sm:$0xff] %vm165, %v382
    %v386 = vld [vmem:[%s2] sm:$0xff]
    %v387 = vld [vmem:[%s2 + $0x8] sm:$0xff]
    %v388 = vld [vmem:[%s2 + $0x10] sm:$0xff]
    %v389 = vld [vmem:[%s2 + $0x18] sm:$0xff]
    %v390 = vld [vmem:[%s2 + $0x20] sm:$0xff]
    %v391 = vld [vmem:[%s2 + $0x28] sm:$0xff]
    %v392 = vld [vmem:[%s2 + $0x30] sm:$0xff]
    %v393 = vld [vmem:[%s2 + $0x38] sm:$0xff]
    %v394 = vld [vmem:[%s2 + $0x40] sm:$0xff]
    %v395 = vld [vmem:[%s2 + $0x48] sm:$0xff]
    %v396 = vld [vmem:[%s2 + $0x50] sm:$0xff]
    %v397 = vld [vmem:[%s2 + $0x58] sm:$0xff]
    %v398 = vld [vmem:[%s2 + $0x60] sm:$0xff]
    %v399 = vld [vmem:[%s2 + $0x68] sm:$0xff]
    %v400 = vld [vmem:[%s2 + $0x70] sm:$0xff]
    %v401 = vld [vmem:[%s2 + $0x78] sm:$0xff]
    %v402 = vsel %vm165, %v382, 0
    %404 = vmatpush.msra.mxu0 0.0
    %405 = vmatpush.msra.mxu0 0.0
    %406 = vmatpush.msra.mxu0 0.0
    %407 = vmatpush.msra.mxu0 0.0
    %408 = vmatpush.msra.mxu0 0.0
    %409 = vmatpush.msra.mxu0 0.0
    %410 = vmatpush.msra.mxu0 0.0
    %411 = vmatpush.msra.mxu0 0.0
    %412 = vmatpush.msra.mxu0 %v400
    %413 = vmatpush.msra.mxu0 %v398
    %414 = vmatpush.msra.mxu0 %v396
    %415 = vmatpush.msra.mxu0 %v394
    %416 = vmatpush.msra.mxu0 %v392
    %417 = vmatpush.msra.mxu0 %v390
    %418 = vmatpush.msra.mxu0 %v388
    %419 = vmatpush.msra.mxu0 %v386
    %420 = vmatmul.f32.gmra.mxu0 %v402
    %v421 = vpop.f32.mrf.mxu0
    %v422 = vadd.f32 0.0, %v421
    %423 = vdwg.mxu0
    %424 = vmatpush.msra.mxu0 0.0
    %425 = vmatpush.msra.mxu0 0.0
    %426 = vmatpush.msra.mxu0 0.0
    %427 = vmatpush.msra.mxu0 0.0
    %428 = vmatpush.msra.mxu0 0.0
    %429 = vmatpush.msra.mxu0 0.0
    %430 = vmatpush.msra.mxu0 0.0
    %431 = vmatpush.msra.mxu0 0.0
    %432 = vmatpush.msra.mxu0 %v401
    %433 = vmatpush.msra.mxu0 %v399
    %434 = vmatpush.msra.mxu0 %v397
    %435 = vmatpush.msra.mxu0 %v395
    %436 = vmatpush.msra.mxu0 %v393
    %437 = vmatpush.msra.mxu0 %v391
    %438 = vmatpush.msra.mxu0 %v389
    %439 = vmatpush.msra.mxu0 %v387
    %440 = vmatmul.f32.gmra.mxu0 %v402
    %v441 = vpop.f32.mrf.mxu0
    %v442 = vadd.f32 0.0, %v441
    %443 = vdwg.mxu0
    %s444 = scalar_lea.vmem [#allocation3], 32
    %v445 = vld [vmem:[%s444] sm:$0xff]
    %v446 = vld [vmem:[%s444 + $0x8] sm:$0xff]
    %v447 = vadd.f32 %v445, %v422
    %v448 = vxor.u32 %v447, 2147483648
    %v449 = vmul.f32 %v448, 1.442695
    %v450 = vpow.pop %v449
    %v451 = vadd.f32 %v450, 1.0
    %v452 = vrcp.pop %v451
    %v453 = vmul.f32 %v451, %v452
    %v454 = vsub.f32 1.0, %v453
    %v455 = vmul.f32 %v452, %v454
    %v456 = vadd.f32 %v452, %v455
    %vm457 = vweird.f32 %v451
    %vm458 = vweird.f32 %v452
    %vm459 = vmor %vm457, %vm458
    %v460 = vsel %vm459, %v452, %v456
    %v461 = vand.u32 2147483647, %v451
    %vm462 = vcmp.eq.f32.partialorder %v461, 8.507059e+37
    %v463 = vand.u32 %v451, 2147483648
    %v464 = vor.u32 1.1754944e-38, %v463
    %v465 = vsel %vm462, %v464, %v460
    %v466 = vmul.f32 1.0, %v465
    %v467 = vld [vmem:[%s4] sm:$0x1]
    %v469 = vperm.slane %v467, 0
    %v471 = vadd.f32 %v442, %v469
    %v472 = vmul.f32 %v466, %v471
    %v473 = vadd.f32 %v446, %v472
    %v474 = vtanh.pop %v473
    %v475 = vsub.f32 1.0, %v466
    %477 = vrot.lane.b32.xlu0 %v474, 64
    %v478 = vpop.permute.xlu0 %477
    %v480 = vmul.f32 %v475, %v478
    %v481 = vmul.f32 %v466, %v379
    %v482 = vadd.f32 %v480, %v481
    %484 = vrot.lane.b32.xlu0 %v482, 64
    %v485 = vpop.permute.xlu0 %484
    %s487 = scalar_lea.vmem [#allocation2], 16
    %488 = vst.msk [vmem:[%s487] sm:$0xff] %vm165, %v485
    %v489 = vld [vmem:[%s2] sm:$0xff]
    %v490 = vld [vmem:[%s2 + $0x8] sm:$0xff]
    %v491 = vld [vmem:[%s2 + $0x10] sm:$0xff]
    %v492 = vld [vmem:[%s2 + $0x18] sm:$0xff]
    %v493 = vld [vmem:[%s2 + $0x20] sm:$0xff]
    %v494 = vld [vmem:[%s2 + $0x28] sm:$0xff]
    %v495 = vld [vmem:[%s2 + $0x30] sm:$0xff]
    %v496 = vld [vmem:[%s2 + $0x38] sm:$0xff]
    %v497 = vld [vmem:[%s2 + $0x40] sm:$0xff]
    %v498 = vld [vmem:[%s2 + $0x48] sm:$0xff]
    %v499 = vld [vmem:[%s2 + $0x50] sm:$0xff]
    %v500 = vld [vmem:[%s2 + $0x58] sm:$0xff]
    %v501 = vld [vmem:[%s2 + $0x60] sm:$0xff]
    %v502 = vld [vmem:[%s2 + $0x68] sm:$0xff]
    %v503 = vld [vmem:[%s2 + $0x70] sm:$0xff]
    %v504 = vld [vmem:[%s2 + $0x78] sm:$0xff]
    %v505 = vsel %vm165, %v485, 0
    %507 = vmatpush.msra.mxu0 0.0
    %508 = vmatpush.msra.mxu0 0.0
    %509 = vmatpush.msra.mxu0 0.0
    %510 = vmatpush.msra.mxu0 0.0
    %511 = vmatpush.msra.mxu0 0.0
    %512 = vmatpush.msra.mxu0 0.0
    %513 = vmatpush.msra.mxu0 0.0
    %514 = vmatpush.msra.mxu0 0.0
    %515 = vmatpush.msra.mxu0 %v503
    %516 = vmatpush.msra.mxu0 %v501
    %517 = vmatpush.msra.mxu0 %v499
    %518 = vmatpush.msra.mxu0 %v497
    %519 = vmatpush.msra.mxu0 %v495
    %520 = vmatpush.msra.mxu0 %v493
    %521 = vmatpush.msra.mxu0 %v491
    %522 = vmatpush.msra.mxu0 %v489
    %523 = vmatmul.f32.gmra.mxu0 %v505
    %v524 = vpop.f32.mrf.mxu0
    %v525 = vadd.f32 0.0, %v524
    %526 = vdwg.mxu0
    %527 = vmatpush.msra.mxu0 0.0
    %528 = vmatpush.msra.mxu0 0.0
    %529 = vmatpush.msra.mxu0 0.0
    %530 = vmatpush.msra.mxu0 0.0
    %531 = vmatpush.msra.mxu0 0.0
    %532 = vmatpush.msra.mxu0 0.0
    %533 = vmatpush.msra.mxu0 0.0
    %534 = vmatpush.msra.mxu0 0.0
    %535 = vmatpush.msra.mxu0 %v504
    %536 = vmatpush.msra.mxu0 %v502
    %537 = vmatpush.msra.mxu0 %v500
    %538 = vmatpush.msra.mxu0 %v498
    %539 = vmatpush.msra.mxu0 %v496
    %540 = vmatpush.msra.mxu0 %v494
    %541 = vmatpush.msra.mxu0 %v492
    %542 = vmatpush.msra.mxu0 %v490
    %543 = vmatmul.f32.gmra.mxu0 %v505
    %v544 = vpop.f32.mrf.mxu0
    %v545 = vadd.f32 0.0, %v544
    %546 = vdwg.mxu0
    %s547 = scalar_lea.vmem [#allocation3], 48
    %v548 = vld [vmem:[%s547] sm:$0xff]
    %v549 = vld [vmem:[%s547 + $0x8] sm:$0xff]
    %v550 = vadd.f32 %v548, %v525
    %v551 = vxor.u32 %v550, 2147483648
    %v552 = vmul.f32 %v551, 1.442695
    %v553 = vpow.pop %v552
    %v554 = vadd.f32 %v553, 1.0
    %v555 = vrcp.pop %v554
    %v556 = vmul.f32 %v554, %v555
    %v557 = vsub.f32 1.0, %v556
    %v558 = vmul.f32 %v555, %v557
    %v559 = vadd.f32 %v555, %v558
    %vm560 = vweird.f32 %v554
    %vm561 = vweird.f32 %v555
    %vm562 = vmor %vm560, %vm561
    %v563 = vsel %vm562, %v555, %v559
    %v564 = vand.u32 2147483647, %v554
    %vm565 = vcmp.eq.f32.partialorder %v564, 8.507059e+37
    %v566 = vand.u32 %v554, 2147483648
    %v567 = vor.u32 1.1754944e-38, %v566
    %v568 = vsel %vm565, %v567, %v563
    %v569 = vmul.f32 1.0, %v568
    %v570 = vld [vmem:[%s4] sm:$0x1]
    %v572 = vperm.slane %v570, 0
    %v574 = vadd.f32 %v545, %v572
    %v575 = vmul.f32 %v569, %v574
    %v576 = vadd.f32 %v549, %v575
    %v577 = vtanh.pop %v576
    %v578 = vsub.f32 1.0, %v569
    %580 = vrot.lane.b32.xlu0 %v577, 64
    %v581 = vpop.permute.xlu0 %580
    %v583 = vmul.f32 %v578, %v581
    %v584 = vmul.f32 %v569, %v482
    %v585 = vadd.f32 %v583, %v584
    %587 = vrot.lane.b32.xlu0 %v585, 64
    %v588 = vpop.permute.xlu0 %587
    %s590 = scalar_lea.vmem [#allocation2], 24
    %591 = vst.msk [vmem:[%s590] sm:$0xff] %vm165, %v588
    %v592 = vld [vmem:[%s2] sm:$0xff]
    %v593 = vld [vmem:[%s2 + $0x8] sm:$0xff]
    %v594 = vld [vmem:[%s2 + $0x10] sm:$0xff]
    %v595 = vld [vmem:[%s2 + $0x18] sm:$0xff]
    %v596 = vld [vmem:[%s2 + $0x20] sm:$0xff]
    %v597 = vld [vmem:[%s2 + $0x28] sm:$0xff]
    %v598 = vld [vmem:[%s2 + $0x30] sm:$0xff]
    %v599 = vld [vmem:[%s2 + $0x38] sm:$0xff]
    %v600 = vld [vmem:[%s2 + $0x40] sm:$0xff]
    %v601 = vld [vmem:[%s2 + $0x48] sm:$0xff]
    %v602 = vld [vmem:[%s2 + $0x50] sm:$0xff]
    %v603 = vld [vmem:[%s2 + $0x58] sm:$0xff]
    %v604 = vld [vmem:[%s2 + $0x60] sm:$0xff]
    %v605 = vld [vmem:[%s2 + $0x68] sm:$0xff]
    %v606 = vld [vmem:[%s2 + $0x70] sm:$0xff]
    %v607 = vld [vmem:[%s2 + $0x78] sm:$0xff]
    %v608 = vsel %vm165, %v588, 0
    %610 = vmatpush.msra.mxu0 0.0
    %611 = vmatpush.msra.mxu0 0.0
    %612 = vmatpush.msra.mxu0 0.0
    %613 = vmatpush.msra.mxu0 0.0
    %614 = vmatpush.msra.mxu0 0.0
    %615 = vmatpush.msra.mxu0 0.0
    %616 = vmatpush.msra.mxu0 0.0
    %617 = vmatpush.msra.mxu0 0.0
    %618 = vmatpush.msra.mxu0 %v606
    %619 = vmatpush.msra.mxu0 %v604
    %620 = vmatpush.msra.mxu0 %v602
    %621 = vmatpush.msra.mxu0 %v600
    %622 = vmatpush.msra.mxu0 %v598
    %623 = vmatpush.msra.mxu0 %v596
    %624 = vmatpush.msra.mxu0 %v594
    %625 = vmatpush.msra.mxu0 %v592
    %626 = vmatmul.f32.gmra.mxu0 %v608
    %v627 = vpop.f32.mrf.mxu0
    %v628 = vadd.f32 0.0, %v627
    %629 = vdwg.mxu0
    %630 = vmatpush.msra.mxu0 0.0
    %631 = vmatpush.msra.mxu0 0.0
    %632 = vmatpush.msra.mxu0 0.0
    %633 = vmatpush.msra.mxu0 0.0
    %634 = vmatpush.msra.mxu0 0.0
    %635 = vmatpush.msra.mxu0 0.0
    %636 = vmatpush.msra.mxu0 0.0
    %637 = vmatpush.msra.mxu0 0.0
    %638 = vmatpush.msra.mxu0 %v607
    %639 = vmatpush.msra.mxu0 %v605
    %640 = vmatpush.msra.mxu0 %v603
    %641 = vmatpush.msra.mxu0 %v601
    %642 = vmatpush.msra.mxu0 %v599
    %643 = vmatpush.msra.mxu0 %v597
    %644 = vmatpush.msra.mxu0 %v595
    %645 = vmatpush.msra.mxu0 %v593
    %646 = vmatmul.f32.gmra.mxu0 %v608
    %v647 = vpop.f32.mrf.mxu0
    %v648 = vadd.f32 0.0, %v647
    %649 = vdwg.mxu0
    %s650 = scalar_lea.vmem [#allocation3], 64
    %v651 = vld [vmem:[%s650] sm:$0xff]
    %v652 = vld [vmem:[%s650 + $0x8] sm:$0xff]
    %v653 = vadd.f32 %v651, %v628
    %v654 = vxor.u32 %v653, 2147483648
    %v655 = vmul.f32 %v654, 1.442695
    %v656 = vpow.pop %v655
    %v657 = vadd.f32 %v656, 1.0
    %v658 = vrcp.pop %v657
    %v659 = vmul.f32 %v657, %v658
    %v660 = vsub.f32 1.0, %v659
    %v661 = vmul.f32 %v658, %v660
    %v662 = vadd.f32 %v658, %v661
    %vm663 = vweird.f32 %v657
    %vm664 = vweird.f32 %v658
    %vm665 = vmor %vm663, %vm664
    %v666 = vsel %vm665, %v658, %v662
    %v667 = vand.u32 2147483647, %v657
    %vm668 = vcmp.eq.f32.partialorder %v667, 8.507059e+37
    %v669 = vand.u32 %v657, 2147483648
    %v670 = vor.u32 1.1754944e-38, %v669
    %v671 = vsel %vm668, %v670, %v666
    %v672 = vmul.f32 1.0, %v671
    %v673 = vld [vmem:[%s4] sm:$0x1]
    %v675 = vperm.slane %v673, 0
    %v677 = vadd.f32 %v648, %v675
    %v678 = vmul.f32 %v672, %v677
    %v679 = vadd.f32 %v652, %v678
    %v680 = vtanh.pop %v679
    %v681 = vsub.f32 1.0, %v672
    %683 = vrot.lane.b32.xlu0 %v680, 64
    %v684 = vpop.permute.xlu0 %683
    %v686 = vmul.f32 %v681, %v684
    %v687 = vmul.f32 %v672, %v585
    %v688 = vadd.f32 %v686, %v687
    %690 = vrot.lane.b32.xlu0 %v688, 64
    %v691 = vpop.permute.xlu0 %690
    %s693 = scalar_lea.vmem [#allocation2], 32
    %694 = vst.msk [vmem:[%s693] sm:$0xff] %vm165, %v691
    %v695 = vld [vmem:[%s2] sm:$0xff]
    %v696 = vld [vmem:[%s2 + $0x8] sm:$0xff]
    %v697 = vld [vmem:[%s2 + $0x10] sm:$0xff]
    %v698 = vld [vmem:[%s2 + $0x18] sm:$0xff]
    %v699 = vld [vmem:[%s2 + $0x20] sm:$0xff]
    %v700 = vld [vmem:[%s2 + $0x28] sm:$0xff]
    %v701 = vld [vmem:[%s2 + $0x30] sm:$0xff]
    %v702 = vld [vmem:[%s2 + $0x38] sm:$0xff]
    %v703 = vld [vmem:[%s2 + $0x40] sm:$0xff]
    %v704 = vld [vmem:[%s2 + $0x48] sm:$0xff]
    %v705 = vld [vmem:[%s2 + $0x50] sm:$0xff]
    %v706 = vld [vmem:[%s2 + $0x58] sm:$0xff]
    %v707 = vld [vmem:[%s2 + $0x60] sm:$0xff]
    %v708 = vld [vmem:[%s2 + $0x68] sm:$0xff]
    %v709 = vld [vmem:[%s2 + $0x70] sm:$0xff]
    %v710 = vld [vmem:[%s2 + $0x78] sm:$0xff]
    %v711 = vsel %vm165, %v691, 0
    %713 = vmatpush.msra.mxu0 0.0
    %714 = vmatpush.msra.mxu0 0.0
    %715 = vmatpush.msra.mxu0 0.0
    %716 = vmatpush.msra.mxu0 0.0
    %717 = vmatpush.msra.mxu0 0.0
    %718 = vmatpush.msra.mxu0 0.0
    %719 = vmatpush.msra.mxu0 0.0
    %720 = vmatpush.msra.mxu0 0.0
    %721 = vmatpush.msra.mxu0 %v709
    %722 = vmatpush.msra.mxu0 %v707
    %723 = vmatpush.msra.mxu0 %v705
    %724 = vmatpush.msra.mxu0 %v703
    %725 = vmatpush.msra.mxu0 %v701
    %726 = vmatpush.msra.mxu0 %v699
    %727 = vmatpush.msra.mxu0 %v697
    %728 = vmatpush.msra.mxu0 %v695
    %729 = vmatmul.f32.gmra.mxu0 %v711
    %v730 = vpop.f32.mrf.mxu0
    %v731 = vadd.f32 0.0, %v730
    %732 = vdwg.mxu0
    %733 = vmatpush.msra.mxu0 0.0
    %734 = vmatpush.msra.mxu0 0.0
    %735 = vmatpush.msra.mxu0 0.0
    %736 = vmatpush.msra.mxu0 0.0
    %737 = vmatpush.msra.mxu0 0.0
    %738 = vmatpush.msra.mxu0 0.0
    %739 = vmatpush.msra.mxu0 0.0
    %740 = vmatpush.msra.mxu0 0.0
    %741 = vmatpush.msra.mxu0 %v710
    %742 = vmatpush.msra.mxu0 %v708
    %743 = vmatpush.msra.mxu0 %v706
    %744 = vmatpush.msra.mxu0 %v704
    %745 = vmatpush.msra.mxu0 %v702
    %746 = vmatpush.msra.mxu0 %v700
    %747 = vmatpush.msra.mxu0 %v698
    %748 = vmatpush.msra.mxu0 %v696
    %749 = vmatmul.f32.gmra.mxu0 %v711
    %v750 = vpop.f32.mrf.mxu0
    %v751 = vadd.f32 0.0, %v750
    %752 = vdwg.mxu0
    %s753 = scalar_lea.vmem [#allocation3], 80
    %v754 = vld [vmem:[%s753] sm:$0xff]
    %v755 = vld [vmem:[%s753 + $0x8] sm:$0xff]
    %v756 = vadd.f32 %v754, %v731
    %v757 = vxor.u32 %v756, 2147483648
    %v758 = vmul.f32 %v757, 1.442695
    %v759 = vpow.pop %v758
    %v760 = vadd.f32 %v759, 1.0
    %v761 = vrcp.pop %v760
    %v762 = vmul.f32 %v760, %v761
    %v763 = vsub.f32 1.0, %v762
    %v764 = vmul.f32 %v761, %v763
    %v765 = vadd.f32 %v761, %v764
    %vm766 = vweird.f32 %v760
    %vm767 = vweird.f32 %v761
    %vm768 = vmor %vm766, %vm767
    %v769 = vsel %vm768, %v761, %v765
    %v770 = vand.u32 2147483647, %v760
    %vm771 = vcmp.eq.f32.partialorder %v770, 8.507059e+37
    %v772 = vand.u32 %v760, 2147483648
    %v773 = vor.u32 1.1754944e-38, %v772
    %v774 = vsel %vm771, %v773, %v769
    %v775 = vmul.f32 1.0, %v774
    %v776 = vld [vmem:[%s4] sm:$0x1]
    %v778 = vperm.slane %v776, 0
    %v780 = vadd.f32 %v751, %v778
    %v781 = vmul.f32 %v775, %v780
    %v782 = vadd.f32 %v755, %v781
    %v783 = vtanh.pop %v782
    %v784 = vsub.f32 1.0, %v775
    %786 = vrot.lane.b32.xlu0 %v783, 64
    %v787 = vpop.permute.xlu0 %786
    %v789 = vmul.f32 %v784, %v787
    %v790 = vmul.f32 %v775, %v688
    %v791 = vadd.f32 %v789, %v790
    %793 = vrot.lane.b32.xlu0 %v791, 64
    %v794 = vpop.permute.xlu0 %793
    %s796 = scalar_lea.vmem [#allocation2], 40
    %797 = vst.msk [vmem:[%s796] sm:$0xff] %vm165, %v794
    %v798 = vld [vmem:[%s2] sm:$0xff]
    %v799 = vld [vmem:[%s2 + $0x8] sm:$0xff]
    %v800 = vld [vmem:[%s2 + $0x10] sm:$0xff]
    %v801 = vld [vmem:[%s2 + $0x18] sm:$0xff]
    %v802 = vld [vmem:[%s2 + $0x20] sm:$0xff]
    %v803 = vld [vmem:[%s2 + $0x28] sm:$0xff]
    %v804 = vld [vmem:[%s2 + $0x30] sm:$0xff]
    %v805 = vld [vmem:[%s2 + $0x38] sm:$0xff]
    %v806 = vld [vmem:[%s2 + $0x40] sm:$0xff]
    %v807 = vld [vmem:[%s2 + $0x48] sm:$0xff]
    %v808 = vld [vmem:[%s2 + $0x50] sm:$0xff]
    %v809 = vld [vmem:[%s2 + $0x58] sm:$0xff]
    %v810 = vld [vmem:[%s2 + $0x60] sm:$0xff]
    %v811 = vld [vmem:[%s2 + $0x68] sm:$0xff]
    %v812 = vld [vmem:[%s2 + $0x70] sm:$0xff]
    %v813 = vld [vmem:[%s2 + $0x78] sm:$0xff]
    %v814 = vsel %vm165, %v794, 0
    %816 = vmatpush.msra.mxu0 0.0
    %817 = vmatpush.msra.mxu0 0.0
    %818 = vmatpush.msra.mxu0 0.0
    %819 = vmatpush.msra.mxu0 0.0
    %820 = vmatpush.msra.mxu0 0.0
    %821 = vmatpush.msra.mxu0 0.0
    %822 = vmatpush.msra.mxu0 0.0
    %823 = vmatpush.msra.mxu0 0.0
    %824 = vmatpush.msra.mxu0 %v812
    %825 = vmatpush.msra.mxu0 %v810
    %826 = vmatpush.msra.mxu0 %v808
    %827 = vmatpush.msra.mxu0 %v806
    %828 = vmatpush.msra.mxu0 %v804
    %829 = vmatpush.msra.mxu0 %v802
    %830 = vmatpush.msra.mxu0 %v800
    %831 = vmatpush.msra.mxu0 %v798
    %832 = vmatmul.f32.gmra.mxu0 %v814
    %v833 = vpop.f32.mrf.mxu0
    %v834 = vadd.f32 0.0, %v833
    %835 = vdwg.mxu0
    %836 = vmatpush.msra.mxu0 0.0
    %837 = vmatpush.msra.mxu0 0.0
    %838 = vmatpush.msra.mxu0 0.0
    %839 = vmatpush.msra.mxu0 0.0
    %840 = vmatpush.msra.mxu0 0.0
    %841 = vmatpush.msra.mxu0 0.0
    %842 = vmatpush.msra.mxu0 0.0
    %843 = vmatpush.msra.mxu0 0.0
    %844 = vmatpush.msra.mxu0 %v813
    %845 = vmatpush.msra.mxu0 %v811
    %846 = vmatpush.msra.mxu0 %v809
    %847 = vmatpush.msra.mxu0 %v807
    %848 = vmatpush.msra.mxu0 %v805
    %849 = vmatpush.msra.mxu0 %v803
    %850 = vmatpush.msra.mxu0 %v801
    %851 = vmatpush.msra.mxu0 %v799
    %852 = vmatmul.f32.gmra.mxu0 %v814
    %v853 = vpop.f32.mrf.mxu0
    %v854 = vadd.f32 0.0, %v853
    %855 = vdwg.mxu0
    %s856 = scalar_lea.vmem [#allocation3], 96
    %v857 = vld [vmem:[%s856] sm:$0xff]
    %v858 = vld [vmem:[%s856 + $0x8] sm:$0xff]
    %v859 = vadd.f32 %v857, %v834
    %v860 = vxor.u32 %v859, 2147483648
    %v861 = vmul.f32 %v860, 1.442695
    %v862 = vpow.pop %v861
    %v863 = vadd.f32 %v862, 1.0
    %v864 = vrcp.pop %v863
    %v865 = vmul.f32 %v863, %v864
    %v866 = vsub.f32 1.0, %v865
    %v867 = vmul.f32 %v864, %v866
    %v868 = vadd.f32 %v864, %v867
    %vm869 = vweird.f32 %v863
    %vm870 = vweird.f32 %v864
    %vm871 = vmor %vm869, %vm870
    %v872 = vsel %vm871, %v864, %v868
    %v873 = vand.u32 2147483647, %v863
    %vm874 = vcmp.eq.f32.partialorder %v873, 8.507059e+37
    %v875 = vand.u32 %v863, 2147483648
    %v876 = vor.u32 1.1754944e-38, %v875
    %v877 = vsel %vm874, %v876, %v872
    %v878 = vmul.f32 1.0, %v877
    %v879 = vld [vmem:[%s4] sm:$0x1]
    %v881 = vperm.slane %v879, 0
    %v883 = vadd.f32 %v854, %v881
    %v884 = vmul.f32 %v878, %v883
    %v885 = vadd.f32 %v858, %v884
    %v886 = vtanh.pop %v885
    %v887 = vsub.f32 1.0, %v878
    %889 = vrot.lane.b32.xlu0 %v886, 64
    %v890 = vpop.permute.xlu0 %889
    %v892 = vmul.f32 %v887, %v890
    %v893 = vmul.f32 %v878, %v791
    %v894 = vadd.f32 %v892, %v893
    %896 = vrot.lane.b32.xlu0 %v894, 64
    %v897 = vpop.permute.xlu0 %896
    %s899 = scalar_lea.vmem [#allocation2], 48
    %900 = vst.msk [vmem:[%s899] sm:$0xff] %vm165, %v897
    %v901 = vld [vmem:[%s2] sm:$0xff]
    %v902 = vld [vmem:[%s2 + $0x8] sm:$0xff]
    %v903 = vld [vmem:[%s2 + $0x10] sm:$0xff]
    %v904 = vld [vmem:[%s2 + $0x18] sm:$0xff]
    %v905 = vld [vmem:[%s2 + $0x20] sm:$0xff]
    %v906 = vld [vmem:[%s2 + $0x28] sm:$0xff]
    %v907 = vld [vmem:[%s2 + $0x30] sm:$0xff]
    %v908 = vld [vmem:[%s2 + $0x38] sm:$0xff]
    %v909 = vld [vmem:[%s2 + $0x40] sm:$0xff]
    %v910 = vld [vmem:[%s2 + $0x48] sm:$0xff]
    %v911 = vld [vmem:[%s2 + $0x50] sm:$0xff]
    %v912 = vld [vmem:[%s2 + $0x58] sm:$0xff]
    %v913 = vld [vmem:[%s2 + $0x60] sm:$0xff]
    %v914 = vld [vmem:[%s2 + $0x68] sm:$0xff]
    %v915 = vld [vmem:[%s2 + $0x70] sm:$0xff]
    %v916 = vld [vmem:[%s2 + $0x78] sm:$0xff]
    %v917 = vsel %vm165, %v897, 0
    %919 = vmatpush.msra.mxu0 0.0
    %920 = vmatpush.msra.mxu0 0.0
    %921 = vmatpush.msra.mxu0 0.0
    %922 = vmatpush.msra.mxu0 0.0
    %923 = vmatpush.msra.mxu0 0.0
    %924 = vmatpush.msra.mxu0 0.0
    %925 = vmatpush.msra.mxu0 0.0
    %926 = vmatpush.msra.mxu0 0.0
    %927 = vmatpush.msra.mxu0 %v915
    %928 = vmatpush.msra.mxu0 %v913
    %929 = vmatpush.msra.mxu0 %v911
    %930 = vmatpush.msra.mxu0 %v909
    %931 = vmatpush.msra.mxu0 %v907
    %932 = vmatpush.msra.mxu0 %v905
    %933 = vmatpush.msra.mxu0 %v903
    %934 = vmatpush.msra.mxu0 %v901
    %935 = vmatmul.f32.gmra.mxu0 %v917
    %v936 = vpop.f32.mrf.mxu0
    %v937 = vadd.f32 0.0, %v936
    %938 = vdwg.mxu0
    %939 = vmatpush.msra.mxu0 0.0
    %940 = vmatpush.msra.mxu0 0.0
    %941 = vmatpush.msra.mxu0 0.0
    %942 = vmatpush.msra.mxu0 0.0
    %943 = vmatpush.msra.mxu0 0.0
    %944 = vmatpush.msra.mxu0 0.0
    %945 = vmatpush.msra.mxu0 0.0
    %946 = vmatpush.msra.mxu0 0.0
    %947 = vmatpush.msra.mxu0 %v916
    %948 = vmatpush.msra.mxu0 %v914
    %949 = vmatpush.msra.mxu0 %v912
    %950 = vmatpush.msra.mxu0 %v910
    %951 = vmatpush.msra.mxu0 %v908
    %952 = vmatpush.msra.mxu0 %v906
    %953 = vmatpush.msra.mxu0 %v904
    %954 = vmatpush.msra.mxu0 %v902
    %955 = vmatmul.f32.gmra.mxu0 %v917
    %v956 = vpop.f32.mrf.mxu0
    %v957 = vadd.f32 0.0, %v956
    %958 = vdwg.mxu0
    %s959 = scalar_lea.vmem [#allocation3], 112
    %v960 = vld [vmem:[%s959] sm:$0xff]
    %v961 = vld [vmem:[%s959 + $0x8] sm:$0xff]
    %v962 = vadd.f32 %v960, %v937
    %v963 = vxor.u32 %v962, 2147483648
    %v964 = vmul.f32 %v963, 1.442695
    %v965 = vpow.pop %v964
    %v966 = vadd.f32 %v965, 1.0
    %v967 = vrcp.pop %v966
    %v968 = vmul.f32 %v966, %v967
    %v969 = vsub.f32 1.0, %v968
    %v970 = vmul.f32 %v967, %v969
    %v971 = vadd.f32 %v967, %v970
    %vm972 = vweird.f32 %v966
    %vm973 = vweird.f32 %v967
    %vm974 = vmor %vm972, %vm973
    %v975 = vsel %vm974, %v967, %v971
    %v976 = vand.u32 2147483647, %v966
    %vm977 = vcmp.eq.f32.partialorder %v976, 8.507059e+37
    %v978 = vand.u32 %v966, 2147483648
    %v979 = vor.u32 1.1754944e-38, %v978
    %v980 = vsel %vm977, %v979, %v975
    %v981 = vmul.f32 1.0, %v980
    %v982 = vld [vmem:[%s4] sm:$0x1]
    %v984 = vperm.slane %v982, 0
    %v986 = vadd.f32 %v957, %v984
    %v987 = vmul.f32 %v981, %v986
    %v988 = vadd.f32 %v961, %v987
    %v989 = vtanh.pop %v988
    %v990 = vsub.f32 1.0, %v981
    %992 = vrot.lane.b32.xlu0 %v989, 64
    %v993 = vpop.permute.xlu0 %992
    %v995 = vmul.f32 %v990, %v993
    %v996 = vmul.f32 %v981, %v894
    %v997 = vadd.f32 %v995, %v996
    %999 = vrot.lane.b32.xlu0 %v997, 64
    %v1000 = vpop.permute.xlu0 %999
    %s1002 = scalar_lea.vmem [#allocation2], 56
    %1003 = vst.msk [vmem:[%s1002] sm:$0xff] %vm165, %v1000
    %1004 = vst.msk [vmem:[#allocation4] sm:$0xff] %vm165, %v1000
    %v1005 = vld [vmem:[#allocation2] sm:$0xff]
    %v1006 = vld [vmem:[#allocation2 + $0x8] sm:$0xff]
    %v1007 = vld [vmem:[#allocation2 + $0x10] sm:$0xff]
    %v1008 = vld [vmem:[#allocation2 + $0x18] sm:$0xff]
    %v1009 = vld [vmem:[#allocation2 + $0x20] sm:$0xff]
    %v1010 = vld [vmem:[#allocation2 + $0x28] sm:$0xff]
    %v1011 = vld [vmem:[#allocation2 + $0x30] sm:$0xff]
    %v1012 = vld [vmem:[#allocation2 + $0x38] sm:$0xff]
    %v1013 = vld [vmem:[%s5] sm:$0xff]
    %v1014 = vld [vmem:[%s5 + $0x8] sm:$0xff]
    %v1015 = vld [vmem:[%s5 + $0x10] sm:$0xff]
    %v1016 = vld [vmem:[%s5 + $0x18] sm:$0xff]
    %v1017 = vld [vmem:[%s5 + $0x20] sm:$0xff]
    %v1018 = vld [vmem:[%s5 + $0x28] sm:$0xff]
    %v1019 = vld [vmem:[%s5 + $0x30] sm:$0xff]
    %v1020 = vld [vmem:[%s5 + $0x38] sm:$0xff]
    %v1021 = vld [vmem:[%s5 + $0x40] sm:$0xff]
    %v1022 = vld [vmem:[%s5 + $0x48] sm:$0xff]
    %v1023 = vld [vmem:[%s5 + $0x50] sm:$0xff]
    %v1024 = vld [vmem:[%s5 + $0x58] sm:$0xff]
    %v1025 = vld [vmem:[%s5 + $0x60] sm:$0xff]
    %v1026 = vld [vmem:[%s5 + $0x68] sm:$0xff]
    %v1027 = vld [vmem:[%s5 + $0x70] sm:$0xff]
    %v1028 = vld [vmem:[%s5 + $0x78] sm:$0xff]
    %v1029 = vld [vmem:[%s7] sm:$0x3]
    %v1031 = vperm.slane %v1029, 0
    %v1032 = vperm.slane %v1029, 1
    %v1036 = vsel %vm165, %v1005, 0
    %v1039 = vsel %vm165, %v1006, 0
    %v1042 = vsel %vm165, %v1007, 0
    %v1045 = vsel %vm165, %v1008, 0
    %v1048 = vsel %vm165, %v1009, 0
    %v1051 = vsel %vm165, %v1010, 0
    %v1054 = vsel %vm165, %v1011, 0
    %v1057 = vsel %vm165, %v1012, 0
    %1059 = vmatpush.msra.mxu0 0.0
    %1060 = vmatpush.msra.mxu0 0.0
    %1061 = vmatpush.msra.mxu0 0.0
    %1062 = vmatpush.msra.mxu0 0.0
    %1063 = vmatpush.msra.mxu0 0.0
    %1064 = vmatpush.msra.mxu0 0.0
    %1065 = vmatpush.msra.mxu0 0.0
    %1066 = vmatpush.msra.mxu0 0.0
    %1067 = vmatpush.msra.mxu0 %v1027
    %1068 = vmatpush.msra.mxu0 %v1025
    %1069 = vmatpush.msra.mxu0 %v1023
    %1070 = vmatpush.msra.mxu0 %v1021
    %1071 = vmatpush.msra.mxu0 %v1019
    %1072 = vmatpush.msra.mxu0 %v1017
    %1073 = vmatpush.msra.mxu0 %v1015
    %1074 = vmatpush.msra.mxu0 %v1013
    %1075 = vmatmul.f32.gmra.mxu0 %v1036
    %v1076 = vpop.f32.mrf.mxu0
    %v1077 = vadd.f32 %v1031, %v1076
    %1078 = vmatmul.f32.gmra.mxu0 %v1039
    %v1079 = vpop.f32.mrf.mxu0
    %v1080 = vadd.f32 %v1031, %v1079
    %1081 = vmatmul.f32.gmra.mxu0 %v1042
    %v1082 = vpop.f32.mrf.mxu0
    %v1083 = vadd.f32 %v1031, %v1082
    %1084 = vmatmul.f32.gmra.mxu0 %v1045
    %v1085 = vpop.f32.mrf.mxu0
    %v1086 = vadd.f32 %v1031, %v1085
    %1087 = vmatmul.f32.gmra.mxu0 %v1048
    %v1088 = vpop.f32.mrf.mxu0
    %v1089 = vadd.f32 %v1031, %v1088
    %1090 = vmatmul.f32.gmra.mxu0 %v1051
    %v1091 = vpop.f32.mrf.mxu0
    %v1092 = vadd.f32 %v1031, %v1091
    %1093 = vmatmul.f32.gmra.mxu0 %v1054
    %v1094 = vpop.f32.mrf.mxu0
    %v1095 = vadd.f32 %v1031, %v1094
    %1096 = vmatmul.f32.gmra.mxu0 %v1057
    %v1097 = vpop.f32.mrf.mxu0
    %v1098 = vadd.f32 %v1031, %v1097
    %1099 = vdwg.mxu0
    %1100 = vmatpush.msra.mxu0 0.0
    %1101 = vmatpush.msra.mxu0 0.0
    %1102 = vmatpush.msra.mxu0 0.0
    %1103 = vmatpush.msra.mxu0 0.0
    %1104 = vmatpush.msra.mxu0 0.0
    %1105 = vmatpush.msra.mxu0 0.0
    %1106 = vmatpush.msra.mxu0 0.0
    %1107 = vmatpush.msra.mxu0 0.0
    %1108 = vmatpush.msra.mxu0 %v1028
    %1109 = vmatpush.msra.mxu0 %v1026
    %1110 = vmatpush.msra.mxu0 %v1024
    %1111 = vmatpush.msra.mxu0 %v1022
    %1112 = vmatpush.msra.mxu0 %v1020
    %1113 = vmatpush.msra.mxu0 %v1018
    %1114 = vmatpush.msra.mxu0 %v1016
    %1115 = vmatpush.msra.mxu0 %v1014
    %1116 = vmatmul.f32.gmra.mxu0 %v1036
    %v1117 = vpop.f32.mrf.mxu0
    %v1118 = vadd.f32 %v1032, %v1117
    %1119 = vmatmul.f32.gmra.mxu0 %v1039
    %v1120 = vpop.f32.mrf.mxu0
    %v1121 = vadd.f32 %v1032, %v1120
    %1122 = vmatmul.f32.gmra.mxu0 %v1042
    %v1123 = vpop.f32.mrf.mxu0
    %v1124 = vadd.f32 %v1032, %v1123
    %1125 = vmatmul.f32.gmra.mxu0 %v1045
    %v1126 = vpop.f32.mrf.mxu0
    %v1127 = vadd.f32 %v1032, %v1126
    %1128 = vmatmul.f32.gmra.mxu0 %v1048
    %v1129 = vpop.f32.mrf.mxu0
    %v1130 = vadd.f32 %v1032, %v1129
    %1131 = vmatmul.f32.gmra.mxu0 %v1051
    %v1132 = vpop.f32.mrf.mxu0
    %v1133 = vadd.f32 %v1032, %v1132
    %1134 = vmatmul.f32.gmra.mxu0 %v1054
    %v1135 = vpop.f32.mrf.mxu0
    %v1136 = vadd.f32 %v1032, %v1135
    %1137 = vmatmul.f32.gmra.mxu0 %v1057
    %v1138 = vpop.f32.mrf.mxu0
    %v1139 = vadd.f32 %v1032, %v1138
    %1140 = vdwg.mxu0
    %1141 = vst [vmem:[#allocation3] sm:$0xff] %v1077
    %1142 = vst.msk [vmem:[#allocation3 + $0x8] sm:$0xff] %vm165, %v1118
    %1143 = vst [vmem:[#allocation3 + $0x10] sm:$0xff] %v1080
    %1144 = vst.msk [vmem:[#allocation3 + $0x18] sm:$0xff] %vm165, %v1121
    %1145 = vst [vmem:[#allocation3 + $0x20] sm:$0xff] %v1083
    %1146 = vst.msk [vmem:[#allocation3 + $0x28] sm:$0xff] %vm165, %v1124
    %1147 = vst [vmem:[#allocation3 + $0x30] sm:$0xff] %v1086
    %1148 = vst.msk [vmem:[#allocation3 + $0x38] sm:$0xff] %vm165, %v1127
    %1149 = vst [vmem:[#allocation3 + $0x40] sm:$0xff] %v1089
    %1150 = vst.msk [vmem:[#allocation3 + $0x48] sm:$0xff] %vm165, %v1130
    %1151 = vst [vmem:[#allocation3 + $0x50] sm:$0xff] %v1092
    %1152 = vst.msk [vmem:[#allocation3 + $0x58] sm:$0xff] %vm165, %v1133
    %1153 = vst [vmem:[#allocation3 + $0x60] sm:$0xff] %v1095
    %1154 = vst.msk [vmem:[#allocation3 + $0x68] sm:$0xff] %vm165, %v1136
    %1155 = vst [vmem:[#allocation3 + $0x70] sm:$0xff] %v1098
    %1156 = vst.msk [vmem:[#allocation3 + $0x78] sm:$0xff] %vm165, %v1139
    %v1157 = vld [vmem:[%s6] sm:$0xff]
    %v1158 = vld [vmem:[%s6 + $0x8] sm:$0xff]
    %v1159 = vld [vmem:[%s6 + $0x10] sm:$0xff]
    %v1160 = vld [vmem:[%s6 + $0x18] sm:$0xff]
    %v1161 = vld [vmem:[%s6 + $0x20] sm:$0xff]
    %v1162 = vld [vmem:[%s6 + $0x28] sm:$0xff]
    %v1163 = vld [vmem:[%s6 + $0x30] sm:$0xff]
    %v1164 = vld [vmem:[%s6 + $0x38] sm:$0xff]
    %v1165 = vld [vmem:[%s6 + $0x40] sm:$0xff]
    %v1166 = vld [vmem:[%s6 + $0x48] sm:$0xff]
    %v1167 = vld [vmem:[%s6 + $0x50] sm:$0xff]
    %v1168 = vld [vmem:[%s6 + $0x58] sm:$0xff]
    %v1169 = vld [vmem:[%s6 + $0x60] sm:$0xff]
    %v1170 = vld [vmem:[%s6 + $0x68] sm:$0xff]
    %v1171 = vld [vmem:[%s6 + $0x70] sm:$0xff]
    %v1172 = vld [vmem:[%s6 + $0x78] sm:$0xff]
    %1173 = vmatpush.msra.mxu0 0.0
    %1174 = vmatpush.msra.mxu0 0.0
    %1175 = vmatpush.msra.mxu0 0.0
    %1176 = vmatpush.msra.mxu0 0.0
    %1177 = vmatpush.msra.mxu0 0.0
    %1178 = vmatpush.msra.mxu0 0.0
    %1179 = vmatpush.msra.mxu0 0.0
    %1180 = vmatpush.msra.mxu0 0.0
    %1181 = vmatpush.msra.mxu0 %v1171
    %1182 = vmatpush.msra.mxu0 %v1169
    %1183 = vmatpush.msra.mxu0 %v1167
    %1184 = vmatpush.msra.mxu0 %v1165
    %1185 = vmatpush.msra.mxu0 %v1163
    %1186 = vmatpush.msra.mxu0 %v1161
    %1187 = vmatpush.msra.mxu0 %v1159
    %1188 = vmatpush.msra.mxu0 %v1157
    %1189 = vmatmul.f32.gmra.mxu0 %v198
    %v1190 = vpop.f32.mrf.mxu0
    %v1191 = vadd.f32 0.0, %v1190
    %1192 = vdwg.mxu0
    %1193 = vmatpush.msra.mxu0 0.0
    %1194 = vmatpush.msra.mxu0 0.0
    %1195 = vmatpush.msra.mxu0 0.0
    %1196 = vmatpush.msra.mxu0 0.0
    %1197 = vmatpush.msra.mxu0 0.0
    %1198 = vmatpush.msra.mxu0 0.0
    %1199 = vmatpush.msra.mxu0 0.0
    %1200 = vmatpush.msra.mxu0 0.0
    %1201 = vmatpush.msra.mxu0 %v1172
    %1202 = vmatpush.msra.mxu0 %v1170
    %1203 = vmatpush.msra.mxu0 %v1168
    %1204 = vmatpush.msra.mxu0 %v1166
    %1205 = vmatpush.msra.mxu0 %v1164
    %1206 = vmatpush.msra.mxu0 %v1162
    %1207 = vmatpush.msra.mxu0 %v1160
    %1208 = vmatpush.msra.mxu0 %v1158
    %1209 = vmatmul.f32.gmra.mxu0 %v198
    %v1210 = vpop.f32.mrf.mxu0
    %v1211 = vadd.f32 0.0, %v1210
    %1212 = vdwg.mxu0
    %v1213 = vld [vmem:[#allocation3] sm:$0xff]
    %v1214 = vld [vmem:[#allocation3 + $0x8] sm:$0xff]
    %v1215 = vadd.f32 %v1213, %v1191
    %v1216 = vxor.u32 %v1215, 2147483648
    %v1217 = vmul.f32 %v1216, 1.442695
    %v1218 = vpow.pop %v1217
    %v1219 = vadd.f32 %v1218, 1.0
    %v1220 = vrcp.pop %v1219
    %v1221 = vmul.f32 %v1219, %v1220
    %v1222 = vsub.f32 1.0, %v1221
    %v1223 = vmul.f32 %v1220, %v1222
    %v1224 = vadd.f32 %v1220, %v1223
    %vm1225 = vweird.f32 %v1219
    %vm1226 = vweird.f32 %v1220
    %vm1227 = vmor %vm1225, %vm1226
    %v1228 = vsel %vm1227, %v1220, %v1224
    %v1229 = vand.u32 2147483647, %v1219
    %vm1230 = vcmp.eq.f32.partialorder %v1229, 8.507059e+37
    %v1231 = vand.u32 %v1219, 2147483648
    %v1232 = vor.u32 1.1754944e-38, %v1231
    %v1233 = vsel %vm1230, %v1232, %v1228
    %v1234 = vmul.f32 1.0, %v1233
    %v1235 = vld [vmem:[%s8] sm:$0x1]
    %v1237 = vperm.slane %v1235, 0
    %v1239 = vadd.f32 %v1211, %v1237
    %v1240 = vmul.f32 %v1234, %v1239
    %v1241 = vadd.f32 %v1214, %v1240
    %v1242 = vtanh.pop %v1241
    %v1243 = vsub.f32 1.0, %v1234
    %1245 = vrot.lane.b32.xlu0 %v1242, 64
    %v1246 = vpop.permute.xlu0 %1245
    %v1248 = vmul.f32 %v1243, %v1246
    %v1249 = vmul.f32 %v1234, 0.0
    %v1250 = vadd.f32 %v1248, %v1249
    %1252 = vrot.lane.b32.xlu0 %v1250, 64
    %v1253 = vpop.permute.xlu0 %1252
    %1255 = vst.msk [vmem:[%s9] sm:$0xff] %vm57, %v1253
    %s1256 = scalar_lea.vmem %s9, 56
    %vm1257 = vcmask 523520
    %1258 = vst.msk [vmem:[%s1256] sm:$0xff] %vm1257, %v1253
    %v1259 = vld [vmem:[%s6] sm:$0xff]
    %v1260 = vld [vmem:[%s6 + $0x8] sm:$0xff]
    %v1261 = vld [vmem:[%s6 + $0x10] sm:$0xff]
    %v1262 = vld [vmem:[%s6 + $0x18] sm:$0xff]
    %v1263 = vld [vmem:[%s6 + $0x20] sm:$0xff]
    %v1264 = vld [vmem:[%s6 + $0x28] sm:$0xff]
    %v1265 = vld [vmem:[%s6 + $0x30] sm:$0xff]
    %v1266 = vld [vmem:[%s6 + $0x38] sm:$0xff]
    %v1267 = vld [vmem:[%s6 + $0x40] sm:$0xff]
    %v1268 = vld [vmem:[%s6 + $0x48] sm:$0xff]
    %v1269 = vld [vmem:[%s6 + $0x50] sm:$0xff]
    %v1270 = vld [vmem:[%s6 + $0x58] sm:$0xff]
    %v1271 = vld [vmem:[%s6 + $0x60] sm:$0xff]
    %v1272 = vld [vmem:[%s6 + $0x68] sm:$0xff]
    %v1273 = vld [vmem:[%s6 + $0x70] sm:$0xff]
    %v1274 = vld [vmem:[%s6 + $0x78] sm:$0xff]
    %v1275 = vsel %vm165, %v1253, 0
    %1277 = vmatpush.msra.mxu0 0.0
    %1278 = vmatpush.msra.mxu0 0.0
    %1279 = vmatpush.msra.mxu0 0.0
    %1280 = vmatpush.msra.mxu0 0.0
    %1281 = vmatpush.msra.mxu0 0.0
    %1282 = vmatpush.msra.mxu0 0.0
    %1283 = vmatpush.msra.mxu0 0.0
    %1284 = vmatpush.msra.mxu0 0.0
    %1285 = vmatpush.msra.mxu0 %v1273
    %1286 = vmatpush.msra.mxu0 %v1271
    %1287 = vmatpush.msra.mxu0 %v1269
    %1288 = vmatpush.msra.mxu0 %v1267
    %1289 = vmatpush.msra.mxu0 %v1265
    %1290 = vmatpush.msra.mxu0 %v1263
    %1291 = vmatpush.msra.mxu0 %v1261
    %1292 = vmatpush.msra.mxu0 %v1259
    %1293 = vmatmul.f32.gmra.mxu0 %v1275
    %v1294 = vpop.f32.mrf.mxu0
    %v1295 = vadd.f32 0.0, %v1294
    %1296 = vdwg.mxu0
    %1297 = vmatpush.msra.mxu0 0.0
    %1298 = vmatpush.msra.mxu0 0.0
    %1299 = vmatpush.msra.mxu0 0.0
    %1300 = vmatpush.msra.mxu0 0.0
    %1301 = vmatpush.msra.mxu0 0.0
    %1302 = vmatpush.msra.mxu0 0.0
    %1303 = vmatpush.msra.mxu0 0.0
    %1304 = vmatpush.msra.mxu0 0.0
    %1305 = vmatpush.msra.mxu0 %v1274
    %1306 = vmatpush.msra.mxu0 %v1272
    %1307 = vmatpush.msra.mxu0 %v1270
    %1308 = vmatpush.msra.mxu0 %v1268
    %1309 = vmatpush.msra.mxu0 %v1266
    %1310 = vmatpush.msra.mxu0 %v1264
    %1311 = vmatpush.msra.mxu0 %v1262
    %1312 = vmatpush.msra.mxu0 %v1260
    %1313 = vmatmul.f32.gmra.mxu0 %v1275
    %v1314 = vpop.f32.mrf.mxu0
    %v1315 = vadd.f32 0.0, %v1314
    %1316 = vdwg.mxu0
    %v1317 = vld [vmem:[%s341] sm:$0xff]
    %v1318 = vld [vmem:[%s341 + $0x8] sm:$0xff]
    %v1319 = vadd.f32 %v1317, %v1295
    %v1320 = vxor.u32 %v1319, 2147483648
    %v1321 = vmul.f32 %v1320, 1.442695
    %v1322 = vpow.pop %v1321
    %v1323 = vadd.f32 %v1322, 1.0
    %v1324 = vrcp.pop %v1323
    %v1325 = vmul.f32 %v1323, %v1324
    %v1326 = vsub.f32 1.0, %v1325
    %v1327 = vmul.f32 %v1324, %v1326
    %v1328 = vadd.f32 %v1324, %v1327
    %vm1329 = vweird.f32 %v1323
    %vm1330 = vweird.f32 %v1324
    %vm1331 = vmor %vm1329, %vm1330
    %v1332 = vsel %vm1331, %v1324, %v1328
    %v1333 = vand.u32 2147483647, %v1323
    %vm1334 = vcmp.eq.f32.partialorder %v1333, 8.507059e+37
    %v1335 = vand.u32 %v1323, 2147483648
    %v1336 = vor.u32 1.1754944e-38, %v1335
    %v1337 = vsel %vm1334, %v1336, %v1332
    %v1338 = vmul.f32 1.0, %v1337
    %v1339 = vld [vmem:[%s8] sm:$0x1]
    %v1341 = vperm.slane %v1339, 0
    %v1343 = vadd.f32 %v1315, %v1341
    %v1344 = vmul.f32 %v1338, %v1343
    %v1345 = vadd.f32 %v1318, %v1344
    %v1346 = vtanh.pop %v1345
    %v1347 = vsub.f32 1.0, %v1338
    %1349 = vrot.lane.b32.xlu0 %v1346, 64
    %v1350 = vpop.permute.xlu0 %1349
    %v1352 = vmul.f32 %v1347, %v1350
    %v1353 = vmul.f32 %v1338, %v1250
    %v1354 = vadd.f32 %v1352, %v1353
    %1356 = vrot.lane.b32.xlu0 %v1354, 64
    %v1357 = vpop.permute.xlu0 %1356
    %s1359 = scalar_lea.vmem %s9, 8
    %1360 = vst.msk [vmem:[%s1359] sm:$0xff] %vm57, %v1357
    %s1361 = scalar_lea.vmem %s9, 48
    %1362 = vst.msk [vmem:[%s1361] sm:$0xff] %vm1257, %v1357
    %v1363 = vld [vmem:[%s6] sm:$0xff]
    %v1364 = vld [vmem:[%s6 + $0x8] sm:$0xff]
    %v1365 = vld [vmem:[%s6 + $0x10] sm:$0xff]
    %v1366 = vld [vmem:[%s6 + $0x18] sm:$0xff]
    %v1367 = vld [vmem:[%s6 + $0x20] sm:$0xff]
    %v1368 = vld [vmem:[%s6 + $0x28] sm:$0xff]
    %v1369 = vld [vmem:[%s6 + $0x30] sm:$0xff]
    %v1370 = vld [vmem:[%s6 + $0x38] sm:$0xff]
    %v1371 = vld [vmem:[%s6 + $0x40] sm:$0xff]
    %v1372 = vld [vmem:[%s6 + $0x48] sm:$0xff]
    %v1373 = vld [vmem:[%s6 + $0x50] sm:$0xff]
    %v1374 = vld [vmem:[%s6 + $0x58] sm:$0xff]
    %v1375 = vld [vmem:[%s6 + $0x60] sm:$0xff]
    %v1376 = vld [vmem:[%s6 + $0x68] sm:$0xff]
    %v1377 = vld [vmem:[%s6 + $0x70] sm:$0xff]
    %v1378 = vld [vmem:[%s6 + $0x78] sm:$0xff]
    %v1379 = vsel %vm165, %v1357, 0
    %1381 = vmatpush.msra.mxu0 0.0
    %1382 = vmatpush.msra.mxu0 0.0
    %1383 = vmatpush.msra.mxu0 0.0
    %1384 = vmatpush.msra.mxu0 0.0
    %1385 = vmatpush.msra.mxu0 0.0
    %1386 = vmatpush.msra.mxu0 0.0
    %1387 = vmatpush.msra.mxu0 0.0
    %1388 = vmatpush.msra.mxu0 0.0
    %1389 = vmatpush.msra.mxu0 %v1377
    %1390 = vmatpush.msra.mxu0 %v1375
    %1391 = vmatpush.msra.mxu0 %v1373
    %1392 = vmatpush.msra.mxu0 %v1371
    %1393 = vmatpush.msra.mxu0 %v1369
    %1394 = vmatpush.msra.mxu0 %v1367
    %1395 = vmatpush.msra.mxu0 %v1365
    %1396 = vmatpush.msra.mxu0 %v1363
    %1397 = vmatmul.f32.gmra.mxu0 %v1379
    %v1398 = vpop.f32.mrf.mxu0
    %v1399 = vadd.f32 0.0, %v1398
    %1400 = vdwg.mxu0
    %1401 = vmatpush.msra.mxu0 0.0
    %1402 = vmatpush.msra.mxu0 0.0
    %1403 = vmatpush.msra.mxu0 0.0
    %1404 = vmatpush.msra.mxu0 0.0
    %1405 = vmatpush.msra.mxu0 0.0
    %1406 = vmatpush.msra.mxu0 0.0
    %1407 = vmatpush.msra.mxu0 0.0
    %1408 = vmatpush.msra.mxu0 0.0
    %1409 = vmatpush.msra.mxu0 %v1378
    %1410 = vmatpush.msra.mxu0 %v1376
    %1411 = vmatpush.msra.mxu0 %v1374
    %1412 = vmatpush.msra.mxu0 %v1372
    %1413 = vmatpush.msra.mxu0 %v1370
    %1414 = vmatpush.msra.mxu0 %v1368
    %1415 = vmatpush.msra.mxu0 %v1366
    %1416 = vmatpush.msra.mxu0 %v1364
    %1417 = vmatmul.f32.gmra.mxu0 %v1379
    %v1418 = vpop.f32.mrf.mxu0
    %v1419 = vadd.f32 0.0, %v1418
    %1420 = vdwg.mxu0
    %v1421 = vld [vmem:[%s444] sm:$0xff]
    %v1422 = vld [vmem:[%s444 + $0x8] sm:$0xff]
    %v1423 = vadd.f32 %v1421, %v1399
    %v1424 = vxor.u32 %v1423, 2147483648
    %v1425 = vmul.f32 %v1424, 1.442695
    %v1426 = vpow.pop %v1425
    %v1427 = vadd.f32 %v1426, 1.0
    %v1428 = vrcp.pop %v1427
    %v1429 = vmul.f32 %v1427, %v1428
    %v1430 = vsub.f32 1.0, %v1429
    %v1431 = vmul.f32 %v1428, %v1430
    %v1432 = vadd.f32 %v1428, %v1431
    %vm1433 = vweird.f32 %v1427
    %vm1434 = vweird.f32 %v1428
    %vm1435 = vmor %vm1433, %vm1434
    %v1436 = vsel %vm1435, %v1428, %v1432
    %v1437 = vand.u32 2147483647, %v1427
    %vm1438 = vcmp.eq.f32.partialorder %v1437, 8.507059e+37
    %v1439 = vand.u32 %v1427, 2147483648
    %v1440 = vor.u32 1.1754944e-38, %v1439
    %v1441 = vsel %vm1438, %v1440, %v1436
    %v1442 = vmul.f32 1.0, %v1441
    %v1443 = vld [vmem:[%s8] sm:$0x1]
    %v1445 = vperm.slane %v1443, 0
    %v1447 = vadd.f32 %v1419, %v1445
    %v1448 = vmul.f32 %v1442, %v1447
    %v1449 = vadd.f32 %v1422, %v1448
    %v1450 = vtanh.pop %v1449
    %v1451 = vsub.f32 1.0, %v1442
    %1453 = vrot.lane.b32.xlu0 %v1450, 64
    %v1454 = vpop.permute.xlu0 %1453
    %v1456 = vmul.f32 %v1451, %v1454
    %v1457 = vmul.f32 %v1442, %v1354
    %v1458 = vadd.f32 %v1456, %v1457
    %1460 = vrot.lane.b32.xlu0 %v1458, 64
    %v1461 = vpop.permute.xlu0 %1460
    %s1463 = scalar_lea.vmem %s9, 16
    %1464 = vst.msk [vmem:[%s1463] sm:$0xff] %vm57, %v1461
    %s1465 = scalar_lea.vmem %s9, 40
    %1466 = vst.msk [vmem:[%s1465] sm:$0xff] %vm1257, %v1461
    %v1467 = vld [vmem:[%s6] sm:$0xff]
    %v1468 = vld [vmem:[%s6 + $0x8] sm:$0xff]
    %v1469 = vld [vmem:[%s6 + $0x10] sm:$0xff]
    %v1470 = vld [vmem:[%s6 + $0x18] sm:$0xff]
    %v1471 = vld [vmem:[%s6 + $0x20] sm:$0xff]
    %v1472 = vld [vmem:[%s6 + $0x28] sm:$0xff]
    %v1473 = vld [vmem:[%s6 + $0x30] sm:$0xff]
    %v1474 = vld [vmem:[%s6 + $0x38] sm:$0xff]
    %v1475 = vld [vmem:[%s6 + $0x40] sm:$0xff]
    %v1476 = vld [vmem:[%s6 + $0x48] sm:$0xff]
    %v1477 = vld [vmem:[%s6 + $0x50] sm:$0xff]
    %v1478 = vld [vmem:[%s6 + $0x58] sm:$0xff]
    %v1479 = vld [vmem:[%s6 + $0x60] sm:$0xff]
    %v1480 = vld [vmem:[%s6 + $0x68] sm:$0xff]
    %v1481 = vld [vmem:[%s6 + $0x70] sm:$0xff]
    %v1482 = vld [vmem:[%s6 + $0x78] sm:$0xff]
    %v1483 = vsel %vm165, %v1461, 0
    %1485 = vmatpush.msra.mxu0 0.0
    %1486 = vmatpush.msra.mxu0 0.0
    %1487 = vmatpush.msra.mxu0 0.0
    %1488 = vmatpush.msra.mxu0 0.0
    %1489 = vmatpush.msra.mxu0 0.0
    %1490 = vmatpush.msra.mxu0 0.0
    %1491 = vmatpush.msra.mxu0 0.0
    %1492 = vmatpush.msra.mxu0 0.0
    %1493 = vmatpush.msra.mxu0 %v1481
    %1494 = vmatpush.msra.mxu0 %v1479
    %1495 = vmatpush.msra.mxu0 %v1477
    %1496 = vmatpush.msra.mxu0 %v1475
    %1497 = vmatpush.msra.mxu0 %v1473
    %1498 = vmatpush.msra.mxu0 %v1471
    %1499 = vmatpush.msra.mxu0 %v1469
    %1500 = vmatpush.msra.mxu0 %v1467
    %1501 = vmatmul.f32.gmra.mxu0 %v1483
    %v1502 = vpop.f32.mrf.mxu0
    %v1503 = vadd.f32 0.0, %v1502
    %1504 = vdwg.mxu0
    %1505 = vmatpush.msra.mxu0 0.0
    %1506 = vmatpush.msra.mxu0 0.0
    %1507 = vmatpush.msra.mxu0 0.0
    %1508 = vmatpush.msra.mxu0 0.0
    %1509 = vmatpush.msra.mxu0 0.0
    %1510 = vmatpush.msra.mxu0 0.0
    %1511 = vmatpush.msra.mxu0 0.0
    %1512 = vmatpush.msra.mxu0 0.0
    %1513 = vmatpush.msra.mxu0 %v1482
    %1514 = vmatpush.msra.mxu0 %v1480
    %1515 = vmatpush.msra.mxu0 %v1478
    %1516 = vmatpush.msra.mxu0 %v1476
    %1517 = vmatpush.msra.mxu0 %v1474
    %1518 = vmatpush.msra.mxu0 %v1472
    %1519 = vmatpush.msra.mxu0 %v1470
    %1520 = vmatpush.msra.mxu0 %v1468
    %1521 = vmatmul.f32.gmra.mxu0 %v1483
    %v1522 = vpop.f32.mrf.mxu0
    %v1523 = vadd.f32 0.0, %v1522
    %1524 = vdwg.mxu0
    %v1525 = vld [vmem:[%s547] sm:$0xff]
    %v1526 = vld [vmem:[%s547 + $0x8] sm:$0xff]
    %v1527 = vadd.f32 %v1525, %v1503
    %v1528 = vxor.u32 %v1527, 2147483648
    %v1529 = vmul.f32 %v1528, 1.442695
    %v1530 = vpow.pop %v1529
    %v1531 = vadd.f32 %v1530, 1.0
    %v1532 = vrcp.pop %v1531
    %v1533 = vmul.f32 %v1531, %v1532
    %v1534 = vsub.f32 1.0, %v1533
    %v1535 = vmul.f32 %v1532, %v1534
    %v1536 = vadd.f32 %v1532, %v1535
    %vm1537 = vweird.f32 %v1531
    %vm1538 = vweird.f32 %v1532
    %vm1539 = vmor %vm1537, %vm1538
    %v1540 = vsel %vm1539, %v1532, %v1536
    %v1541 = vand.u32 2147483647, %v1531
    %vm1542 = vcmp.eq.f32.partialorder %v1541, 8.507059e+37
    %v1543 = vand.u32 %v1531, 2147483648
    %v1544 = vor.u32 1.1754944e-38, %v1543
    %v1545 = vsel %vm1542, %v1544, %v1540
    %v1546 = vmul.f32 1.0, %v1545
    %v1547 = vld [vmem:[%s8] sm:$0x1]
    %v1549 = vperm.slane %v1547, 0
    %v1551 = vadd.f32 %v1523, %v1549
    %v1552 = vmul.f32 %v1546, %v1551
    %v1553 = vadd.f32 %v1526, %v1552
    %v1554 = vtanh.pop %v1553
    %v1555 = vsub.f32 1.0, %v1546
    %1557 = vrot.lane.b32.xlu0 %v1554, 64
    %v1558 = vpop.permute.xlu0 %1557
    %v1560 = vmul.f32 %v1555, %v1558
    %v1561 = vmul.f32 %v1546, %v1458
    %v1562 = vadd.f32 %v1560, %v1561
    %1564 = vrot.lane.b32.xlu0 %v1562, 64
    %v1565 = vpop.permute.xlu0 %1564
    %s1567 = scalar_lea.vmem %s9, 24
    %1568 = vst.msk [vmem:[%s1567] sm:$0xff] %vm57, %v1565
    %s1569 = scalar_lea.vmem %s9, 32
    %1570 = vst.msk [vmem:[%s1569] sm:$0xff] %vm1257, %v1565
    %v1571 = vld [vmem:[%s6] sm:$0xff]
    %v1572 = vld [vmem:[%s6 + $0x8] sm:$0xff]
    %v1573 = vld [vmem:[%s6 + $0x10] sm:$0xff]
    %v1574 = vld [vmem:[%s6 + $0x18] sm:$0xff]
    %v1575 = vld [vmem:[%s6 + $0x20] sm:$0xff]
    %v1576 = vld [vmem:[%s6 + $0x28] sm:$0xff]
    %v1577 = vld [vmem:[%s6 + $0x30] sm:$0xff]
    %v1578 = vld [vmem:[%s6 + $0x38] sm:$0xff]
    %v1579 = vld [vmem:[%s6 + $0x40] sm:$0xff]
    %v1580 = vld [vmem:[%s6 + $0x48] sm:$0xff]
    %v1581 = vld [vmem:[%s6 + $0x50] sm:$0xff]
    %v1582 = vld [vmem:[%s6 + $0x58] sm:$0xff]
    %v1583 = vld [vmem:[%s6 + $0x60] sm:$0xff]
    %v1584 = vld [vmem:[%s6 + $0x68] sm:$0xff]
    %v1585 = vld [vmem:[%s6 + $0x70] sm:$0xff]
    %v1586 = vld [vmem:[%s6 + $0x78] sm:$0xff]
    %v1587 = vsel %vm165, %v1565, 0
    %1589 = vmatpush.msra.mxu0 0.0
    %1590 = vmatpush.msra.mxu0 0.0
    %1591 = vmatpush.msra.mxu0 0.0
    %1592 = vmatpush.msra.mxu0 0.0
    %1593 = vmatpush.msra.mxu0 0.0
    %1594 = vmatpush.msra.mxu0 0.0
    %1595 = vmatpush.msra.mxu0 0.0
    %1596 = vmatpush.msra.mxu0 0.0
    %1597 = vmatpush.msra.mxu0 %v1585
    %1598 = vmatpush.msra.mxu0 %v1583
    %1599 = vmatpush.msra.mxu0 %v1581
    %1600 = vmatpush.msra.mxu0 %v1579
    %1601 = vmatpush.msra.mxu0 %v1577
    %1602 = vmatpush.msra.mxu0 %v1575
    %1603 = vmatpush.msra.mxu0 %v1573
    %1604 = vmatpush.msra.mxu0 %v1571
    %1605 = vmatmul.f32.gmra.mxu0 %v1587
    %v1606 = vpop.f32.mrf.mxu0
    %v1607 = vadd.f32 0.0, %v1606
    %1608 = vdwg.mxu0
    %1609 = vmatpush.msra.mxu0 0.0
    %1610 = vmatpush.msra.mxu0 0.0
    %1611 = vmatpush.msra.mxu0 0.0
    %1612 = vmatpush.msra.mxu0 0.0
    %1613 = vmatpush.msra.mxu0 0.0
    %1614 = vmatpush.msra.mxu0 0.0
    %1615 = vmatpush.msra.mxu0 0.0
    %1616 = vmatpush.msra.mxu0 0.0
    %1617 = vmatpush.msra.mxu0 %v1586
    %1618 = vmatpush.msra.mxu0 %v1584
    %1619 = vmatpush.msra.mxu0 %v1582
    %1620 = vmatpush.msra.mxu0 %v1580
    %1621 = vmatpush.msra.mxu0 %v1578
    %1622 = vmatpush.msra.mxu0 %v1576
    %1623 = vmatpush.msra.mxu0 %v1574
    %1624 = vmatpush.msra.mxu0 %v1572
    %1625 = vmatmul.f32.gmra.mxu0 %v1587
    %v1626 = vpop.f32.mrf.mxu0
    %v1627 = vadd.f32 0.0, %v1626
    %1628 = vdwg.mxu0
    %v1629 = vld [vmem:[%s650] sm:$0xff]
    %v1630 = vld [vmem:[%s650 + $0x8] sm:$0xff]
    %v1631 = vadd.f32 %v1629, %v1607
    %v1632 = vxor.u32 %v1631, 2147483648
    %v1633 = vmul.f32 %v1632, 1.442695
    %v1634 = vpow.pop %v1633
    %v1635 = vadd.f32 %v1634, 1.0
    %v1636 = vrcp.pop %v1635
    %v1637 = vmul.f32 %v1635, %v1636
    %v1638 = vsub.f32 1.0, %v1637
    %v1639 = vmul.f32 %v1636, %v1638
    %v1640 = vadd.f32 %v1636, %v1639
    %vm1641 = vweird.f32 %v1635
    %vm1642 = vweird.f32 %v1636
    %vm1643 = vmor %vm1641, %vm1642
    %v1644 = vsel %vm1643, %v1636, %v1640
    %v1645 = vand.u32 2147483647, %v1635
    %vm1646 = vcmp.eq.f32.partialorder %v1645, 8.507059e+37
    %v1647 = vand.u32 %v1635, 2147483648
    %v1648 = vor.u32 1.1754944e-38, %v1647
    %v1649 = vsel %vm1646, %v1648, %v1644
    %v1650 = vmul.f32 1.0, %v1649
    %v1651 = vld [vmem:[%s8] sm:$0x1]
    %v1653 = vperm.slane %v1651, 0
    %v1655 = vadd.f32 %v1627, %v1653
    %v1656 = vmul.f32 %v1650, %v1655
    %v1657 = vadd.f32 %v1630, %v1656
    %v1658 = vtanh.pop %v1657
    %v1659 = vsub.f32 1.0, %v1650
    %1661 = vrot.lane.b32.xlu0 %v1658, 64
    %v1662 = vpop.permute.xlu0 %1661
    %v1664 = vmul.f32 %v1659, %v1662
    %v1665 = vmul.f32 %v1650, %v1562
    %v1666 = vadd.f32 %v1664, %v1665
    %1668 = vrot.lane.b32.xlu0 %v1666, 64
    %v1669 = vpop.permute.xlu0 %1668
    %1671 = vst.msk [vmem:[%s1569] sm:$0xff] %vm57, %v1669
    %1672 = vst.msk [vmem:[%s1567] sm:$0xff] %vm1257, %v1669
    %v1673 = vld [vmem:[%s6] sm:$0xff]
    %v1674 = vld [vmem:[%s6 + $0x8] sm:$0xff]
    %v1675 = vld [vmem:[%s6 + $0x10] sm:$0xff]
    %v1676 = vld [vmem:[%s6 + $0x18] sm:$0xff]
    %v1677 = vld [vmem:[%s6 + $0x20] sm:$0xff]
    %v1678 = vld [vmem:[%s6 + $0x28] sm:$0xff]
    %v1679 = vld [vmem:[%s6 + $0x30] sm:$0xff]
    %v1680 = vld [vmem:[%s6 + $0x38] sm:$0xff]
    %v1681 = vld [vmem:[%s6 + $0x40] sm:$0xff]
    %v1682 = vld [vmem:[%s6 + $0x48] sm:$0xff]
    %v1683 = vld [vmem:[%s6 + $0x50] sm:$0xff]
    %v1684 = vld [vmem:[%s6 + $0x58] sm:$0xff]
    %v1685 = vld [vmem:[%s6 + $0x60] sm:$0xff]
    %v1686 = vld [vmem:[%s6 + $0x68] sm:$0xff]
    %v1687 = vld [vmem:[%s6 + $0x70] sm:$0xff]
    %v1688 = vld [vmem:[%s6 + $0x78] sm:$0xff]
    %v1689 = vsel %vm165, %v1669, 0
    %1691 = vmatpush.msra.mxu0 0.0
    %1692 = vmatpush.msra.mxu0 0.0
    %1693 = vmatpush.msra.mxu0 0.0
    %1694 = vmatpush.msra.mxu0 0.0
    %1695 = vmatpush.msra.mxu0 0.0
    %1696 = vmatpush.msra.mxu0 0.0
    %1697 = vmatpush.msra.mxu0 0.0
    %1698 = vmatpush.msra.mxu0 0.0
    %1699 = vmatpush.msra.mxu0 %v1687
    %1700 = vmatpush.msra.mxu0 %v1685
    %1701 = vmatpush.msra.mxu0 %v1683
    %1702 = vmatpush.msra.mxu0 %v1681
    %1703 = vmatpush.msra.mxu0 %v1679
    %1704 = vmatpush.msra.mxu0 %v1677
    %1705 = vmatpush.msra.mxu0 %v1675
    %1706 = vmatpush.msra.mxu0 %v1673
    %1707 = vmatmul.f32.gmra.mxu0 %v1689
    %v1708 = vpop.f32.mrf.mxu0
    %v1709 = vadd.f32 0.0, %v1708
    %1710 = vdwg.mxu0
    %1711 = vmatpush.msra.mxu0 0.0
    %1712 = vmatpush.msra.mxu0 0.0
    %1713 = vmatpush.msra.mxu0 0.0
    %1714 = vmatpush.msra.mxu0 0.0
    %1715 = vmatpush.msra.mxu0 0.0
    %1716 = vmatpush.msra.mxu0 0.0
    %1717 = vmatpush.msra.mxu0 0.0
    %1718 = vmatpush.msra.mxu0 0.0
    %1719 = vmatpush.msra.mxu0 %v1688
    %1720 = vmatpush.msra.mxu0 %v1686
    %1721 = vmatpush.msra.mxu0 %v1684
    %1722 = vmatpush.msra.mxu0 %v1682
    %1723 = vmatpush.msra.mxu0 %v1680
    %1724 = vmatpush.msra.mxu0 %v1678
    %1725 = vmatpush.msra.mxu0 %v1676
    %1726 = vmatpush.msra.mxu0 %v1674
    %1727 = vmatmul.f32.gmra.mxu0 %v1689
    %v1728 = vpop.f32.mrf.mxu0
    %v1729 = vadd.f32 0.0, %v1728
    %1730 = vdwg.mxu0
    %v1731 = vld [vmem:[%s753] sm:$0xff]
    %v1732 = vld [vmem:[%s753 + $0x8] sm:$0xff]
    %v1733 = vadd.f32 %v1731, %v1709
    %v1734 = vxor.u32 %v1733, 2147483648
    %v1735 = vmul.f32 %v1734, 1.442695
    %v1736 = vpow.pop %v1735
    %v1737 = vadd.f32 %v1736, 1.0
    %v1738 = vrcp.pop %v1737
    %v1739 = vmul.f32 %v1737, %v1738
    %v1740 = vsub.f32 1.0, %v1739
    %v1741 = vmul.f32 %v1738, %v1740
    %v1742 = vadd.f32 %v1738, %v1741
    %vm1743 = vweird.f32 %v1737
    %vm1744 = vweird.f32 %v1738
    %vm1745 = vmor %vm1743, %vm1744
    %v1746 = vsel %vm1745, %v1738, %v1742
    %v1747 = vand.u32 2147483647, %v1737
    %vm1748 = vcmp.eq.f32.partialorder %v1747, 8.507059e+37
    %v1749 = vand.u32 %v1737, 2147483648
    %v1750 = vor.u32 1.1754944e-38, %v1749
    %v1751 = vsel %vm1748, %v1750, %v1746
    %v1752 = vmul.f32 1.0, %v1751
    %v1753 = vld [vmem:[%s8] sm:$0x1]
    %v1755 = vperm.slane %v1753, 0
    %v1757 = vadd.f32 %v1729, %v1755
    %v1758 = vmul.f32 %v1752, %v1757
    %v1759 = vadd.f32 %v1732, %v1758
    %v1760 = vtanh.pop %v1759
    %v1761 = vsub.f32 1.0, %v1752
    %1763 = vrot.lane.b32.xlu0 %v1760, 64
    %v1764 = vpop.permute.xlu0 %1763
    %v1766 = vmul.f32 %v1761, %v1764
    %v1767 = vmul.f32 %v1752, %v1666
    %v1768 = vadd.f32 %v1766, %v1767
    %1770 = vrot.lane.b32.xlu0 %v1768, 64
    %v1771 = vpop.permute.xlu0 %1770
    %1773 = vst.msk [vmem:[%s1465] sm:$0xff] %vm57, %v1771
    %1774 = vst.msk [vmem:[%s1463] sm:$0xff] %vm1257, %v1771
    %v1775 = vld [vmem:[%s6] sm:$0xff]
    %v1776 = vld [vmem:[%s6 + $0x8] sm:$0xff]
    %v1777 = vld [vmem:[%s6 + $0x10] sm:$0xff]
    %v1778 = vld [vmem:[%s6 + $0x18] sm:$0xff]
    %v1779 = vld [vmem:[%s6 + $0x20] sm:$0xff]
    %v1780 = vld [vmem:[%s6 + $0x28] sm:$0xff]
    %v1781 = vld [vmem:[%s6 + $0x30] sm:$0xff]
    %v1782 = vld [vmem:[%s6 + $0x38] sm:$0xff]
    %v1783 = vld [vmem:[%s6 + $0x40] sm:$0xff]
    %v1784 = vld [vmem:[%s6 + $0x48] sm:$0xff]
    %v1785 = vld [vmem:[%s6 + $0x50] sm:$0xff]
    %v1786 = vld [vmem:[%s6 + $0x58] sm:$0xff]
    %v1787 = vld [vmem:[%s6 + $0x60] sm:$0xff]
    %v1788 = vld [vmem:[%s6 + $0x68] sm:$0xff]
    %v1789 = vld [vmem:[%s6 + $0x70] sm:$0xff]
    %v1790 = vld [vmem:[%s6 + $0x78] sm:$0xff]
    %v1791 = vsel %vm165, %v1771, 0
    %1793 = vmatpush.msra.mxu0 0.0
    %1794 = vmatpush.msra.mxu0 0.0
    %1795 = vmatpush.msra.mxu0 0.0
    %1796 = vmatpush.msra.mxu0 0.0
    %1797 = vmatpush.msra.mxu0 0.0
    %1798 = vmatpush.msra.mxu0 0.0
    %1799 = vmatpush.msra.mxu0 0.0
    %1800 = vmatpush.msra.mxu0 0.0
    %1801 = vmatpush.msra.mxu0 %v1789
    %1802 = vmatpush.msra.mxu0 %v1787
    %1803 = vmatpush.msra.mxu0 %v1785
    %1804 = vmatpush.msra.mxu0 %v1783
    %1805 = vmatpush.msra.mxu0 %v1781
    %1806 = vmatpush.msra.mxu0 %v1779
    %1807 = vmatpush.msra.mxu0 %v1777
    %1808 = vmatpush.msra.mxu0 %v1775
    %1809 = vmatmul.f32.gmra.mxu0 %v1791
    %v1810 = vpop.f32.mrf.mxu0
    %v1811 = vadd.f32 0.0, %v1810
    %1812 = vdwg.mxu0
    %1813 = vmatpush.msra.mxu0 0.0
    %1814 = vmatpush.msra.mxu0 0.0
    %1815 = vmatpush.msra.mxu0 0.0
    %1816 = vmatpush.msra.mxu0 0.0
    %1817 = vmatpush.msra.mxu0 0.0
    %1818 = vmatpush.msra.mxu0 0.0
    %1819 = vmatpush.msra.mxu0 0.0
    %1820 = vmatpush.msra.mxu0 0.0
    %1821 = vmatpush.msra.mxu0 %v1790
    %1822 = vmatpush.msra.mxu0 %v1788
    %1823 = vmatpush.msra.mxu0 %v1786
    %1824 = vmatpush.msra.mxu0 %v1784
    %1825 = vmatpush.msra.mxu0 %v1782
    %1826 = vmatpush.msra.mxu0 %v1780
    %1827 = vmatpush.msra.mxu0 %v1778
    %1828 = vmatpush.msra.mxu0 %v1776
    %1829 = vmatmul.f32.gmra.mxu0 %v1791
    %v1830 = vpop.f32.mrf.mxu0
    %v1831 = vadd.f32 0.0, %v1830
    %1832 = vdwg.mxu0
    %v1833 = vld [vmem:[%s856] sm:$0xff]
    %v1834 = vld [vmem:[%s856 + $0x8] sm:$0xff]
    %v1835 = vadd.f32 %v1833, %v1811
    %v1836 = vxor.u32 %v1835, 2147483648
    %v1837 = vmul.f32 %v1836, 1.442695
    %v1838 = vpow.pop %v1837
    %v1839 = vadd.f32 %v1838, 1.0
    %v1840 = vrcp.pop %v1839
    %v1841 = vmul.f32 %v1839, %v1840
    %v1842 = vsub.f32 1.0, %v1841
    %v1843 = vmul.f32 %v1840, %v1842
    %v1844 = vadd.f32 %v1840, %v1843
    %vm1845 = vweird.f32 %v1839
    %vm1846 = vweird.f32 %v1840
    %vm1847 = vmor %vm1845, %vm1846
    %v1848 = vsel %vm1847, %v1840, %v1844
    %v1849 = vand.u32 2147483647, %v1839
    %vm1850 = vcmp.eq.f32.partialorder %v1849, 8.507059e+37
    %v1851 = vand.u32 %v1839, 2147483648
    %v1852 = vor.u32 1.1754944e-38, %v1851
    %v1853 = vsel %vm1850, %v1852, %v1848
    %v1854 = vmul.f32 1.0, %v1853
    %v1855 = vld [vmem:[%s8] sm:$0x1]
    %v1857 = vperm.slane %v1855, 0
    %v1859 = vadd.f32 %v1831, %v1857
    %v1860 = vmul.f32 %v1854, %v1859
    %v1861 = vadd.f32 %v1834, %v1860
    %v1862 = vtanh.pop %v1861
    %v1863 = vsub.f32 1.0, %v1854
    %1865 = vrot.lane.b32.xlu0 %v1862, 64
    %v1866 = vpop.permute.xlu0 %1865
    %v1868 = vmul.f32 %v1863, %v1866
    %v1869 = vmul.f32 %v1854, %v1768
    %v1870 = vadd.f32 %v1868, %v1869
    %1872 = vrot.lane.b32.xlu0 %v1870, 64
    %v1873 = vpop.permute.xlu0 %1872
    %1875 = vst.msk [vmem:[%s1361] sm:$0xff] %vm57, %v1873
    %1876 = vst.msk [vmem:[%s1359] sm:$0xff] %vm1257, %v1873
    %v1877 = vld [vmem:[%s6] sm:$0xff]
    %v1878 = vld [vmem:[%s6 + $0x8] sm:$0xff]
    %v1879 = vld [vmem:[%s6 + $0x10] sm:$0xff]
    %v1880 = vld [vmem:[%s6 + $0x18] sm:$0xff]
    %v1881 = vld [vmem:[%s6 + $0x20] sm:$0xff]
    %v1882 = vld [vmem:[%s6 + $0x28] sm:$0xff]
    %v1883 = vld [vmem:[%s6 + $0x30] sm:$0xff]
    %v1884 = vld [vmem:[%s6 + $0x38] sm:$0xff]
    %v1885 = vld [vmem:[%s6 + $0x40] sm:$0xff]
    %v1886 = vld [vmem:[%s6 + $0x48] sm:$0xff]
    %v1887 = vld [vmem:[%s6 + $0x50] sm:$0xff]
    %v1888 = vld [vmem:[%s6 + $0x58] sm:$0xff]
    %v1889 = vld [vmem:[%s6 + $0x60] sm:$0xff]
    %v1890 = vld [vmem:[%s6 + $0x68] sm:$0xff]
    %v1891 = vld [vmem:[%s6 + $0x70] sm:$0xff]
    %v1892 = vld [vmem:[%s6 + $0x78] sm:$0xff]
    %v1893 = vsel %vm165, %v1873, 0
    %1895 = vmatpush.msra.mxu0 0.0
    %1896 = vmatpush.msra.mxu0 0.0
    %1897 = vmatpush.msra.mxu0 0.0
    %1898 = vmatpush.msra.mxu0 0.0
    %1899 = vmatpush.msra.mxu0 0.0
    %1900 = vmatpush.msra.mxu0 0.0
    %1901 = vmatpush.msra.mxu0 0.0
    %1902 = vmatpush.msra.mxu0 0.0
    %1903 = vmatpush.msra.mxu0 %v1891
    %1904 = vmatpush.msra.mxu0 %v1889
    %1905 = vmatpush.msra.mxu0 %v1887
    %1906 = vmatpush.msra.mxu0 %v1885
    %1907 = vmatpush.msra.mxu0 %v1883
    %1908 = vmatpush.msra.mxu0 %v1881
    %1909 = vmatpush.msra.mxu0 %v1879
    %1910 = vmatpush.msra.mxu0 %v1877
    %1911 = vmatmul.f32.gmra.mxu0 %v1893
    %v1912 = vpop.f32.mrf.mxu0
    %v1913 = vadd.f32 0.0, %v1912
    %1914 = vdwg.mxu0
    %1915 = vmatpush.msra.mxu0 0.0
    %1916 = vmatpush.msra.mxu0 0.0
    %1917 = vmatpush.msra.mxu0 0.0
    %1918 = vmatpush.msra.mxu0 0.0
    %1919 = vmatpush.msra.mxu0 0.0
    %1920 = vmatpush.msra.mxu0 0.0
    %1921 = vmatpush.msra.mxu0 0.0
    %1922 = vmatpush.msra.mxu0 0.0
    %1923 = vmatpush.msra.mxu0 %v1892
    %1924 = vmatpush.msra.mxu0 %v1890
    %1925 = vmatpush.msra.mxu0 %v1888
    %1926 = vmatpush.msra.mxu0 %v1886
    %1927 = vmatpush.msra.mxu0 %v1884
    %1928 = vmatpush.msra.mxu0 %v1882
    %1929 = vmatpush.msra.mxu0 %v1880
    %1930 = vmatpush.msra.mxu0 %v1878
    %1931 = vmatmul.f32.gmra.mxu0 %v1893
    %v1932 = vpop.f32.mrf.mxu0
    %v1933 = vadd.f32 0.0, %v1932
    %1934 = vdwg.mxu0
    %v1935 = vld [vmem:[%s959] sm:$0xff]
    %v1936 = vld [vmem:[%s959 + $0x8] sm:$0xff]
    %v1937 = vadd.f32 %v1935, %v1913
    %v1938 = vxor.u32 %v1937, 2147483648
    %v1939 = vmul.f32 %v1938, 1.442695
    %v1940 = vpow.pop %v1939
    %v1941 = vadd.f32 %v1940, 1.0
    %v1942 = vrcp.pop %v1941
    %v1943 = vmul.f32 %v1941, %v1942
    %v1944 = vsub.f32 1.0, %v1943
    %v1945 = vmul.f32 %v1942, %v1944
    %v1946 = vadd.f32 %v1942, %v1945
    %vm1947 = vweird.f32 %v1941
    %vm1948 = vweird.f32 %v1942
    %vm1949 = vmor %vm1947, %vm1948
    %v1950 = vsel %vm1949, %v1942, %v1946
    %v1951 = vand.u32 2147483647, %v1941
    %vm1952 = vcmp.eq.f32.partialorder %v1951, 8.507059e+37
    %v1953 = vand.u32 %v1941, 2147483648
    %v1954 = vor.u32 1.1754944e-38, %v1953
    %v1955 = vsel %vm1952, %v1954, %v1950
    %v1956 = vmul.f32 1.0, %v1955
    %v1957 = vld [vmem:[%s8] sm:$0x1]
    %v1959 = vperm.slane %v1957, 0
    %v1961 = vadd.f32 %v1933, %v1959
    %v1962 = vmul.f32 %v1956, %v1961
    %v1963 = vadd.f32 %v1936, %v1962
    %v1964 = vtanh.pop %v1963
    %v1965 = vsub.f32 1.0, %v1956
    %1967 = vrot.lane.b32.xlu0 %v1964, 64
    %v1968 = vpop.permute.xlu0 %1967
    %v1970 = vmul.f32 %v1965, %v1968
    %v1971 = vmul.f32 %v1956, %v1870
    %v1972 = vadd.f32 %v1970, %v1971
    %1974 = vrot.lane.b32.xlu0 %v1972, 64
    %v1975 = vpop.permute.xlu0 %1974
    %1977 = vst.msk [vmem:[%s1256] sm:$0xff] %vm57, %v1975
    %1978 = vst.msk [vmem:[%s9] sm:$0xff] %vm1257, %v1975
    %s1979 = scalar_lea.vmem [#allocation4], 8
    %1980 = vst.msk [vmem:[%s1979] sm:$0xff] %vm165, %v1975
    // Predicated region
    $region38: #{bidirectional_gru_encoder.1} parent=1 // pred_check
      _
    $region39: #{bidirectional_gru_encoder.1} parent=1 // pred_check_branch
      %1982 = sbr.rel (0) target = $region41
    $region40: #{bidirectional_gru_encoder.1} parent=1 // pred_region
      _
    $region41: #{bidirectional_gru_encoder.1} parent=1 // pred_fallthru
      _
    // Predicated region
    $region42: #{bidirectional_gru_encoder.1} parent=1 // pred_check
      _
    $region43: #{bidirectional_gru_encoder.1} parent=1 // pred_check_branch
      %1984 = sbr.rel (0) target = $region45
    $region44: #{bidirectional_gru_encoder.1} parent=1 // pred_region
      %1986 = vsyncadd [#allocation5], 0
      %s1987 = sshll.u32 [#allocation4], 4
      %s1988 = int_to_ptr.vmem [resolvable:$true] %s1987
      %s1989 = sshll.u32 %s10, 4
      %s1990 = int_to_ptr.hbm [resolvable:$true] %s1989
      %1995 = dma.vmem_to_hbm [thread:$0]  %s1988, 256, %s1990, [#allocation5], 128, 128, 8
    $region45: #{bidirectional_gru_encoder.1} parent=1 // pred_fallthru
      _
    // Predicated region
    $region46: #{bidirectional_gru_encoder.1} parent=1 // pred_check
      _
    $region47: #{bidirectional_gru_encoder.1} parent=1 // pred_check_branch
      %1997 = sbr.rel (0) target = $region49
    $region48: #{bidirectional_gru_encoder.1} parent=1 // pred_region
      _
    $region49: #{bidirectional_gru_encoder.1} parent=1 // pred_fallthru
      _
    // Predicated region
    $region50: #{bidirectional_gru_encoder.1} parent=1 // pred_check
      _
    $region51: #{bidirectional_gru_encoder.1} parent=1 // pred_check_branch
      %1999 = sbr.rel (0) target = $region53
    $region52: #{bidirectional_gru_encoder.1} parent=1 // pred_region
      %2001 = dma.done [#allocation5], 256
    $region53: #{bidirectional_gru_encoder.1} parent=1 // pred_fallthru
      _
    %2002 = vsyncpa [#allocation5], 1

</llo_original>
